<compile_context>
chip_gen: v7x
topology: tpu7x:2x2x1
jax: 0.10.0
libtpu: 0.0.40
codegen_flags: <defaults>
</compile_context>

<pallas_src>
import functools

import jax
import jax.numpy as jnp
from jax.experimental import pallas as pl
from jax.experimental.pallas import tpu as pltpu

EPS = 1e-6


# ------------------------------- fused Pallas kernel -----------------------------------
def wasam_kernel(xl_ref, xr_ref,
                 lng_ref, lnb_ref,
                 wl1_ref, bl1_ref, wr1_ref, br1_ref,
                 wl2_ref, bl2_ref, wr2_ref, br2_ref,
                 wlr_ref, blr_ref, wrr_ref, brr_ref,
                 beta_ref, gamma_ref,
                 o_ref, *, scale):
    TH, W, Cl = xl_ref.shape
    Cr = xr_ref.shape[-1]
    Ch = wl2_ref.shape[-1]

    xl = xl_ref[...]                       # (TH, W, Cl) rows of x_rgb (channels-last)
    xr = xr_ref[...]                       # (TH, W, Cr) rows of x_hfw (channels-last)
    xl2 = xl.reshape(TH * W, Cl)
    xr2 = xr.reshape(TH * W, Cr)

    # LayerNorm2d on x_rgb: per-pixel over channels, biased variance (LayerNormFunction)
    mu = jnp.mean(xl2, axis=-1, keepdims=True)
    var = jnp.mean((xl2 - mu) ** 2, axis=-1, keepdims=True)
    xln = (xl2 - mu) * jax.lax.rsqrt(var + EPS) * lng_ref[...] + lnb_ref[...]

    # six fused 1x1-conv projections (MXU matmuls, f32 accumulation, resident weights)
    q_l = jnp.dot(xln, wl1_ref[...], preferred_element_type=jnp.float32) + bl1_ref[...]
    q_r = jnp.dot(xr2, wr1_ref[...], preferred_element_type=jnp.float32) + br1_ref[...]
    v_l = jnp.dot(xl2, wl2_ref[...], preferred_element_type=jnp.float32) + bl2_ref[...]
    v_r = jnp.dot(xr2, wr2_ref[...], preferred_element_type=jnp.float32) + br2_ref[...]
    r_l = jnp.dot(xl2, wlr_ref[...], preferred_element_type=jnp.float32) + blr_ref[...]
    r_r = jnp.dot(xr2, wrr_ref[...], preferred_element_type=jnp.float32) + brr_ref[...]

    q_l = q_l.reshape(TH, W, Cl)
    q_r = q_r.reshape(TH, W, Cl)
    v_l = v_l.reshape(TH, W, Ch)
    v_r = v_r.reshape(TH, W, Ch)
    r_l = r_l.reshape(TH, W, Ch)
    r_r = r_r.reshape(TH, W, Ch)

    # cross attention within each (batch, image-row): att[t,i,j] = <Q_l[t,i], Q_r[t,j]> * scale
    att = jnp.einsum('twc,tvc->twv', q_l, q_r,
                     preferred_element_type=jnp.float32) * scale         # (TH, W, W)

    # softmax over right positions (last dim)  -> F_r2l
    m1 = jnp.max(att, axis=-1, keepdims=True)
    e1 = jnp.exp(att - m1)
    p1 = e1 / jnp.sum(e1, axis=-1, keepdims=True)
    f_r2l = jnp.einsum('twv,tvc->twc', p1, v_r, preferred_element_type=jnp.float32)

    # softmax over left positions: softmax of att^T over its last dim   -> F_l2r
    att_t = jnp.swapaxes(att, 1, 2)                                      # (TH, W, W)
    m2 = jnp.max(att_t, axis=-1, keepdims=True)
    e2 = jnp.exp(att_t - m2)
    p2 = e2 / jnp.sum(e2, axis=-1, keepdims=True)
    f_l2r = jnp.einsum('tvw,twc->tvc', p2, v_l, preferred_element_type=jnp.float32)

    out_l = r_l + beta_ref[...] * f_r2l                                  # (TH, W, Ch)
    out_r = r_r + gamma_ref[...] * f_l2r                                 # (TH, W, Ch)
    o_ref[...] = jnp.concatenate([out_l, out_r], axis=-1)                # (TH, W, Cl)


# ------------------------------- wrapper / tiling ---------------------------------------
def _pick_row_tile(bh, w, cl, cr, budget_bytes=8 << 20):
    """Largest divisor of B*H that keeps the per-tile f32 live set under a VMEM budget."""
    ch = cl // 2
    per_row = 4 * (3 * w * w + w * (3 * cl + 2 * cr) + 6 * w * ch)
    cap = max(1, min(8, budget_bytes // max(per_row, 1)))
    th = 1
    for t in range(1, min(cap, bh) + 1):
        if bh % t == 0:
            th = t
    return th


@jax.jit
def wasam_forward(params, x_rgb, x_hfw):
    B, Cl, H, W = x_rgb.shape
    Cr = x_hfw.shape[1]
    scale = float((0.5 * (Cl + Cr)) ** -0.5)

    # NCHW -> (B*H, W, C) channels-last slabs (channel on the lane axis)
    xl = jnp.transpose(x_rgb, (0, 2, 3, 1)).reshape(B * H, W, Cl).astype(jnp.float32)
    xr = jnp.transpose(x_hfw, (0, 2, 3, 1)).reshape(B * H, W, Cr).astype(jnp.float32)

    BH = B * H
    TH = _pick_row_tile(BH, W, Cl, Cr)
    grid = (BH // TH,)

    def row_spec(c):
        return pl.BlockSpec((TH, W, c), lambda i: (i, 0, 0))

    def const2d(a):
        return pl.BlockSpec(a.shape, lambda i: (0, 0))     # resident across the grid

    p = params
    args = (xl, xr, p['ln_g'], p['ln_b'],
            p['wl1'], p['bl1'], p['wr1'], p['br1'],
            p['wl2'], p['bl2'], p['wr2'], p['br2'],
            p['wlres'], p['blres'], p['wrres'], p['brres'],
            p['beta'], p['gamma'])
    in_specs = [row_spec(Cl), row_spec(Cr)] + [const2d(a) for a in args[2:]]

    out = pl.pallas_call(
        functools.partial(wasam_kernel, scale=scale),
        out_shape=jax.ShapeDtypeStruct((BH, W, Cl), jnp.float32),
        grid=grid,
        in_specs=in_specs,
        out_specs=pl.BlockSpec((TH, W, Cl), lambda i: (i, 0, 0)),
        compiler_params=pltpu.CompilerParams(
            dimension_semantics=("parallel",),
            vmem_limit_bytes=32 * 1024 * 1024),
    )(*args)

    # (B*H, W, Cl) -> NCHW
    return jnp.transpose(out.reshape(B, H, W, Cl), (0, 3, 1, 2))


# ---------------------------- deterministic parameter init -----------------------------
def init_params(key, c_rgb, cr):
    ch = c_rgb // 2
    ks = jax.random.split(key, 16)

    def rnd(k, shape, std=0.05):
        return jax.random.normal(k, shape, jnp.float32) * std

    # Conv2d 1x1 weights stored as (in, out) matrices; biases as (1, out).
    # NOTE: the PyTorch module initializes beta/gamma to zero; we use small nonzero
    # values so the attention branch is actually exercised by the correctness check.
    return dict(
        ln_g=jnp.ones((1, c_rgb), jnp.float32) + rnd(ks[0], (1, c_rgb), 0.01),
        ln_b=rnd(ks[1], (1, c_rgb), 0.01),
        wl1=rnd(ks[2], (c_rgb, c_rgb)), bl1=rnd(ks[3], (1, c_rgb), 0.01),
        wr1=rnd(ks[4], (cr, c_rgb)),    br1=rnd(ks[5], (1, c_rgb), 0.01),
        wl2=rnd(ks[6], (c_rgb, ch)),    bl2=rnd(ks[7], (1, ch), 0.01),
        wr2=rnd(ks[8], (cr, ch)),       br2=rnd(ks[9], (1, ch), 0.01),
        wlres=rnd(ks[10], (c_rgb, ch)), blres=rnd(ks[11], (1, ch), 0.01),
        wrres=rnd(ks[12], (cr, ch)),    brres=rnd(ks[13], (1, ch), 0.01),
        beta=rnd(ks[14], (1, ch), 0.1),
        gamma=rnd(ks[15], (1, ch), 0.1),
    )


# ---------------------------- pure-JAX reference (sanity check) ------------------------
def ref_forward(params, x_rgb, x_hfw):
    B, Cl, H, W = x_rgb.shape
    Cr = x_hfw.shape[1]
    scale = (0.5 * (Cl + Cr)) ** -0.5

    xl = jnp.transpose(x_rgb, (0, 2, 3, 1)).astype(jnp.float32)   # B,H,W,Cl
    xr = jnp.transpose(x_hfw, (0, 2, 3, 1)).astype(jnp.float32)   # B,H,W,Cr

    mu = xl.mean(-1, keepdims=True)
    var = ((xl - mu) ** 2).mean(-1, keepdims=True)
    xln = (xl - mu) / jnp.sqrt(var + EPS) * params['ln_g'].reshape(-1) + params['ln_b'].reshape(-1)

    q_l = xln @ params['wl1'] + params['bl1'].reshape(-1)
    q_r = xr @ params['wr1'] + params['br1'].reshape(-1)
    v_l = xl @ params['wl2'] + params['bl2'].reshape(-1)
    v_r = xr @ params['wr2'] + params['br2'].reshape(-1)
    r_l = xl @ params['wlres'] + params['blres'].reshape(-1)
    r_r = xr @ params['wrres'] + params['brres'].reshape(-1)

    att = jnp.einsum('bhwc,bhvc->bhwv', q_l, q_r) * scale
    p1 = jax.nn.softmax(att, axis=-1)
    f_r2l = jnp.einsum('bhwv,bhvc->bhwc', p1, v_r)
    att_t = jnp.swapaxes(att, 2, 3)
    p2 = jax.nn.softmax(att_t, axis=-1)
    f_l2r = jnp.einsum('bhvw,bhwc->bhvc', p2, v_l)

    out_l = r_l + params['beta'].reshape(-1) * f_r2l
    out_r = r_r + params['gamma'].reshape(-1) * f_l2r
    out = jnp.concatenate([out_l, out_r], axis=-1)                # B,H,W,Cl
    return jnp.transpose(out, (0, 3, 1, 2))                       # NCHW


# --------------------------------------- main ------------------------------------------
if __name__ == "__main__":
    key = jax.random.PRNGKey(0)
    kp, k1, k2 = jax.random.split(key, 3)

    B, C_RGB, CR, H, W = 2, 64, 32, 16, 16
    params = init_params(kp, C_RGB, CR)
    x_rgb = jax.random.normal(k1, (B, C_RGB, H, W), jnp.float32)
    x_hfw = jax.random.normal(k2, (B, CR, H, W), jnp.float32)

    out = jax.block_until_ready(wasam_forward(params, x_rgb, x_hfw))
    assert out.shape == (B, C_RGB, H, W), out.shape

    ref = jax.block_until_ready(ref_forward(params, x_rgb, x_hfw))
    if not bool(jnp.allclose(out, ref, atol=1e-2, rtol=1e-2)):
        raise SystemExit(f"mismatch vs reference: max|diff|={float(jnp.max(jnp.abs(out - ref)))}")

    print("KERNEL_OK")
</pallas_src>

<mosaic_0001>
module attributes {stable_mosaic.version = 11 : i64} {
  func.func @wasam_kernel(%arg0: i32, %arg1: memref<8x16x64xf32, #tpu.memory_space<vmem>>, %arg2: memref<8x16x32xf32, #tpu.memory_space<vmem>>, %arg3: memref<1x64xf32, #tpu.memory_space<vmem>>, %arg4: memref<1x64xf32, #tpu.memory_space<vmem>>, %arg5: memref<64x64xf32, #tpu.memory_space<vmem>>, %arg6: memref<1x64xf32, #tpu.memory_space<vmem>>, %arg7: memref<32x64xf32, #tpu.memory_space<vmem>>, %arg8: memref<1x64xf32, #tpu.memory_space<vmem>>, %arg9: memref<64x32xf32, #tpu.memory_space<vmem>>, %arg10: memref<1x32xf32, #tpu.memory_space<vmem>>, %arg11: memref<32x32xf32, #tpu.memory_space<vmem>>, %arg12: memref<1x32xf32, #tpu.memory_space<vmem>>, %arg13: memref<64x32xf32, #tpu.memory_space<vmem>>, %arg14: memref<1x32xf32, #tpu.memory_space<vmem>>, %arg15: memref<32x32xf32, #tpu.memory_space<vmem>>, %arg16: memref<1x32xf32, #tpu.memory_space<vmem>>, %arg17: memref<1x32xf32, #tpu.memory_space<vmem>>, %arg18: memref<1x32xf32, #tpu.memory_space<vmem>>, %arg19: memref<8x16x64xf32, #tpu.memory_space<vmem>>) attributes {dimension_semantics = [#tpu.dimension_semantics<parallel>], iteration_bounds = array<i64: 4>, scalar_prefetch = 0 : i64, scratch_operands = 0 : i64, tpu.core_type = #tpu.core_type<tc>, window_params = [{transform_indices = @transform_0, window_bounds = array<i64: 8, 16, 64>}, {transform_indices = @transform_1, window_bounds = array<i64: 8, 16, 32>}, {pipeline_mode = #tpu.pipeline_mode<synchronous>, transform_indices = @transform_2, window_bounds = array<i64: 1, 64>}, {pipeline_mode = #tpu.pipeline_mode<synchronous>, transform_indices = @transform_3, window_bounds = array<i64: 1, 64>}, {pipeline_mode = #tpu.pipeline_mode<synchronous>, transform_indices = @transform_4, window_bounds = array<i64: 64, 64>}, {pipeline_mode = #tpu.pipeline_mode<synchronous>, transform_indices = @transform_5, window_bounds = array<i64: 1, 64>}, {pipeline_mode = #tpu.pipeline_mode<synchronous>, transform_indices = @transform_6, window_bounds = array<i64: 32, 64>}, {pipeline_mode = #tpu.pipeline_mode<synchronous>, transform_indices = @transform_7, window_bounds = array<i64: 1, 64>}, {pipeline_mode = #tpu.pipeline_mode<synchronous>, transform_indices = @transform_8, window_bounds = array<i64: 64, 32>}, {pipeline_mode = #tpu.pipeline_mode<synchronous>, transform_indices = @transform_9, window_bounds = array<i64: 1, 32>}, {pipeline_mode = #tpu.pipeline_mode<synchronous>, transform_indices = @transform_10, window_bounds = array<i64: 32, 32>}, {pipeline_mode = #tpu.pipeline_mode<synchronous>, transform_indices = @transform_11, window_bounds = array<i64: 1, 32>}, {pipeline_mode = #tpu.pipeline_mode<synchronous>, transform_indices = @transform_12, window_bounds = array<i64: 64, 32>}, {pipeline_mode = #tpu.pipeline_mode<synchronous>, transform_indices = @transform_13, window_bounds = array<i64: 1, 32>}, {pipeline_mode = #tpu.pipeline_mode<synchronous>, transform_indices = @transform_14, window_bounds = array<i64: 32, 32>}, {pipeline_mode = #tpu.pipeline_mode<synchronous>, transform_indices = @transform_15, window_bounds = array<i64: 1, 32>}, {pipeline_mode = #tpu.pipeline_mode<synchronous>, transform_indices = @transform_16, window_bounds = array<i64: 1, 32>}, {pipeline_mode = #tpu.pipeline_mode<synchronous>, transform_indices = @transform_17, window_bounds = array<i64: 1, 32>}, {transform_indices = @transform_18, window_bounds = array<i64: 8, 16, 64>}]} {
    %c0 = arith.constant 0 : index
    %c0_0 = arith.constant 0 : index
    %c0_1 = arith.constant 0 : index
    %0 = vector.load %arg1[%c0, %c0_0, %c0_1] : memref<8x16x64xf32, #tpu.memory_space<vmem>>, vector<8x16x64xf32>
    %c0_2 = arith.constant 0 : index
    %c0_3 = arith.constant 0 : index
    %c0_4 = arith.constant 0 : index
    %1 = vector.load %arg2[%c0_2, %c0_3, %c0_4] : memref<8x16x32xf32, #tpu.memory_space<vmem>>, vector<8x16x32xf32>
    %2 = vector.shape_cast %0 : vector<8x16x64xf32> to vector<128x64xf32>
    %3 = vector.shape_cast %1 : vector<8x16x32xf32> to vector<128x32xf32>
    %cst = arith.constant dense<0.000000e+00> : vector<128xf32>
    %4 = vector.multi_reduction <add>, %2, %cst [1] : vector<128x64xf32> to vector<128xf32>
    %5 = vector.shape_cast %4 : vector<128xf32> to vector<128x1xf32>
    %cst_5 = arith.constant 6.400000e+01 : f32
    %6 = vector.broadcast %cst_5 : f32 to vector<128x1xf32>
    %7 = arith.divf %5, %6 : vector<128x1xf32>
    %8 = vector.broadcast %7 : vector<128x1xf32> to vector<128x64xf32>
    %9 = arith.subf %2, %8 : vector<128x64xf32>
    %10 = arith.mulf %9, %9 : vector<128x64xf32>
    %cst_6 = arith.constant dense<0.000000e+00> : vector<128xf32>
    %11 = vector.multi_reduction <add>, %10, %cst_6 [1] : vector<128x64xf32> to vector<128xf32>
    %12 = vector.shape_cast %11 : vector<128xf32> to vector<128x1xf32>
    %cst_7 = arith.constant 6.400000e+01 : f32
    %13 = vector.broadcast %cst_7 : f32 to vector<128x1xf32>
    %14 = arith.divf %12, %13 : vector<128x1xf32>
    %15 = vector.broadcast %7 : vector<128x1xf32> to vector<128x64xf32>
    %16 = arith.subf %2, %15 : vector<128x64xf32>
    %cst_8 = arith.constant 9.99999997E-7 : f32
    %17 = vector.broadcast %cst_8 : f32 to vector<128x1xf32>
    %18 = arith.addf %14, %17 : vector<128x1xf32>
    %19 = math.rsqrt %18 : vector<128x1xf32>
    %20 = vector.broadcast %19 : vector<128x1xf32> to vector<128x64xf32>
    %21 = arith.mulf %16, %20 : vector<128x64xf32>
    %c0_9 = arith.constant 0 : index
    %c0_10 = arith.constant 0 : index
    %22 = vector.load %arg3[%c0_9, %c0_10] : memref<1x64xf32, #tpu.memory_space<vmem>>, vector<1x64xf32>
    %23 = vector.broadcast %22 : vector<1x64xf32> to vector<128x64xf32>
    %24 = arith.mulf %21, %23 : vector<128x64xf32>
    %c0_11 = arith.constant 0 : index
    %c0_12 = arith.constant 0 : index
    %25 = vector.load %arg4[%c0_11, %c0_12] : memref<1x64xf32, #tpu.memory_space<vmem>>, vector<1x64xf32>
    %26 = vector.broadcast %25 : vector<1x64xf32> to vector<128x64xf32>
    %27 = arith.addf %24, %26 : vector<128x64xf32>
    %c0_13 = arith.constant 0 : index
    %c0_14 = arith.constant 0 : index
    %28 = vector.load %arg5[%c0_13, %c0_14] : memref<64x64xf32, #tpu.memory_space<vmem>>, vector<64x64xf32>
    %cst_15 = arith.constant dense<0.000000e+00> : vector<128x64xf32>
    %29 = tpu.matmul %27, %28, %cst_15 {dimension_numbers = #tpu.dot_dimension_numbers<[1], [0], [0], [1], [0, 0, 1, 1], [], []>} : vector<128x64xf32>, vector<64x64xf32>, vector<128x64xf32> -> vector<128x64xf32>
    %c0_16 = arith.constant 0 : index
    %c0_17 = arith.constant 0 : index
    %30 = vector.load %arg6[%c0_16, %c0_17] : memref<1x64xf32, #tpu.memory_space<vmem>>, vector<1x64xf32>
    %31 = vector.broadcast %30 : vector<1x64xf32> to vector<128x64xf32>
    %32 = arith.addf %29, %31 : vector<128x64xf32>
    %c0_18 = arith.constant 0 : index
    %c0_19 = arith.constant 0 : index
    %33 = vector.load %arg7[%c0_18, %c0_19] : memref<32x64xf32, #tpu.memory_space<vmem>>, vector<32x64xf32>
    %cst_20 = arith.constant dense<0.000000e+00> : vector<128x64xf32>
    %34 = tpu.matmul %3, %33, %cst_20 {dimension_numbers = #tpu.dot_dimension_numbers<[1], [0], [0], [1], [0, 0, 1, 1], [], []>} : vector<128x32xf32>, vector<32x64xf32>, vector<128x64xf32> -> vector<128x64xf32>
    %c0_21 = arith.constant 0 : index
    %c0_22 = arith.constant 0 : index
    %35 = vector.load %arg8[%c0_21, %c0_22] : memref<1x64xf32, #tpu.memory_space<vmem>>, vector<1x64xf32>
    %36 = vector.broadcast %35 : vector<1x64xf32> to vector<128x64xf32>
    %37 = arith.addf %34, %36 : vector<128x64xf32>
    %c0_23 = arith.constant 0 : index
    %c0_24 = arith.constant 0 : index
    %38 = vector.load %arg9[%c0_23, %c0_24] : memref<64x32xf32, #tpu.memory_space<vmem>>, vector<64x32xf32>
    %cst_25 = arith.constant dense<0.000000e+00> : vector<128x32xf32>
    %39 = tpu.matmul %2, %38, %cst_25 {dimension_numbers = #tpu.dot_dimension_numbers<[1], [0], [0], [1], [0, 0, 1, 1], [], []>} : vector<128x64xf32>, vector<64x32xf32>, vector<128x32xf32> -> vector<128x32xf32>
    %c0_26 = arith.constant 0 : index
    %c0_27 = arith.constant 0 : index
    %40 = vector.load %arg10[%c0_26, %c0_27] : memref<1x32xf32, #tpu.memory_space<vmem>>, vector<1x32xf32>
    %41 = vector.broadcast %40 : vector<1x32xf32> to vector<128x32xf32>
    %42 = arith.addf %39, %41 : vector<128x32xf32>
    %c0_28 = arith.constant 0 : index
    %c0_29 = arith.constant 0 : index
    %43 = vector.load %arg11[%c0_28, %c0_29] : memref<32x32xf32, #tpu.memory_space<vmem>>, vector<32x32xf32>
    %cst_30 = arith.constant dense<0.000000e+00> : vector<128x32xf32>
    %44 = tpu.matmul %3, %43, %cst_30 {dimension_numbers = #tpu.dot_dimension_numbers<[1], [0], [0], [1], [0, 0, 1, 1], [], []>} : vector<128x32xf32>, vector<32x32xf32>, vector<128x32xf32> -> vector<128x32xf32>
    %c0_31 = arith.constant 0 : index
    %c0_32 = arith.constant 0 : index
    %45 = vector.load %arg12[%c0_31, %c0_32] : memref<1x32xf32, #tpu.memory_space<vmem>>, vector<1x32xf32>
    %46 = vector.broadcast %45 : vector<1x32xf32> to vector<128x32xf32>
    %47 = arith.addf %44, %46 : vector<128x32xf32>
    %c0_33 = arith.constant 0 : index
    %c0_34 = arith.constant 0 : index
    %48 = vector.load %arg13[%c0_33, %c0_34] : memref<64x32xf32, #tpu.memory_space<vmem>>, vector<64x32xf32>
    %cst_35 = arith.constant dense<0.000000e+00> : vector<128x32xf32>
    %49 = tpu.matmul %2, %48, %cst_35 {dimension_numbers = #tpu.dot_dimension_numbers<[1], [0], [0], [1], [0, 0, 1, 1], [], []>} : vector<128x64xf32>, vector<64x32xf32>, vector<128x32xf32> -> vector<128x32xf32>
    %c0_36 = arith.constant 0 : index
    %c0_37 = arith.constant 0 : index
    %50 = vector.load %arg14[%c0_36, %c0_37] : memref<1x32xf32, #tpu.memory_space<vmem>>, vector<1x32xf32>
    %51 = vector.broadcast %50 : vector<1x32xf32> to vector<128x32xf32>
    %52 = arith.addf %49, %51 : vector<128x32xf32>
    %c0_38 = arith.constant 0 : index
    %c0_39 = arith.constant 0 : index
    %53 = vector.load %arg15[%c0_38, %c0_39] : memref<32x32xf32, #tpu.memory_space<vmem>>, vector<32x32xf32>
    %cst_40 = arith.constant dense<0.000000e+00> : vector<128x32xf32>
    %54 = tpu.matmul %3, %53, %cst_40 {dimension_numbers = #tpu.dot_dimension_numbers<[1], [0], [0], [1], [0, 0, 1, 1], [], []>} : vector<128x32xf32>, vector<32x32xf32>, vector<128x32xf32> -> vector<128x32xf32>
    %c0_41 = arith.constant 0 : index
    %c0_42 = arith.constant 0 : index
    %55 = vector.load %arg16[%c0_41, %c0_42] : memref<1x32xf32, #tpu.memory_space<vmem>>, vector<1x32xf32>
    %56 = vector.broadcast %55 : vector<1x32xf32> to vector<128x32xf32>
    %57 = arith.addf %54, %56 : vector<128x32xf32>
    %58 = vector.shape_cast %32 : vector<128x64xf32> to vector<8x16x64xf32>
    %59 = vector.shape_cast %37 : vector<128x64xf32> to vector<8x16x64xf32>
    %60 = vector.shape_cast %42 : vector<128x32xf32> to vector<8x16x32xf32>
    %61 = vector.shape_cast %47 : vector<128x32xf32> to vector<8x16x32xf32>
    %62 = vector.shape_cast %52 : vector<128x32xf32> to vector<8x16x32xf32>
    %63 = vector.shape_cast %57 : vector<128x32xf32> to vector<8x16x32xf32>
    "tpu.trace_start"() <{level = 10 : i32, message = "twc,tvc->twv"}> : () -> ()
    %cst_43 = arith.constant dense<0.000000e+00> : vector<8x16x16xf32>
    %64 = tpu.matmul %58, %59, %cst_43 {dimension_numbers = #tpu.dot_dimension_numbers<[2], [2], [1], [1], [0, 0, 0, 1, 1, 1], [0], [0]>} : vector<8x16x64xf32>, vector<8x16x64xf32>, vector<8x16x16xf32> -> vector<8x16x16xf32>
    "tpu.trace_stop"() : () -> ()
    %cst_44 = arith.constant 0.144337565 : f32
    %65 = vector.broadcast %cst_44 : f32 to vector<8x16x16xf32>
    %66 = arith.mulf %64, %65 : vector<8x16x16xf32>
    %cst_45 = arith.constant dense<0xFF800000> : vector<8x16xf32>
    %67 = vector.multi_reduction <maximumf>, %66, %cst_45 [2] : vector<8x16x16xf32> to vector<8x16xf32>
    %68 = vector.shape_cast %67 : vector<8x16xf32> to vector<8x16x1xf32>
    %69 = vector.broadcast %68 : vector<8x16x1xf32> to vector<8x16x16xf32>
    %70 = arith.subf %66, %69 : vector<8x16x16xf32>
    %71 = math.exp %70 : vector<8x16x16xf32>
    %cst_46 = arith.constant dense<0.000000e+00> : vector<8x16xf32>
    %72 = vector.multi_reduction <add>, %71, %cst_46 [2] : vector<8x16x16xf32> to vector<8x16xf32>
    %73 = vector.shape_cast %72 : vector<8x16xf32> to vector<8x16x1xf32>
    %74 = vector.broadcast %73 : vector<8x16x1xf32> to vector<8x16x16xf32>
    %75 = arith.divf %71, %74 : vector<8x16x16xf32>
    "tpu.trace_start"() <{level = 10 : i32, message = "twv,tvc->twc"}> : () -> ()
    %cst_47 = arith.constant dense<0.000000e+00> : vector<8x16x32xf32>
    %76 = tpu.matmul %75, %61, %cst_47 {dimension_numbers = #tpu.dot_dimension_numbers<[2], [1], [1], [2], [0, 0, 0, 1, 1, 2], [0], [0]>} : vector<8x16x16xf32>, vector<8x16x32xf32>, vector<8x16x32xf32> -> vector<8x16x32xf32>
    "tpu.trace_stop"() : () -> ()
    %77 = tpu.transpose %66, [0, 2, 1] : vector<8x16x16xf32> -> vector<8x16x16xf32>
    %cst_48 = arith.constant dense<0xFF800000> : vector<8x16xf32>
    %78 = vector.multi_reduction <maximumf>, %77, %cst_48 [2] : vector<8x16x16xf32> to vector<8x16xf32>
    %79 = vector.shape_cast %78 : vector<8x16xf32> to vector<8x16x1xf32>
    %80 = vector.broadcast %79 : vector<8x16x1xf32> to vector<8x16x16xf32>
    %81 = arith.subf %77, %80 : vector<8x16x16xf32>
    %82 = math.exp %81 : vector<8x16x16xf32>
    %cst_49 = arith.constant dense<0.000000e+00> : vector<8x16xf32>
    %83 = vector.multi_reduction <add>, %82, %cst_49 [2] : vector<8x16x16xf32> to vector<8x16xf32>
    %84 = vector.shape_cast %83 : vector<8x16xf32> to vector<8x16x1xf32>
    %85 = vector.broadcast %84 : vector<8x16x1xf32> to vector<8x16x16xf32>
    %86 = arith.divf %82, %85 : vector<8x16x16xf32>
    "tpu.trace_start"() <{level = 10 : i32, message = "tvw,twc->tvc"}> : () -> ()
    %cst_50 = arith.constant dense<0.000000e+00> : vector<8x16x32xf32>
    %87 = tpu.matmul %86, %60, %cst_50 {dimension_numbers = #tpu.dot_dimension_numbers<[2], [1], [1], [2], [0, 0, 0, 1, 1, 2], [0], [0]>} : vector<8x16x16xf32>, vector<8x16x32xf32>, vector<8x16x32xf32> -> vector<8x16x32xf32>
    "tpu.trace_stop"() : () -> ()
    %c0_51 = arith.constant 0 : index
    %c0_52 = arith.constant 0 : index
    %88 = vector.load %arg17[%c0_51, %c0_52] : memref<1x32xf32, #tpu.memory_space<vmem>>, vector<1x32xf32>
    %89 = vector.shape_cast %88 : vector<1x32xf32> to vector<1x1x32xf32>
    %90 = vector.broadcast %89 : vector<1x1x32xf32> to vector<8x16x32xf32>
    %91 = arith.mulf %90, %76 : vector<8x16x32xf32>
    %92 = arith.addf %62, %91 : vector<8x16x32xf32>
    %c0_53 = arith.constant 0 : index
    %c0_54 = arith.constant 0 : index
    %93 = vector.load %arg18[%c0_53, %c0_54] : memref<1x32xf32, #tpu.memory_space<vmem>>, vector<1x32xf32>
    %94 = vector.shape_cast %93 : vector<1x32xf32> to vector<1x1x32xf32>
    %95 = vector.broadcast %94 : vector<1x1x32xf32> to vector<8x16x32xf32>
    %96 = arith.mulf %95, %87 : vector<8x16x32xf32>
    %97 = arith.addf %63, %96 : vector<8x16x32xf32>
    %98 = tpu.concatenate %92, %97 in 2 : vector<8x16x32xf32>, vector<8x16x32xf32> -> vector<8x16x64xf32>
    %c0_55 = arith.constant 0 : index
    %c0_56 = arith.constant 0 : index
    %c0_57 = arith.constant 0 : index
    %99 = vector.load %arg19[%c0_55, %c0_56, %c0_57] : memref<8x16x64xf32, #tpu.memory_space<vmem>>, vector<8x16x64xf32>
    tpu.vector_store %arg19[%c0_55, %c0_56, %c0_57], %98 {strides = array<i32>} : memref<8x16x64xf32, #tpu.memory_space<vmem>>, vector<8x16x64xf32>,
    return
  }
  func.func @transform_0(%arg0: i32) -> (i32, i32, i32) {
    %c0_i32 = arith.constant 0 : i32
    %c0_i32_0 = arith.constant 0 : i32
    %c0_i32_1 = arith.constant 0 : i32
    return %arg0, %c0_i32, %c0_i32_0 : i32, i32, i32
  }
  func.func @transform_1(%arg0: i32) -> (i32, i32, i32) {
    %c0_i32 = arith.constant 0 : i32
    %c0_i32_0 = arith.constant 0 : i32
    %c0_i32_1 = arith.constant 0 : i32
    return %arg0, %c0_i32, %c0_i32_0 : i32, i32, i32
  }
  func.func @transform_2(%arg0: i32) -> (i32, i32) {
    %c0_i32 = arith.constant 0 : i32
    %c0_i32_0 = arith.constant 0 : i32
    %c0_i32_1 = arith.constant 0 : i32
    return %c0_i32, %c0_i32_0 : i32, i32
  }
  func.func @transform_3(%arg0: i32) -> (i32, i32) {
    %c0_i32 = arith.constant 0 : i32
    %c0_i32_0 = arith.constant 0 : i32
    %c0_i32_1 = arith.constant 0 : i32
    return %c0_i32, %c0_i32_0 : i32, i32
  }
  func.func @transform_4(%arg0: i32) -> (i32, i32) {
    %c0_i32 = arith.constant 0 : i32
    %c0_i32_0 = arith.constant 0 : i32
    %c0_i32_1 = arith.constant 0 : i32
    return %c0_i32, %c0_i32_0 : i32, i32
  }
  func.func @transform_5(%arg0: i32) -> (i32, i32) {
    %c0_i32 = arith.constant 0 : i32
    %c0_i32_0 = arith.constant 0 : i32
    %c0_i32_1 = arith.constant 0 : i32
    return %c0_i32, %c0_i32_0 : i32, i32
  }
  func.func @transform_6(%arg0: i32) -> (i32, i32) {
    %c0_i32 = arith.constant 0 : i32
    %c0_i32_0 = arith.constant 0 : i32
    %c0_i32_1 = arith.constant 0 : i32
    return %c0_i32, %c0_i32_0 : i32, i32
  }
  func.func @transform_7(%arg0: i32) -> (i32, i32) {
    %c0_i32 = arith.constant 0 : i32
    %c0_i32_0 = arith.constant 0 : i32
    %c0_i32_1 = arith.constant 0 : i32
    return %c0_i32, %c0_i32_0 : i32, i32
  }
  func.func @transform_8(%arg0: i32) -> (i32, i32) {
    %c0_i32 = arith.constant 0 : i32
    %c0_i32_0 = arith.constant 0 : i32
    %c0_i32_1 = arith.constant 0 : i32
    return %c0_i32, %c0_i32_0 : i32, i32
  }
  func.func @transform_9(%arg0: i32) -> (i32, i32) {
    %c0_i32 = arith.constant 0 : i32
    %c0_i32_0 = arith.constant 0 : i32
    %c0_i32_1 = arith.constant 0 : i32
    return %c0_i32, %c0_i32_0 : i32, i32
  }
  func.func @transform_10(%arg0: i32) -> (i32, i32) {
    %c0_i32 = arith.constant 0 : i32
    %c0_i32_0 = arith.constant 0 : i32
    %c0_i32_1 = arith.constant 0 : i32
    return %c0_i32, %c0_i32_0 : i32, i32
  }
  func.func @transform_11(%arg0: i32) -> (i32, i32) {
    %c0_i32 = arith.constant 0 : i32
    %c0_i32_0 = arith.constant 0 : i32
    %c0_i32_1 = arith.constant 0 : i32
    return %c0_i32, %c0_i32_0 : i32, i32
  }
  func.func @transform_12(%arg0: i32) -> (i32, i32) {
    %c0_i32 = arith.constant 0 : i32
    %c0_i32_0 = arith.constant 0 : i32
    %c0_i32_1 = arith.constant 0 : i32
    return %c0_i32, %c0_i32_0 : i32, i32
  }
  func.func @transform_13(%arg0: i32) -> (i32, i32) {
    %c0_i32 = arith.constant 0 : i32
    %c0_i32_0 = arith.constant 0 : i32
    %c0_i32_1 = arith.constant 0 : i32
    return %c0_i32, %c0_i32_0 : i32, i32
  }
  func.func @transform_14(%arg0: i32) -> (i32, i32) {
    %c0_i32 = arith.constant 0 : i32
    %c0_i32_0 = arith.constant 0 : i32
    %c0_i32_1 = arith.constant 0 : i32
    return %c0_i32, %c0_i32_0 : i32, i32
  }
  func.func @transform_15(%arg0: i32) -> (i32, i32) {
    %c0_i32 = arith.constant 0 : i32
    %c0_i32_0 = arith.constant 0 : i32
    %c0_i32_1 = arith.constant 0 : i32
    return %c0_i32, %c0_i32_0 : i32, i32
  }
  func.func @transform_16(%arg0: i32) -> (i32, i32) {
    %c0_i32 = arith.constant 0 : i32
    %c0_i32_0 = arith.constant 0 : i32
    %c0_i32_1 = arith.constant 0 : i32
    return %c0_i32, %c0_i32_0 : i32, i32
  }
  func.func @transform_17(%arg0: i32) -> (i32, i32) {
    %c0_i32 = arith.constant 0 : i32
    %c0_i32_0 = arith.constant 0 : i32
    %c0_i32_1 = arith.constant 0 : i32
    return %c0_i32, %c0_i32_0 : i32, i32
  }
  func.func @transform_18(%arg0: i32) -> (i32, i32, i32) {
    %c0_i32 = arith.constant 0 : i32
    %c0_i32_0 = arith.constant 0 : i32
    %c0_i32_1 = arith.constant 0 : i32
    return %arg0, %c0_i32, %c0_i32_0 : i32, i32, i32
  }
}

</mosaic_0001>

<llo_original>
// kernel: wasam_forward.1
$region0: #{wasam_forward.1}
  #allocation0 [shape = 'u32[]', space=smem, size = 0x4, offset = 0x4, fixed_abs, tag = 'smem constant byte address 0x4 - core index']
  #allocation1 [shape = 'u32[144,128]{1,0:T(1,128)}', space=vmem, size = 0x12000, scoped, tag = 'internal scratch']
  %s0 = inlined_call_operand.hbm [shape: f32[32,16,64], index: 0, kind: input, shape index: {}]
  %s1 = inlined_call_operand.hbm [shape: f32[32,16,32], index: 1, kind: input, shape index: {}]
  %s2 = inlined_call_operand.vmem [shape: f32[1,64], index: 2, kind: input, shape index: {}]
  %s3 = inlined_call_operand.vmem [shape: f32[1,64], index: 3, kind: input, shape index: {}]
  %s4 = inlined_call_operand.vmem [shape: f32[64,64], index: 4, kind: input, shape index: {}]
  %s5 = inlined_call_operand.vmem [shape: f32[1,64], index: 5, kind: input, shape index: {}]
  %s6 = inlined_call_operand.vmem [shape: f32[32,64], index: 6, kind: input, shape index: {}]
  %s7 = inlined_call_operand.vmem [shape: f32[1,64], index: 7, kind: input, shape index: {}]
  %s8 = inlined_call_operand.vmem [shape: f32[64,32], index: 8, kind: input, shape index: {}]
  %s9 = inlined_call_operand.vmem [shape: f32[1,32], index: 9, kind: input, shape index: {}]
  %s10 = inlined_call_operand.vmem [shape: f32[32,32], index: 10, kind: input, shape index: {}]
  %s11 = inlined_call_operand.vmem [shape: f32[1,32], index: 11, kind: input, shape index: {}]
  %s12 = inlined_call_operand.vmem [shape: f32[64,32], index: 12, kind: input, shape index: {}]
  %s13 = inlined_call_operand.vmem [shape: f32[1,32], index: 13, kind: input, shape index: {}]
  %s14 = inlined_call_operand.vmem [shape: f32[32,32], index: 14, kind: input, shape index: {}]
  %s15 = inlined_call_operand.vmem [shape: f32[1,32], index: 15, kind: input, shape index: {}]
  %s16 = inlined_call_operand.hbm [shape: f32[1,32], index: 16, kind: input, shape index: {}]
  %s17 = inlined_call_operand.vmem [shape: f32[1,32], index: 17, kind: input, shape index: {}]
  %s18 = inlined_call_operand.hbm [shape: f32[32,16,64], index: 18, kind: output, shape index: {}]
  %s19 = sld [smem:[#allocation0]]
  $region117: #{wasam_forward.1} parent=0
    _
  %s21 = ssub.s32 1, %s19
  %s22 = scalar_select 0, %s21, %s19
  $region1: #{wasam_forward.1} parent=0
    #allocation2 [shape = 'u8[131072]{0}', space=vmem, size = 0x20000, scoped, tag = 'input window, operand 0']
    #allocation3 [shape = 's32[2]{0}', space=sflag, size = 0x8, scoped, tag = 'scoped memory for wasam_forward.1']
    #allocation4 [shape = 's32[2]{0}', space=sflag, size = 0x8, scoped, tag = 'scoped memory for wasam_forward.1']
    #allocation5 [shape = 'u8[131072]{0}', space=vmem, size = 0x20000, scoped, tag = 'input window, operand 1']
    #allocation6 [shape = 's32[2]{0}', space=sflag, size = 0x8, scoped, tag = 'scoped memory for wasam_forward.1']
    #allocation7 [shape = 'u8[512]{0}', space=vmem, size = 0x400, scoped, tag = 'input window, operand 16, single buffered']
    #allocation8 [shape = 'u8[131072]{0}', space=vmem, size = 0x20000, scoped, tag = 'output window, operand 0']
    %23 = vsyncpa [#allocation3], 0
    %s24 = scalar_lea.sflag [#allocation3], 1
    %25 = vsyncpa %s24, 0
    %26 = vsyncpa [#allocation6], 0
    %s27 = scalar_lea.sflag [#allocation6], 1
    %28 = vsyncpa %s27, 0
    %29 = vsyncpa [#allocation4], 0
    %s30 = scalar_lea.sflag [#allocation4], 1
    %31 = vsyncpa %s30, 0
    loop: start=0, step=1, limit=6
    $region2: #{wasam_forward.1} parent=1 // loop_pre_header
      _
    $region3: #{wasam_forward.1} parent=1 // loop_header
      %s33 = sphi 0, %s37
      %p34 = scmp.ge.s32.totalorder %s33, 6
      %s43 = sphi 0, %s45
      %s46 = sphi 0, %s43
      %s47 = sphi 0, %s46
      %s63 = sphi 0, %s47
      %s69 = sphi 0, %s71
      %s72 = sphi 0, %s69
      %s73 = sphi 0, %s72
      %s89 = sphi 0, %s73
      %s93 = sphi 0, %s93
      %s95 = sphi 0, %s93
      %s96 = sphi 0, %s95
      %s110 = sphi 0, %s96
      %s114 = sphi 0, %s114
      %s116 = sphi 0, %s114
      %s117 = sphi 0, %s116
      %s131 = sphi 0, %s117
      %s135 = sphi 0, %s135
      %s137 = sphi 0, %s135
      %s138 = sphi 0, %s137
      %s152 = sphi 0, %s138
      %s156 = sphi 0, %s156
      %s158 = sphi 0, %s156
      %s159 = sphi 0, %s158
      %s173 = sphi 0, %s159
      %s177 = sphi 0, %s177
      %s179 = sphi 0, %s177
      %s180 = sphi 0, %s179
      %s194 = sphi 0, %s180
      %s198 = sphi 0, %s198
      %s200 = sphi 0, %s198
      %s201 = sphi 0, %s200
      %s215 = sphi 0, %s201
      %s219 = sphi 0, %s219
      %s221 = sphi 0, %s219
      %s222 = sphi 0, %s221
      %s236 = sphi 0, %s222
      %s240 = sphi 0, %s240
      %s242 = sphi 0, %s240
      %s243 = sphi 0, %s242
      %s257 = sphi 0, %s243
      %s261 = sphi 0, %s261
      %s263 = sphi 0, %s261
      %s264 = sphi 0, %s263
      %s278 = sphi 0, %s264
      %s282 = sphi 0, %s282
      %s284 = sphi 0, %s282
      %s285 = sphi 0, %s284
      %s299 = sphi 0, %s285
      %s303 = sphi 0, %s303
      %s305 = sphi 0, %s303
      %s306 = sphi 0, %s305
      %s320 = sphi 0, %s306
      %s324 = sphi 0, %s324
      %s326 = sphi 0, %s324
      %s327 = sphi 0, %s326
      %s341 = sphi 0, %s327
      %s345 = sphi 0, %s345
      %s347 = sphi 0, %s345
      %s348 = sphi 0, %s347
      %s362 = sphi 0, %s348
      %s366 = sphi 0, %s366
      %s368 = sphi 0, %s366
      %s369 = sphi 0, %s368
      %s383 = sphi 0, %s369
      %s387 = sphi 0, %s387
      %s389 = sphi 0, %s387
      %s390 = sphi 0, %s389
      %s404 = sphi 0, %s390
      %s408 = sphi 0, %s408
      %s410 = sphi 0, %s408
      %s411 = sphi 0, %s410
      %s425 = sphi 0, %s411
      %s431 = sphi 0, %s433
      %s434 = sphi 0, %s431
      %s435 = sphi 0, %s434
      %s451 = sphi 0, %s435
    $region4: #{wasam_forward.1} parent=1 // loop_header_branch
      %36 = sbr.rel (%p34) target = $region8
    $region5: #{wasam_forward.1} parent=1 // loop_body
      %s38 = ssub.s32 %s33, 1
      %s39 = ssub.s32 %s33, 2
      %s40 = sadd.s32 %s33, 1
      %s41 = ssub.s32 %s33, %s40
      %p42 = scmp.eq.s32.totalorder %s41, 0
      %s44 = sadd.s32 %s43, 1
      %s45 = scalar_select %p42, %s43, %s44
      %p48 = pneg %p42
      %p49 = scmp.eq.s32.totalorder %s33, 3
      %p50 = por %p48, %p49
      %p51 = scmp.ne.s32.totalorder %s43, %s46
      %p52 = scmp.eq.s32.totalorder %s33, 0
      %p53 = por %p51, %p52
      %p54 = scmp.ne.s32.totalorder %s43, %s46
      %p55 = scmp.eq.s32.totalorder %s38, 3
      %p56 = por %p54, %p55
      %p57 = scmp.ne.s32.totalorder %s46, %s47
      %p58 = scmp.eq.s32.totalorder %s38, 0
      %p59 = por %p57, %p58
      %p60 = scmp.ne.s32.totalorder %s46, %s47
      %p61 = scmp.eq.s32.totalorder %s39, 3
      %p62 = por %p60, %p61
      %p64 = scmp.ne.s32.totalorder %s47, %s63
      %p65 = scmp.eq.s32.totalorder %s39, 0
      %p66 = por %p64, %p65
      %s67 = ssub.s32 %s33, %s40
      %p68 = scmp.eq.s32.totalorder %s67, 0
      %s70 = sadd.s32 %s69, 1
      %s71 = scalar_select %p68, %s69, %s70
      %p74 = pneg %p68
      %p75 = scmp.eq.s32.totalorder %s33, 3
      %p76 = por %p74, %p75
      %p77 = scmp.ne.s32.totalorder %s69, %s72
      %p78 = scmp.eq.s32.totalorder %s33, 0
      %p79 = por %p77, %p78
      %p80 = scmp.ne.s32.totalorder %s69, %s72
      %p81 = scmp.eq.s32.totalorder %s38, 3
      %p82 = por %p80, %p81
      %p83 = scmp.ne.s32.totalorder %s72, %s73
      %p84 = scmp.eq.s32.totalorder %s38, 0
      %p85 = por %p83, %p84
      %p86 = scmp.ne.s32.totalorder %s72, %s73
      %p87 = scmp.eq.s32.totalorder %s39, 3
      %p88 = por %p86, %p87
      %p90 = scmp.ne.s32.totalorder %s73, %s89
      %p91 = scmp.eq.s32.totalorder %s39, 0
      %p92 = por %p90, %p91
      %s94 = sadd.s32 %s93, 1
      %p97 = scmp.eq.s32.totalorder %s33, 3
      %p98 = scmp.ne.s32.totalorder %s93, %s95
      %p99 = scmp.eq.s32.totalorder %s33, 0
      %p100 = por %p98, %p99
      %p101 = scmp.ne.s32.totalorder %s93, %s95
      %p102 = scmp.eq.s32.totalorder %s38, 3
      %p103 = por %p101, %p102
      %p104 = scmp.ne.s32.totalorder %s95, %s96
      %p105 = scmp.eq.s32.totalorder %s38, 0
      %p106 = por %p104, %p105
      %p107 = scmp.ne.s32.totalorder %s95, %s96
      %p108 = scmp.eq.s32.totalorder %s39, 3
      %p109 = por %p107, %p108
      %p111 = scmp.ne.s32.totalorder %s96, %s110
      %p112 = scmp.eq.s32.totalorder %s39, 0
      %p113 = por %p111, %p112
      %s115 = sadd.s32 %s114, 1
      %p118 = scmp.eq.s32.totalorder %s33, 3
      %p119 = scmp.ne.s32.totalorder %s114, %s116
      %p120 = scmp.eq.s32.totalorder %s33, 0
      %p121 = por %p119, %p120
      %p122 = scmp.ne.s32.totalorder %s114, %s116
      %p123 = scmp.eq.s32.totalorder %s38, 3
      %p124 = por %p122, %p123
      %p125 = scmp.ne.s32.totalorder %s116, %s117
      %p126 = scmp.eq.s32.totalorder %s38, 0
      %p127 = por %p125, %p126
      %p128 = scmp.ne.s32.totalorder %s116, %s117
      %p129 = scmp.eq.s32.totalorder %s39, 3
      %p130 = por %p128, %p129
      %p132 = scmp.ne.s32.totalorder %s117, %s131
      %p133 = scmp.eq.s32.totalorder %s39, 0
      %p134 = por %p132, %p133
      %s136 = sadd.s32 %s135, 1
      %p139 = scmp.eq.s32.totalorder %s33, 3
      %p140 = scmp.ne.s32.totalorder %s135, %s137
      %p141 = scmp.eq.s32.totalorder %s33, 0
      %p142 = por %p140, %p141
      %p143 = scmp.ne.s32.totalorder %s135, %s137
      %p144 = scmp.eq.s32.totalorder %s38, 3
      %p145 = por %p143, %p144
      %p146 = scmp.ne.s32.totalorder %s137, %s138
      %p147 = scmp.eq.s32.totalorder %s38, 0
      %p148 = por %p146, %p147
      %p149 = scmp.ne.s32.totalorder %s137, %s138
      %p150 = scmp.eq.s32.totalorder %s39, 3
      %p151 = por %p149, %p150
      %p153 = scmp.ne.s32.totalorder %s138, %s152
      %p154 = scmp.eq.s32.totalorder %s39, 0
      %p155 = por %p153, %p154
      %s157 = sadd.s32 %s156, 1
      %p160 = scmp.eq.s32.totalorder %s33, 3
      %p161 = scmp.ne.s32.totalorder %s156, %s158
      %p162 = scmp.eq.s32.totalorder %s33, 0
      %p163 = por %p161, %p162
      %p164 = scmp.ne.s32.totalorder %s156, %s158
      %p165 = scmp.eq.s32.totalorder %s38, 3
      %p166 = por %p164, %p165
      %p167 = scmp.ne.s32.totalorder %s158, %s159
      %p168 = scmp.eq.s32.totalorder %s38, 0
      %p169 = por %p167, %p168
      %p170 = scmp.ne.s32.totalorder %s158, %s159
      %p171 = scmp.eq.s32.totalorder %s39, 3
      %p172 = por %p170, %p171
      %p174 = scmp.ne.s32.totalorder %s159, %s173
      %p175 = scmp.eq.s32.totalorder %s39, 0
      %p176 = por %p174, %p175
      %s178 = sadd.s32 %s177, 1
      %p181 = scmp.eq.s32.totalorder %s33, 3
      %p182 = scmp.ne.s32.totalorder %s177, %s179
      %p183 = scmp.eq.s32.totalorder %s33, 0
      %p184 = por %p182, %p183
      %p185 = scmp.ne.s32.totalorder %s177, %s179
      %p186 = scmp.eq.s32.totalorder %s38, 3
      %p187 = por %p185, %p186
      %p188 = scmp.ne.s32.totalorder %s179, %s180
      %p189 = scmp.eq.s32.totalorder %s38, 0
      %p190 = por %p188, %p189
      %p191 = scmp.ne.s32.totalorder %s179, %s180
      %p192 = scmp.eq.s32.totalorder %s39, 3
      %p193 = por %p191, %p192
      %p195 = scmp.ne.s32.totalorder %s180, %s194
      %p196 = scmp.eq.s32.totalorder %s39, 0
      %p197 = por %p195, %p196
      %s199 = sadd.s32 %s198, 1
      %p202 = scmp.eq.s32.totalorder %s33, 3
      %p203 = scmp.ne.s32.totalorder %s198, %s200
      %p204 = scmp.eq.s32.totalorder %s33, 0
      %p205 = por %p203, %p204
      %p206 = scmp.ne.s32.totalorder %s198, %s200
      %p207 = scmp.eq.s32.totalorder %s38, 3
      %p208 = por %p206, %p207
      %p209 = scmp.ne.s32.totalorder %s200, %s201
      %p210 = scmp.eq.s32.totalorder %s38, 0
      %p211 = por %p209, %p210
      %p212 = scmp.ne.s32.totalorder %s200, %s201
      %p213 = scmp.eq.s32.totalorder %s39, 3
      %p214 = por %p212, %p213
      %p216 = scmp.ne.s32.totalorder %s201, %s215
      %p217 = scmp.eq.s32.totalorder %s39, 0
      %p218 = por %p216, %p217
      %s220 = sadd.s32 %s219, 1
      %p223 = scmp.eq.s32.totalorder %s33, 3
      %p224 = scmp.ne.s32.totalorder %s219, %s221
      %p225 = scmp.eq.s32.totalorder %s33, 0
      %p226 = por %p224, %p225
      %p227 = scmp.ne.s32.totalorder %s219, %s221
      %p228 = scmp.eq.s32.totalorder %s38, 3
      %p229 = por %p227, %p228
      %p230 = scmp.ne.s32.totalorder %s221, %s222
      %p231 = scmp.eq.s32.totalorder %s38, 0
      %p232 = por %p230, %p231
      %p233 = scmp.ne.s32.totalorder %s221, %s222
      %p234 = scmp.eq.s32.totalorder %s39, 3
      %p235 = por %p233, %p234
      %p237 = scmp.ne.s32.totalorder %s222, %s236
      %p238 = scmp.eq.s32.totalorder %s39, 0
      %p239 = por %p237, %p238
      %s241 = sadd.s32 %s240, 1
      %p244 = scmp.eq.s32.totalorder %s33, 3
      %p245 = scmp.ne.s32.totalorder %s240, %s242
      %p246 = scmp.eq.s32.totalorder %s33, 0
      %p247 = por %p245, %p246
      %p248 = scmp.ne.s32.totalorder %s240, %s242
      %p249 = scmp.eq.s32.totalorder %s38, 3
      %p250 = por %p248, %p249
      %p251 = scmp.ne.s32.totalorder %s242, %s243
      %p252 = scmp.eq.s32.totalorder %s38, 0
      %p253 = por %p251, %p252
      %p254 = scmp.ne.s32.totalorder %s242, %s243
      %p255 = scmp.eq.s32.totalorder %s39, 3
      %p256 = por %p254, %p255
      %p258 = scmp.ne.s32.totalorder %s243, %s257
      %p259 = scmp.eq.s32.totalorder %s39, 0
      %p260 = por %p258, %p259
      %s262 = sadd.s32 %s261, 1
      %p265 = scmp.eq.s32.totalorder %s33, 3
      %p266 = scmp.ne.s32.totalorder %s261, %s263
      %p267 = scmp.eq.s32.totalorder %s33, 0
      %p268 = por %p266, %p267
      %p269 = scmp.ne.s32.totalorder %s261, %s263
      %p270 = scmp.eq.s32.totalorder %s38, 3
      %p271 = por %p269, %p270
      %p272 = scmp.ne.s32.totalorder %s263, %s264
      %p273 = scmp.eq.s32.totalorder %s38, 0
      %p274 = por %p272, %p273
      %p275 = scmp.ne.s32.totalorder %s263, %s264
      %p276 = scmp.eq.s32.totalorder %s39, 3
      %p277 = por %p275, %p276
      %p279 = scmp.ne.s32.totalorder %s264, %s278
      %p280 = scmp.eq.s32.totalorder %s39, 0
      %p281 = por %p279, %p280
      %s283 = sadd.s32 %s282, 1
      %p286 = scmp.eq.s32.totalorder %s33, 3
      %p287 = scmp.ne.s32.totalorder %s282, %s284
      %p288 = scmp.eq.s32.totalorder %s33, 0
      %p289 = por %p287, %p288
      %p290 = scmp.ne.s32.totalorder %s282, %s284
      %p291 = scmp.eq.s32.totalorder %s38, 3
      %p292 = por %p290, %p291
      %p293 = scmp.ne.s32.totalorder %s284, %s285
      %p294 = scmp.eq.s32.totalorder %s38, 0
      %p295 = por %p293, %p294
      %p296 = scmp.ne.s32.totalorder %s284, %s285
      %p297 = scmp.eq.s32.totalorder %s39, 3
      %p298 = por %p296, %p297
      %p300 = scmp.ne.s32.totalorder %s285, %s299
      %p301 = scmp.eq.s32.totalorder %s39, 0
      %p302 = por %p300, %p301
      %s304 = sadd.s32 %s303, 1
      %p307 = scmp.eq.s32.totalorder %s33, 3
      %p308 = scmp.ne.s32.totalorder %s303, %s305
      %p309 = scmp.eq.s32.totalorder %s33, 0
      %p310 = por %p308, %p309
      %p311 = scmp.ne.s32.totalorder %s303, %s305
      %p312 = scmp.eq.s32.totalorder %s38, 3
      %p313 = por %p311, %p312
      %p314 = scmp.ne.s32.totalorder %s305, %s306
      %p315 = scmp.eq.s32.totalorder %s38, 0
      %p316 = por %p314, %p315
      %p317 = scmp.ne.s32.totalorder %s305, %s306
      %p318 = scmp.eq.s32.totalorder %s39, 3
      %p319 = por %p317, %p318
      %p321 = scmp.ne.s32.totalorder %s306, %s320
      %p322 = scmp.eq.s32.totalorder %s39, 0
      %p323 = por %p321, %p322
      %s325 = sadd.s32 %s324, 1
      %p328 = scmp.eq.s32.totalorder %s33, 3
      %p329 = scmp.ne.s32.totalorder %s324, %s326
      %p330 = scmp.eq.s32.totalorder %s33, 0
      %p331 = por %p329, %p330
      %p332 = scmp.ne.s32.totalorder %s324, %s326
      %p333 = scmp.eq.s32.totalorder %s38, 3
      %p334 = por %p332, %p333
      %p335 = scmp.ne.s32.totalorder %s326, %s327
      %p336 = scmp.eq.s32.totalorder %s38, 0
      %p337 = por %p335, %p336
      %p338 = scmp.ne.s32.totalorder %s326, %s327
      %p339 = scmp.eq.s32.totalorder %s39, 3
      %p340 = por %p338, %p339
      %p342 = scmp.ne.s32.totalorder %s327, %s341
      %p343 = scmp.eq.s32.totalorder %s39, 0
      %p344 = por %p342, %p343
      %s346 = sadd.s32 %s345, 1
      %p349 = scmp.eq.s32.totalorder %s33, 3
      %p350 = scmp.ne.s32.totalorder %s345, %s347
      %p351 = scmp.eq.s32.totalorder %s33, 0
      %p352 = por %p350, %p351
      %p353 = scmp.ne.s32.totalorder %s345, %s347
      %p354 = scmp.eq.s32.totalorder %s38, 3
      %p355 = por %p353, %p354
      %p356 = scmp.ne.s32.totalorder %s347, %s348
      %p357 = scmp.eq.s32.totalorder %s38, 0
      %p358 = por %p356, %p357
      %p359 = scmp.ne.s32.totalorder %s347, %s348
      %p360 = scmp.eq.s32.totalorder %s39, 3
      %p361 = por %p359, %p360
      %p363 = scmp.ne.s32.totalorder %s348, %s362
      %p364 = scmp.eq.s32.totalorder %s39, 0
      %p365 = por %p363, %p364
      %s367 = sadd.s32 %s366, 1
      %p370 = scmp.eq.s32.totalorder %s33, 3
      %p371 = scmp.ne.s32.totalorder %s366, %s368
      %p372 = scmp.eq.s32.totalorder %s33, 0
      %p373 = por %p371, %p372
      %p374 = scmp.ne.s32.totalorder %s366, %s368
      %p375 = scmp.eq.s32.totalorder %s38, 3
      %p376 = por %p374, %p375
      %p377 = scmp.ne.s32.totalorder %s368, %s369
      %p378 = scmp.eq.s32.totalorder %s38, 0
      %p379 = por %p377, %p378
      %p380 = scmp.ne.s32.totalorder %s368, %s369
      %p381 = scmp.eq.s32.totalorder %s39, 3
      %p382 = por %p380, %p381
      %p384 = scmp.ne.s32.totalorder %s369, %s383
      %p385 = scmp.eq.s32.totalorder %s39, 0
      %p386 = por %p384, %p385
      %s388 = sadd.s32 %s387, 1
      %p391 = scmp.eq.s32.totalorder %s33, 3
      %p392 = scmp.ne.s32.totalorder %s387, %s389
      %p393 = scmp.eq.s32.totalorder %s33, 0
      %p394 = por %p392, %p393
      %p395 = scmp.ne.s32.totalorder %s387, %s389
      %p396 = scmp.eq.s32.totalorder %s38, 3
      %p397 = por %p395, %p396
      %p398 = scmp.ne.s32.totalorder %s389, %s390
      %p399 = scmp.eq.s32.totalorder %s38, 0
      %p400 = por %p398, %p399
      %p401 = scmp.ne.s32.totalorder %s389, %s390
      %p402 = scmp.eq.s32.totalorder %s39, 3
      %p403 = por %p401, %p402
      %p405 = scmp.ne.s32.totalorder %s390, %s404
      %p406 = scmp.eq.s32.totalorder %s39, 0
      %p407 = por %p405, %p406
      %s409 = sadd.s32 %s408, 1
      %p412 = scmp.eq.s32.totalorder %s33, 3
      %p413 = scmp.ne.s32.totalorder %s408, %s410
      %p414 = scmp.eq.s32.totalorder %s33, 0
      %p415 = por %p413, %p414
      %p416 = scmp.ne.s32.totalorder %s408, %s410
      %p417 = scmp.eq.s32.totalorder %s38, 3
      %p418 = por %p416, %p417
      %p419 = scmp.ne.s32.totalorder %s410, %s411
      %p420 = scmp.eq.s32.totalorder %s38, 0
      %p421 = por %p419, %p420
      %p422 = scmp.ne.s32.totalorder %s410, %s411
      %p423 = scmp.eq.s32.totalorder %s39, 3
      %p424 = por %p422, %p423
      %p426 = scmp.ne.s32.totalorder %s411, %s425
      %p427 = scmp.eq.s32.totalorder %s39, 0
      %p428 = por %p426, %p427
      %s429 = ssub.s32 %s33, %s40
      %p430 = scmp.eq.s32.totalorder %s429, 0
      %s432 = sadd.s32 %s431, 1
      %s433 = scalar_select %p430, %s431, %s432
      %p436 = pneg %p430
      %p437 = scmp.eq.s32.totalorder %s33, 3
      %p438 = por %p436, %p437
      %p439 = scmp.ne.s32.totalorder %s431, %s434
      %p440 = scmp.eq.s32.totalorder %s33, 0
      %p441 = por %p439, %p440
      %p442 = scmp.ne.s32.totalorder %s431, %s434
      %p443 = scmp.eq.s32.totalorder %s38, 3
      %p444 = por %p442, %p443
      %p445 = scmp.ne.s32.totalorder %s434, %s435
      %p446 = scmp.eq.s32.totalorder %s38, 0
      %p447 = por %p445, %p446
      %p448 = scmp.ne.s32.totalorder %s434, %s435
      %p449 = scmp.eq.s32.totalorder %s39, 3
      %p450 = por %p448, %p449
      %p452 = scmp.ne.s32.totalorder %s435, %s451
      %p453 = scmp.eq.s32.totalorder %s39, 0
      %p454 = por %p452, %p453
      %p455 = scmp.le.s32.totalorder 1, %s33
      %p456 = scmp.lt.s32.totalorder %s33, 5
      %p457 = pnand %p455, %p456
      %p458 = pneg %p457
      // Predicated region
      $region9: #{wasam_forward.1} parent=5 // pred_check
        _
      $region10: #{wasam_forward.1} parent=5 // pred_check_branch
        %460 = sbr.rel (%p457) target = $region12
      $region11: #{wasam_forward.1} parent=5 // pred_region
        %s461 = ssub.s32 %s33, 1
        // Predicated region
        $region13: #{wasam_forward.1} parent=11 // pred_check
          %p462 = pneg %p106
        $region14: #{wasam_forward.1} parent=11 // pred_check_branch
          %464 = sbr.rel (%p462) target = $region16
        $region15: #{wasam_forward.1} parent=11 // pred_region
          _
        $region16: #{wasam_forward.1} parent=11 // pred_fallthru
          _
        // Predicated region
        $region17: #{wasam_forward.1} parent=11 // pred_check
          %p465 = pneg %p127
        $region18: #{wasam_forward.1} parent=11 // pred_check_branch
          %467 = sbr.rel (%p465) target = $region20
        $region19: #{wasam_forward.1} parent=11 // pred_region
          _
        $region20: #{wasam_forward.1} parent=11 // pred_fallthru
          _
        // Predicated region
        $region21: #{wasam_forward.1} parent=11 // pred_check
          %p468 = pneg %p148
        $region22: #{wasam_forward.1} parent=11 // pred_check_branch
          %470 = sbr.rel (%p468) target = $region24
        $region23: #{wasam_forward.1} parent=11 // pred_region
          _
        $region24: #{wasam_forward.1} parent=11 // pred_fallthru
          _
        // Predicated region
        $region25: #{wasam_forward.1} parent=11 // pred_check
          %p471 = pneg %p169
        $region26: #{wasam_forward.1} parent=11 // pred_check_branch
          %473 = sbr.rel (%p471) target = $region28
        $region27: #{wasam_forward.1} parent=11 // pred_region
          _
        $region28: #{wasam_forward.1} parent=11 // pred_fallthru
          _
        // Predicated region
        $region29: #{wasam_forward.1} parent=11 // pred_check
          %p474 = pneg %p190
        $region30: #{wasam_forward.1} parent=11 // pred_check_branch
          %476 = sbr.rel (%p474) target = $region32
        $region31: #{wasam_forward.1} parent=11 // pred_region
          _
        $region32: #{wasam_forward.1} parent=11 // pred_fallthru
          _
        // Predicated region
        $region33: #{wasam_forward.1} parent=11 // pred_check
          %p477 = pneg %p211
        $region34: #{wasam_forward.1} parent=11 // pred_check_branch
          %479 = sbr.rel (%p477) target = $region36
        $region35: #{wasam_forward.1} parent=11 // pred_region
          _
        $region36: #{wasam_forward.1} parent=11 // pred_fallthru
          _
        // Predicated region
        $region37: #{wasam_forward.1} parent=11 // pred_check
          %p480 = pneg %p232
        $region38: #{wasam_forward.1} parent=11 // pred_check_branch
          %482 = sbr.rel (%p480) target = $region40
        $region39: #{wasam_forward.1} parent=11 // pred_region
          _
        $region40: #{wasam_forward.1} parent=11 // pred_fallthru
          _
        // Predicated region
        $region41: #{wasam_forward.1} parent=11 // pred_check
          %p483 = pneg %p253
        $region42: #{wasam_forward.1} parent=11 // pred_check_branch
          %485 = sbr.rel (%p483) target = $region44
        $region43: #{wasam_forward.1} parent=11 // pred_region
          _
        $region44: #{wasam_forward.1} parent=11 // pred_fallthru
          _
        // Predicated region
        $region45: #{wasam_forward.1} parent=11 // pred_check
          %p486 = pneg %p274
        $region46: #{wasam_forward.1} parent=11 // pred_check_branch
          %488 = sbr.rel (%p486) target = $region48
        $region47: #{wasam_forward.1} parent=11 // pred_region
          _
        $region48: #{wasam_forward.1} parent=11 // pred_fallthru
          _
        // Predicated region
        $region49: #{wasam_forward.1} parent=11 // pred_check
          %p489 = pneg %p295
        $region50: #{wasam_forward.1} parent=11 // pred_check_branch
          %491 = sbr.rel (%p489) target = $region52
        $region51: #{wasam_forward.1} parent=11 // pred_region
          _
        $region52: #{wasam_forward.1} parent=11 // pred_fallthru
          _
        // Predicated region
        $region53: #{wasam_forward.1} parent=11 // pred_check
          %p492 = pneg %p316
        $region54: #{wasam_forward.1} parent=11 // pred_check_branch
          %494 = sbr.rel (%p492) target = $region56
        $region55: #{wasam_forward.1} parent=11 // pred_region
          _
        $region56: #{wasam_forward.1} parent=11 // pred_fallthru
          _
        // Predicated region
        $region57: #{wasam_forward.1} parent=11 // pred_check
          %p495 = pneg %p337
        $region58: #{wasam_forward.1} parent=11 // pred_check_branch
          %497 = sbr.rel (%p495) target = $region60
        $region59: #{wasam_forward.1} parent=11 // pred_region
          _
        $region60: #{wasam_forward.1} parent=11 // pred_fallthru
          _
        // Predicated region
        $region61: #{wasam_forward.1} parent=11 // pred_check
          %p498 = pneg %p358
        $region62: #{wasam_forward.1} parent=11 // pred_check_branch
          %500 = sbr.rel (%p498) target = $region64
        $region63: #{wasam_forward.1} parent=11 // pred_region
          _
        $region64: #{wasam_forward.1} parent=11 // pred_fallthru
          _
        // Predicated region
        $region65: #{wasam_forward.1} parent=11 // pred_check
          %p501 = pneg %p379
        $region66: #{wasam_forward.1} parent=11 // pred_check_branch
          %503 = sbr.rel (%p501) target = $region68
        $region67: #{wasam_forward.1} parent=11 // pred_region
          _
        $region68: #{wasam_forward.1} parent=11 // pred_fallthru
          _
        // Predicated region
        $region69: #{wasam_forward.1} parent=11 // pred_check
          %p504 = pneg %p400
        $region70: #{wasam_forward.1} parent=11 // pred_check_branch
          %506 = sbr.rel (%p504) target = $region72
        $region71: #{wasam_forward.1} parent=11 // pred_region
          %s508 = ssub.s32 16, 16
          %509 = vsyncadd [#allocation6], %s508
          %s511 = sshll.u32 [#allocation7], 4
          %s512 = int_to_ptr.vmem [resolvable:$true] %s511
          %514 = dma.hbm_to_vmem [thread:$0]  %s16, 16, %s512, [#allocation6]
        $region72: #{wasam_forward.1} parent=11 // pred_fallthru
          _
        // Predicated region
        $region73: #{wasam_forward.1} parent=11 // pred_check
          %p515 = pneg %p421
        $region74: #{wasam_forward.1} parent=11 // pred_check_branch
          %517 = sbr.rel (%p515) target = $region76
        $region75: #{wasam_forward.1} parent=11 // pred_region
          _
        $region76: #{wasam_forward.1} parent=11 // pred_fallthru
          _
      $region12: #{wasam_forward.1} parent=5 // pred_fallthru
        _
      %p518 = scmp.lt.s32.totalorder %s33, 4
      // Predicated region
      $region77: #{wasam_forward.1} parent=5 // pred_check
        %p519 = pneg %p518
      $region78: #{wasam_forward.1} parent=5 // pred_check_branch
        %521 = sbr.rel (%p519) target = $region80
      $region79: #{wasam_forward.1} parent=5 // pred_region
        // Predicated region
        $region81: #{wasam_forward.1} parent=79 // pred_check
          %p522 = pneg %p53
        $region82: #{wasam_forward.1} parent=79 // pred_check_branch
          %524 = sbr.rel (%p522) target = $region84
        $region83: #{wasam_forward.1} parent=79 // pred_region
          %s525 = sand.u32 %s43, 1
          %s526 = scalar_lea.sflag [#allocation3], %s525
          %s527 = sand.u32 %s43, 1
          %s528 = smul.addr %s527, 128
          %s529 = scalar_lea.vmem [#allocation2], %s528
          %s530 = smul.u32 8, %s33
          %s532 = ssub.s32 2048, 2048
          %533 = vsyncadd %s526, %s532
          %s534 = smul.addr %s530, 2
          %s535 = smul.addr %s534, 128
          %s536 = scalar_lea.hbm %s0, %s535
          %s537 = sshll.u32 %s529, 4
          %s538 = int_to_ptr.vmem [resolvable:$true] %s537
          %543 = dma.hbm_to_vmem [thread:$0]  %s536, 2048, %s538, %s526, 128, 128, 8
        $region84: #{wasam_forward.1} parent=79 // pred_fallthru
          _
        // Predicated region
        $region85: #{wasam_forward.1} parent=79 // pred_check
          %p544 = pneg %p79
        $region86: #{wasam_forward.1} parent=79 // pred_check_branch
          %546 = sbr.rel (%p544) target = $region88
        $region87: #{wasam_forward.1} parent=79 // pred_region
          %s547 = sand.u32 %s33, 1
          %s548 = scalar_lea.sflag [#allocation6], %s547
          %s549 = sand.u32 %s69, 1
          %s550 = smul.addr %s549, 128
          %s551 = scalar_lea.vmem [#allocation5], %s550
          %s552 = smul.u32 8, %s33
          %s554 = ssub.s32 2048, 2048
          %555 = vsyncadd %s548, %s554
          %s556 = smul.addr %s552, 2
          %s557 = smul.addr %s556, 128
          %s558 = scalar_lea.hbm %s1, %s557
          %s559 = sshll.u32 %s551, 4
          %s560 = int_to_ptr.vmem [resolvable:$true] %s559
          %565 = dma.hbm_to_vmem [thread:$0]  %s558, 2048, %s560, %s548, 128, 128, 8
        $region88: #{wasam_forward.1} parent=79 // pred_fallthru
          _
      $region80: #{wasam_forward.1} parent=5 // pred_fallthru
        _
      %p566 = scmp.le.s32.totalorder 1, %s33
      %p567 = scmp.lt.s32.totalorder %s33, 5
      %p568 = pnand %p566, %p567
      %p569 = pneg %p568
      // Predicated region
      $region89: #{wasam_forward.1} parent=5 // pred_check
        _
      $region90: #{wasam_forward.1} parent=5 // pred_check_branch
        %571 = sbr.rel (%p568) target = $region92
      $region91: #{wasam_forward.1} parent=5 // pred_region
        %s572 = ssub.s32 %s33, 1
        %s573 = sand.u32 %s46, 1
        %s574 = scalar_lea.sflag [#allocation3], %s573
        %s575 = sand.u32 %s46, 1
        %s576 = smul.addr %s575, 128
        %s577 = scalar_lea.vmem [#allocation2], %s576
        // Predicated region
        $region93: #{wasam_forward.1} parent=91 // pred_check
          %p578 = pneg %p59
        $region94: #{wasam_forward.1} parent=91 // pred_check_branch
          %580 = sbr.rel (%p578) target = $region96
        $region95: #{wasam_forward.1} parent=91 // pred_region
          %581 = dma.done %s574, 2048
        $region96: #{wasam_forward.1} parent=91 // pred_fallthru
          _
        %s582 = sand.u32 %s38, 1
        %s583 = scalar_lea.sflag [#allocation6], %s582
        %s584 = sand.u32 %s72, 1
        %s585 = smul.addr %s584, 128
        %s586 = scalar_lea.vmem [#allocation5], %s585
        // Predicated region
        $region97: #{wasam_forward.1} parent=91 // pred_check
          %p587 = pneg %p85
        $region98: #{wasam_forward.1} parent=91 // pred_check_branch
          %589 = sbr.rel (%p587) target = $region100
        $region99: #{wasam_forward.1} parent=91 // pred_region
          %590 = dma.done %s583, 2048
        $region100: #{wasam_forward.1} parent=91 // pred_fallthru
          _
        // Predicated region
        $region101: #{wasam_forward.1} parent=91 // pred_check
          %p591 = pneg %p400
        $region102: #{wasam_forward.1} parent=91 // pred_check_branch
          %593 = sbr.rel (%p591) target = $region104
        $region103: #{wasam_forward.1} parent=91 // pred_region
          %594 = dma.done [#allocation6], 16
        $region104: #{wasam_forward.1} parent=91 // pred_fallthru
          _
        %s595 = sand.u32 %s46, 1
        %s596 = scalar_lea.sflag [#allocation3], %s595
        %s597 = sand.u32 %s46, 1
        %s598 = smul.addr %s597, 128
        %s599 = scalar_lea.vmem [#allocation2], %s598
        %p600 = pneg %p59
        %p601 = pneg %p56
        %s602 = sand.u32 %s38, 1
        %s603 = scalar_lea.sflag [#allocation6], %s602
        %s604 = sand.u32 %s72, 1
        %s605 = smul.addr %s604, 128
        %s606 = scalar_lea.vmem [#allocation5], %s605
        %p607 = pneg %p85
        %p608 = pneg %p82
        %p609 = pneg %p106
        %p610 = pneg %p103
        %p611 = pneg %p127
        %p612 = pneg %p124
        %p613 = pneg %p148
        %p614 = pneg %p145
        %p615 = pneg %p169
        %p616 = pneg %p166
        %p617 = pneg %p190
        %p618 = pneg %p187
        %p619 = pneg %p211
        %p620 = pneg %p208
        %p621 = pneg %p232
        %p622 = pneg %p229
        %p623 = pneg %p253
        %p624 = pneg %p250
        %p625 = pneg %p274
        %p626 = pneg %p271
        %p627 = pneg %p295
        %p628 = pneg %p292
        %p629 = pneg %p316
        %p630 = pneg %p313
        %p631 = pneg %p337
        %p632 = pneg %p334
        %p633 = pneg %p358
        %p634 = pneg %p355
        %p635 = pneg %p379
        %p636 = pneg %p376
        %p637 = pneg %p400
        %p638 = pneg %p397
        %p639 = pneg %p421
        %p640 = pneg %p418
        %p641 = pneg %p447
        %p642 = pneg %p444
        %s643 = sand.u32 %s434, 1
        %s644 = scalar_lea.sflag [#allocation4], %s643
        %s645 = sand.u32 %s434, 1
        %s646 = smul.addr %s645, 128
        %s647 = scalar_lea.vmem [#allocation8], %s646
        %s648 = smul.u32 8, %s38
        %s649 = smul.u32 8, %s38
        %s650 = smul.u32 8, %s38
        %v651 = vld [vmem:[%s577] sm:$0xff]
        %v652 = vld [vmem:[%s577 + $0x8] sm:$0xff]
        %v653 = vld [vmem:[%s577 + $0x10] sm:$0xff]
        %v654 = vld [vmem:[%s577 + $0x18] sm:$0xff]
        %v655 = vld [vmem:[%s577 + $0x20] sm:$0xff]
        %v656 = vld [vmem:[%s577 + $0x28] sm:$0xff]
        %v657 = vld [vmem:[%s577 + $0x30] sm:$0xff]
        %v658 = vld [vmem:[%s577 + $0x38] sm:$0xff]
        %v659 = vld [vmem:[%s577 + $0x40] sm:$0xff]
        %v660 = vld [vmem:[%s577 + $0x48] sm:$0xff]
        %v661 = vld [vmem:[%s577 + $0x50] sm:$0xff]
        %v662 = vld [vmem:[%s577 + $0x58] sm:$0xff]
        %v663 = vld [vmem:[%s577 + $0x60] sm:$0xff]
        %v664 = vld [vmem:[%s577 + $0x68] sm:$0xff]
        %v665 = vld [vmem:[%s577 + $0x70] sm:$0xff]
        %v666 = vld [vmem:[%s577 + $0x78] sm:$0xff]
        %v667 = vld [vmem:[%s586] sm:$0xff]
        %v668 = vld [vmem:[%s586 + $0x8] sm:$0xff]
        %v669 = vld [vmem:[%s586 + $0x10] sm:$0xff]
        %v670 = vld [vmem:[%s586 + $0x18] sm:$0xff]
        %v671 = vld [vmem:[%s586 + $0x20] sm:$0xff]
        %v672 = vld [vmem:[%s586 + $0x28] sm:$0xff]
        %v673 = vld [vmem:[%s586 + $0x30] sm:$0xff]
        %v674 = vld [vmem:[%s586 + $0x38] sm:$0xff]
        %v675 = vld [vmem:[%s586 + $0x40] sm:$0xff]
        %v676 = vld [vmem:[%s586 + $0x48] sm:$0xff]
        %v677 = vld [vmem:[%s586 + $0x50] sm:$0xff]
        %v678 = vld [vmem:[%s586 + $0x58] sm:$0xff]
        %v679 = vld [vmem:[%s586 + $0x60] sm:$0xff]
        %v680 = vld [vmem:[%s586 + $0x68] sm:$0xff]
        %v681 = vld [vmem:[%s586 + $0x70] sm:$0xff]
        %v682 = vld [vmem:[%s586 + $0x78] sm:$0xff]
        %vm683 = vcmask 523264
        %v684 = vsel %vm683, %v651, 0.0
        %685 = vadd.xlane.f32.xlu0 %v684
        %v686 = vpop.xlane.xlu0 %685
        %v687 = vsel %vm683, %v652, 0.0
        %688 = vadd.xlane.f32.xlu0 %v687
        %v689 = vpop.xlane.xlu0 %688
        %v690 = vsel %vm683, %v653, 0.0
        %691 = vadd.xlane.f32.xlu0 %v690
        %v692 = vpop.xlane.xlu0 %691
        %v693 = vsel %vm683, %v654, 0.0
        %694 = vadd.xlane.f32.xlu0 %v693
        %v695 = vpop.xlane.xlu0 %694
        %v696 = vsel %vm683, %v655, 0.0
        %697 = vadd.xlane.f32.xlu0 %v696
        %v698 = vpop.xlane.xlu0 %697
        %v699 = vsel %vm683, %v656, 0.0
        %700 = vadd.xlane.f32.xlu0 %v699
        %v701 = vpop.xlane.xlu0 %700
        %v702 = vsel %vm683, %v657, 0.0
        %703 = vadd.xlane.f32.xlu0 %v702
        %v704 = vpop.xlane.xlu0 %703
        %v705 = vsel %vm683, %v658, 0.0
        %706 = vadd.xlane.f32.xlu0 %v705
        %v707 = vpop.xlane.xlu0 %706
        %v708 = vsel %vm683, %v659, 0.0
        %709 = vadd.xlane.f32.xlu0 %v708
        %v710 = vpop.xlane.xlu0 %709
        %v711 = vsel %vm683, %v660, 0.0
        %712 = vadd.xlane.f32.xlu0 %v711
        %v713 = vpop.xlane.xlu0 %712
        %v714 = vsel %vm683, %v661, 0.0
        %715 = vadd.xlane.f32.xlu0 %v714
        %v716 = vpop.xlane.xlu0 %715
        %v717 = vsel %vm683, %v662, 0.0
        %718 = vadd.xlane.f32.xlu0 %v717
        %v719 = vpop.xlane.xlu0 %718
        %v720 = vsel %vm683, %v663, 0.0
        %721 = vadd.xlane.f32.xlu0 %v720
        %v722 = vpop.xlane.xlu0 %721
        %v723 = vsel %vm683, %v664, 0.0
        %724 = vadd.xlane.f32.xlu0 %v723
        %v725 = vpop.xlane.xlu0 %724
        %v726 = vsel %vm683, %v665, 0.0
        %727 = vadd.xlane.f32.xlu0 %v726
        %v728 = vpop.xlane.xlu0 %727
        %v729 = vsel %vm683, %v666, 0.0
        %730 = vadd.xlane.f32.xlu0 %v729
        %v731 = vpop.xlane.xlu0 %730
        %v732 = vrcp.pop 64.0
        %v733 = vmul.f32 %v686, %v732
        %v734 = vmul.f32 %v689, %v732
        %v735 = vmul.f32 %v692, %v732
        %v736 = vmul.f32 %v695, %v732
        %v737 = vmul.f32 %v698, %v732
        %v738 = vmul.f32 %v701, %v732
        %v739 = vmul.f32 %v704, %v732
        %v740 = vmul.f32 %v707, %v732
        %v741 = vmul.f32 %v710, %v732
        %v742 = vmul.f32 %v713, %v732
        %v743 = vmul.f32 %v716, %v732
        %v744 = vmul.f32 %v719, %v732
        %v745 = vmul.f32 %v722, %v732
        %v746 = vmul.f32 %v725, %v732
        %v747 = vmul.f32 %v728, %v732
        %v748 = vmul.f32 %v731, %v732
        %v749 = vsub.f32 %v651, %v733
        %v750 = vsub.f32 %v652, %v734
        %v751 = vsub.f32 %v653, %v735
        %v752 = vsub.f32 %v654, %v736
        %v753 = vsub.f32 %v655, %v737
        %v754 = vsub.f32 %v656, %v738
        %v755 = vsub.f32 %v657, %v739
        %v756 = vsub.f32 %v658, %v740
        %v757 = vsub.f32 %v659, %v741
        %v758 = vsub.f32 %v660, %v742
        %v759 = vsub.f32 %v661, %v743
        %v760 = vsub.f32 %v662, %v744
        %v761 = vsub.f32 %v663, %v745
        %v762 = vsub.f32 %v664, %v746
        %v763 = vsub.f32 %v665, %v747
        %v764 = vsub.f32 %v666, %v748
        %v765 = vmul.f32 %v749, %v749
        %v766 = vmul.f32 %v750, %v750
        %v767 = vmul.f32 %v751, %v751
        %v768 = vmul.f32 %v752, %v752
        %v769 = vmul.f32 %v753, %v753
        %v770 = vmul.f32 %v754, %v754
        %v771 = vmul.f32 %v755, %v755
        %v772 = vmul.f32 %v756, %v756
        %v773 = vmul.f32 %v757, %v757
        %v774 = vmul.f32 %v758, %v758
        %v775 = vmul.f32 %v759, %v759
        %v776 = vmul.f32 %v760, %v760
        %v777 = vmul.f32 %v761, %v761
        %v778 = vmul.f32 %v762, %v762
        %v779 = vmul.f32 %v763, %v763
        %v780 = vmul.f32 %v764, %v764
        %v781 = vsel %vm683, %v765, 0.0
        %782 = vadd.xlane.f32.xlu0 %v781
        %v783 = vpop.xlane.xlu0 %782
        %v784 = vsel %vm683, %v766, 0.0
        %785 = vadd.xlane.f32.xlu0 %v784
        %v786 = vpop.xlane.xlu0 %785
        %v787 = vsel %vm683, %v767, 0.0
        %788 = vadd.xlane.f32.xlu0 %v787
        %v789 = vpop.xlane.xlu0 %788
        %v790 = vsel %vm683, %v768, 0.0
        %791 = vadd.xlane.f32.xlu0 %v790
        %v792 = vpop.xlane.xlu0 %791
        %v793 = vsel %vm683, %v769, 0.0
        %794 = vadd.xlane.f32.xlu0 %v793
        %v795 = vpop.xlane.xlu0 %794
        %v796 = vsel %vm683, %v770, 0.0
        %797 = vadd.xlane.f32.xlu0 %v796
        %v798 = vpop.xlane.xlu0 %797
        %v799 = vsel %vm683, %v771, 0.0
        %800 = vadd.xlane.f32.xlu0 %v799
        %v801 = vpop.xlane.xlu0 %800
        %v802 = vsel %vm683, %v772, 0.0
        %803 = vadd.xlane.f32.xlu0 %v802
        %v804 = vpop.xlane.xlu0 %803
        %v805 = vsel %vm683, %v773, 0.0
        %806 = vadd.xlane.f32.xlu0 %v805
        %v807 = vpop.xlane.xlu0 %806
        %v808 = vsel %vm683, %v774, 0.0
        %809 = vadd.xlane.f32.xlu0 %v808
        %v810 = vpop.xlane.xlu0 %809
        %v811 = vsel %vm683, %v775, 0.0
        %812 = vadd.xlane.f32.xlu0 %v811
        %v813 = vpop.xlane.xlu0 %812
        %v814 = vsel %vm683, %v776, 0.0
        %815 = vadd.xlane.f32.xlu0 %v814
        %v816 = vpop.xlane.xlu0 %815
        %v817 = vsel %vm683, %v777, 0.0
        %818 = vadd.xlane.f32.xlu0 %v817
        %v819 = vpop.xlane.xlu0 %818
        %v820 = vsel %vm683, %v778, 0.0
        %821 = vadd.xlane.f32.xlu0 %v820
        %v822 = vpop.xlane.xlu0 %821
        %v823 = vsel %vm683, %v779, 0.0
        %824 = vadd.xlane.f32.xlu0 %v823
        %v825 = vpop.xlane.xlu0 %824
        %v826 = vsel %vm683, %v780, 0.0
        %827 = vadd.xlane.f32.xlu0 %v826
        %v828 = vpop.xlane.xlu0 %827
        %v829 = vmul.f32 %v783, %v732
        %v830 = vmul.f32 %v786, %v732
        %v831 = vmul.f32 %v789, %v732
        %v832 = vmul.f32 %v792, %v732
        %v833 = vmul.f32 %v795, %v732
        %v834 = vmul.f32 %v798, %v732
        %v835 = vmul.f32 %v801, %v732
        %v836 = vmul.f32 %v804, %v732
        %v837 = vmul.f32 %v807, %v732
        %v838 = vmul.f32 %v810, %v732
        %v839 = vmul.f32 %v813, %v732
        %v840 = vmul.f32 %v816, %v732
        %v841 = vmul.f32 %v819, %v732
        %v842 = vmul.f32 %v822, %v732
        %v843 = vmul.f32 %v825, %v732
        %v844 = vmul.f32 %v828, %v732
        %v845 = vadd.f32 %v829, 1e-06
        %v846 = vadd.f32 %v830, 1e-06
        %v847 = vadd.f32 %v831, 1e-06
        %v848 = vadd.f32 %v832, 1e-06
        %v849 = vadd.f32 %v833, 1e-06
        %v850 = vadd.f32 %v834, 1e-06
        %v851 = vadd.f32 %v835, 1e-06
        %v852 = vadd.f32 %v836, 1e-06
        %v853 = vadd.f32 %v837, 1e-06
        %v854 = vadd.f32 %v838, 1e-06
        %v855 = vadd.f32 %v839, 1e-06
        %v856 = vadd.f32 %v840, 1e-06
        %v857 = vadd.f32 %v841, 1e-06
        %v858 = vadd.f32 %v842, 1e-06
        %v859 = vadd.f32 %v843, 1e-06
        %v860 = vadd.f32 %v844, 1e-06
        %v861 = vrsqrt.pop %v845
        %v862 = vrsqrt.pop %v846
        %v863 = vrsqrt.pop %v847
        %v864 = vrsqrt.pop %v848
        %v865 = vrsqrt.pop %v849
        %v866 = vrsqrt.pop %v850
        %v867 = vrsqrt.pop %v851
        %v868 = vrsqrt.pop %v852
        %v869 = vrsqrt.pop %v853
        %v870 = vrsqrt.pop %v854
        %v871 = vrsqrt.pop %v855
        %v872 = vrsqrt.pop %v856
        %v873 = vrsqrt.pop %v857
        %v874 = vrsqrt.pop %v858
        %v875 = vrsqrt.pop %v859
        %v876 = vrsqrt.pop %v860
        %v877 = vmul.f32 %v749, %v861
        %v878 = vmul.f32 %v750, %v862
        %v879 = vmul.f32 %v751, %v863
        %v880 = vmul.f32 %v752, %v864
        %v881 = vmul.f32 %v753, %v865
        %v882 = vmul.f32 %v754, %v866
        %v883 = vmul.f32 %v755, %v867
        %v884 = vmul.f32 %v756, %v868
        %v885 = vmul.f32 %v757, %v869
        %v886 = vmul.f32 %v758, %v870
        %v887 = vmul.f32 %v759, %v871
        %v888 = vmul.f32 %v760, %v872
        %v889 = vmul.f32 %v761, %v873
        %v890 = vmul.f32 %v762, %v874
        %v891 = vmul.f32 %v763, %v875
        %v892 = vmul.f32 %v764, %v876
        %v893 = vld [vmem:[%s2] sm:$0x1]
        %v895 = vlaneseq
        %v896 = vshrl.u32 %v895, 7
        %v897 = vsub.s32 0, %v896
        %v898 = vrot.slane %v893, %v897
        %v900 = vmul.f32 %v877, %v898
        %v901 = vmul.f32 %v878, %v898
        %v902 = vmul.f32 %v879, %v898
        %v903 = vmul.f32 %v880, %v898
        %v904 = vmul.f32 %v881, %v898
        %v905 = vmul.f32 %v882, %v898
        %v906 = vmul.f32 %v883, %v898
        %v907 = vmul.f32 %v884, %v898
        %v908 = vmul.f32 %v885, %v898
        %v909 = vmul.f32 %v886, %v898
        %v910 = vmul.f32 %v887, %v898
        %v911 = vmul.f32 %v888, %v898
        %v912 = vmul.f32 %v889, %v898
        %v913 = vmul.f32 %v890, %v898
        %v914 = vmul.f32 %v891, %v898
        %v915 = vmul.f32 %v892, %v898
        %v916 = vld [vmem:[%s3] sm:$0x1]
        %v918 = vlaneseq
        %v919 = vshrl.u32 %v918, 7
        %v920 = vsub.s32 0, %v919
        %v921 = vrot.slane %v916, %v920
        %v923 = vadd.f32 %v900, %v921
        %v924 = vadd.f32 %v901, %v921
        %v925 = vadd.f32 %v902, %v921
        %v926 = vadd.f32 %v903, %v921
        %v927 = vadd.f32 %v904, %v921
        %v928 = vadd.f32 %v905, %v921
        %v929 = vadd.f32 %v906, %v921
        %v930 = vadd.f32 %v907, %v921
        %v931 = vadd.f32 %v908, %v921
        %v932 = vadd.f32 %v909, %v921
        %v933 = vadd.f32 %v910, %v921
        %v934 = vadd.f32 %v911, %v921
        %v935 = vadd.f32 %v912, %v921
        %v936 = vadd.f32 %v913, %v921
        %v937 = vadd.f32 %v914, %v921
        %v938 = vadd.f32 %v915, %v921
        %v939 = vld [vmem:[%s4] sm:$0xff]
        %v940 = vld [vmem:[%s4 + $0x8] sm:$0xff]
        %v941 = vld [vmem:[%s4 + $0x10] sm:$0xff]
        %v942 = vld [vmem:[%s4 + $0x18] sm:$0xff]
        %v943 = vld [vmem:[%s4 + $0x20] sm:$0xff]
        %v944 = vld [vmem:[%s4 + $0x28] sm:$0xff]
        %v945 = vld [vmem:[%s4 + $0x30] sm:$0xff]
        %v946 = vld [vmem:[%s4 + $0x38] sm:$0xff]
        %v947 = vld [vmem:[%s5] sm:$0x1]
        %v949 = vlaneseq
        %v950 = vshrl.u32 %v949, 7
        %v951 = vsub.s32 0, %v950
        %v952 = vrot.slane %v947, %v951
        %v955 = vsel %vm683, %v923, 0
        %v958 = vsel %vm683, %v924, 0
        %v961 = vsel %vm683, %v925, 0
        %v964 = vsel %vm683, %v926, 0
        %v967 = vsel %vm683, %v927, 0
        %v970 = vsel %vm683, %v928, 0
        %v973 = vsel %vm683, %v929, 0
        %v976 = vsel %vm683, %v930, 0
        %v979 = vsel %vm683, %v931, 0
        %v982 = vsel %vm683, %v932, 0
        %v985 = vsel %vm683, %v933, 0
        %v988 = vsel %vm683, %v934, 0
        %v991 = vsel %vm683, %v935, 0
        %v994 = vsel %vm683, %v936, 0
        %v997 = vsel %vm683, %v937, 0
        %v1000 = vsel %vm683, %v938, 0
        %1002 = vmatprep.subr.mxu0 0.0
        %1003 = vmatpush1.msra.mxu0 %v939
        %1004 = vmatprep.subr.mxu0 0.0
        %1005 = vmatpush1.msra.mxu0 %v940
        %1006 = vmatprep.subr.mxu0 0.0
        %1007 = vmatpush1.msra.mxu0 %v941
        %1008 = vmatprep.subr.mxu0 0.0
        %1009 = vmatpush1.msra.mxu0 %v942
        %1010 = vmatprep.subr.mxu0 0.0
        %1011 = vmatpush1.msra.mxu0 %v943
        %1012 = vmatprep.subr.mxu0 0.0
        %1013 = vmatpush1.msra.mxu0 %v944
        %1014 = vmatprep.subr.mxu0 0.0
        %1015 = vmatpush1.msra.mxu0 %v945
        %1016 = vmatprep.subr.mxu0 0.0
        %1017 = vmatpush1.msra.mxu0 %v946
        %1018 = vmatprep.subr.mxu0 0.0
        %1019 = vmatpush1.msra.mxu0 0.0
        %1020 = vmatprep.subr.mxu0 0.0
        %1021 = vmatpush1.msra.mxu0 0.0
        %1022 = vmatprep.subr.mxu0 0.0
        %1023 = vmatpush1.msra.mxu0 0.0
        %1024 = vmatprep.subr.mxu0 0.0
        %1025 = vmatpush1.msra.mxu0 0.0
        %1026 = vmatprep.subr.mxu0 0.0
        %1027 = vmatpush1.msra.mxu0 0.0
        %1028 = vmatprep.subr.mxu0 0.0
        %1029 = vmatpush1.msra.mxu0 0.0
        %1030 = vmatprep.subr.mxu0 0.0
        %1031 = vmatpush1.msra.mxu0 0.0
        %1032 = vmatprep.subr.mxu0 0.0
        %1033 = vmatpush1.msra.mxu0 0.0
        %1034 = vmatprep.subr.mxu0 0.0
        %1035 = vmatpush1.msra.mxu0 0.0
        %1036 = vmatprep.subr.mxu0 0.0
        %1037 = vmatpush1.msra.mxu0 0.0
        %1038 = vmatprep.subr.mxu0 0.0
        %1039 = vmatpush1.msra.mxu0 0.0
        %1040 = vmatprep.subr.mxu0 0.0
        %1041 = vmatpush1.msra.mxu0 0.0
        %1042 = vmatprep.subr.mxu0 0.0
        %1043 = vmatpush1.msra.mxu0 0.0
        %1044 = vmatprep.subr.mxu0 0.0
        %1045 = vmatpush1.msra.mxu0 0.0
        %1046 = vmatprep.subr.mxu0 0.0
        %1047 = vmatpush1.msra.mxu0 0.0
        %1048 = vmatprep.subr.mxu0 0.0
        %1049 = vmatpush1.msra.mxu0 0.0
        %1050 = vmatprep.subr.mxu0 0.0
        %1051 = vmatpush1.msra.mxu0 0.0
        %1052 = vmatprep.subr.mxu0 0.0
        %1053 = vmatpush1.msra.mxu0 0.0
        %1054 = vmatprep.subr.mxu0 0.0
        %1055 = vmatpush1.msra.mxu0 0.0
        %1056 = vmatprep.subr.mxu0 0.0
        %1057 = vmatpush1.msra.mxu0 0.0
        %1058 = vmatprep.subr.mxu0 0.0
        %1059 = vmatpush1.msra.mxu0 0.0
        %1060 = vmatprep.subr.mxu0 0.0
        %1061 = vmatpush1.msra.mxu0 0.0
        %1062 = vmatprep.subr.mxu0 0.0
        %1063 = vmatpush1.msra.mxu0 0.0
        %1064 = vmatprep.subr.mxu0 0.0
        %1065 = vmatpush1.msra.mxu0 0.0
        %1066 = vmatprep.mubr.f32.mxu0 0.0
        %1067 = vmatmul.mubr.f32.gmra.mrb[0].mxu0 %v955
        %v1068 = vpop.f32.mrb[0].mxu0
        %v1069 = vadd.f32 %v952, %v1068
        %v1070 = vpop.f32.mrb[0].mxu0
        %1071 = vmatprep.mubr.f32.mxu0 0.0
        %1072 = vmatmul.mubr.f32.gmra.mrb[0].mxu0 %v958
        %v1073 = vpop.f32.mrb[0].mxu0
        %v1074 = vadd.f32 %v952, %v1073
        %v1075 = vpop.f32.mrb[0].mxu0
        %1076 = vmatprep.mubr.f32.mxu0 0.0
        %1077 = vmatmul.mubr.f32.gmra.mrb[0].mxu0 %v961
        %v1078 = vpop.f32.mrb[0].mxu0
        %v1079 = vadd.f32 %v952, %v1078
        %v1080 = vpop.f32.mrb[0].mxu0
        %1081 = vmatprep.mubr.f32.mxu0 0.0
        %1082 = vmatmul.mubr.f32.gmra.mrb[0].mxu0 %v964
        %v1083 = vpop.f32.mrb[0].mxu0
        %v1084 = vadd.f32 %v952, %v1083
        %v1085 = vpop.f32.mrb[0].mxu0
        %1086 = vmatprep.mubr.f32.mxu0 0.0
        %1087 = vmatmul.mubr.f32.gmra.mrb[0].mxu0 %v967
        %v1088 = vpop.f32.mrb[0].mxu0
        %v1089 = vadd.f32 %v952, %v1088
        %v1090 = vpop.f32.mrb[0].mxu0
        %1091 = vmatprep.mubr.f32.mxu0 0.0
        %1092 = vmatmul.mubr.f32.gmra.mrb[0].mxu0 %v970
        %v1093 = vpop.f32.mrb[0].mxu0
        %v1094 = vadd.f32 %v952, %v1093
        %v1095 = vpop.f32.mrb[0].mxu0
        %1096 = vmatprep.mubr.f32.mxu0 0.0
        %1097 = vmatmul.mubr.f32.gmra.mrb[0].mxu0 %v973
        %v1098 = vpop.f32.mrb[0].mxu0
        %v1099 = vadd.f32 %v952, %v1098
        %v1100 = vpop.f32.mrb[0].mxu0
        %1101 = vmatprep.mubr.f32.mxu0 0.0
        %1102 = vmatmul.mubr.f32.gmra.mrb[0].mxu0 %v976
        %v1103 = vpop.f32.mrb[0].mxu0
        %v1104 = vadd.f32 %v952, %v1103
        %v1105 = vpop.f32.mrb[0].mxu0
        %1106 = vmatprep.mubr.f32.mxu0 0.0
        %1107 = vmatmul.mubr.f32.gmra.mrb[0].mxu0 %v979
        %v1108 = vpop.f32.mrb[0].mxu0
        %v1109 = vadd.f32 %v952, %v1108
        %v1110 = vpop.f32.mrb[0].mxu0
        %1111 = vmatprep.mubr.f32.mxu0 0.0
        %1112 = vmatmul.mubr.f32.gmra.mrb[0].mxu0 %v982
        %v1113 = vpop.f32.mrb[0].mxu0
        %v1114 = vadd.f32 %v952, %v1113
        %v1115 = vpop.f32.mrb[0].mxu0
        %1116 = vmatprep.mubr.f32.mxu0 0.0
        %1117 = vmatmul.mubr.f32.gmra.mrb[0].mxu0 %v985
        %v1118 = vpop.f32.mrb[0].mxu0
        %v1119 = vadd.f32 %v952, %v1118
        %v1120 = vpop.f32.mrb[0].mxu0
        %1121 = vmatprep.mubr.f32.mxu0 0.0
        %1122 = vmatmul.mubr.f32.gmra.mrb[0].mxu0 %v988
        %v1123 = vpop.f32.mrb[0].mxu0
        %v1124 = vadd.f32 %v952, %v1123
        %v1125 = vpop.f32.mrb[0].mxu0
        %1126 = vmatprep.mubr.f32.mxu0 0.0
        %1127 = vmatmul.mubr.f32.gmra.mrb[0].mxu0 %v991
        %v1128 = vpop.f32.mrb[0].mxu0
        %v1129 = vadd.f32 %v952, %v1128
        %v1130 = vpop.f32.mrb[0].mxu0
        %1131 = vmatprep.mubr.f32.mxu0 0.0
        %1132 = vmatmul.mubr.f32.gmra.mrb[0].mxu0 %v994
        %v1133 = vpop.f32.mrb[0].mxu0
        %v1134 = vadd.f32 %v952, %v1133
        %v1135 = vpop.f32.mrb[0].mxu0
        %1136 = vmatprep.mubr.f32.mxu0 0.0
        %1137 = vmatmul.mubr.f32.gmra.mrb[0].mxu0 %v997
        %v1138 = vpop.f32.mrb[0].mxu0
        %v1139 = vadd.f32 %v952, %v1138
        %v1140 = vpop.f32.mrb[0].mxu0
        %1141 = vmatprep.mubr.f32.mxu0 0.0
        %1142 = vmatmul.mubr.f32.gmra.mrb[0].mxu0 %v1000
        %v1143 = vpop.f32.mrb[0].mxu0
        %v1144 = vadd.f32 %v952, %v1143
        %v1145 = vpop.f32.mrb[0].mxu0
        %1146 = vdwg.mxu0
        %v1147 = vld [vmem:[%s6] sm:$0xff]
        %v1148 = vld [vmem:[%s6 + $0x8] sm:$0xff]
        %v1149 = vld [vmem:[%s6 + $0x10] sm:$0xff]
        %v1150 = vld [vmem:[%s6 + $0x18] sm:$0xff]
        %v1151 = vld [vmem:[%s7] sm:$0x1]
        %v1153 = vlaneseq
        %v1154 = vshrl.u32 %v1153, 7
        %v1155 = vsub.s32 0, %v1154
        %v1156 = vrot.slane %v1151, %v1155
        %vm1158 = vcmask 261120
        %v1160 = vsel %vm1158, %v667, 0
        %v1163 = vsel %vm1158, %v668, 0
        %v1166 = vsel %vm1158, %v669, 0
        %v1169 = vsel %vm1158, %v670, 0
        %v1172 = vsel %vm1158, %v671, 0
        %v1175 = vsel %vm1158, %v672, 0
        %v1178 = vsel %vm1158, %v673, 0
        %v1181 = vsel %vm1158, %v674, 0
        %v1184 = vsel %vm1158, %v675, 0
        %v1187 = vsel %vm1158, %v676, 0
        %v1190 = vsel %vm1158, %v677, 0
        %v1193 = vsel %vm1158, %v678, 0
        %v1196 = vsel %vm1158, %v679, 0
        %v1199 = vsel %vm1158, %v680, 0
        %v1202 = vsel %vm1158, %v681, 0
        %v1205 = vsel %vm1158, %v682, 0
        %1207 = vmatprep.subr.mxu0 0.0
        %1208 = vmatpush1.msra.mxu0 %v1147
        %1209 = vmatprep.subr.mxu0 0.0
        %1210 = vmatpush1.msra.mxu0 %v1148
        %1211 = vmatprep.subr.mxu0 0.0
        %1212 = vmatpush1.msra.mxu0 %v1149
        %1213 = vmatprep.subr.mxu0 0.0
        %1214 = vmatpush1.msra.mxu0 %v1150
        %1215 = vmatprep.subr.mxu0 0.0
        %1216 = vmatpush1.msra.mxu0 0.0
        %1217 = vmatprep.subr.mxu0 0.0
        %1218 = vmatpush1.msra.mxu0 0.0
        %1219 = vmatprep.subr.mxu0 0.0
        %1220 = vmatpush1.msra.mxu0 0.0
        %1221 = vmatprep.subr.mxu0 0.0
        %1222 = vmatpush1.msra.mxu0 0.0
        %1223 = vmatprep.subr.mxu0 0.0
        %1224 = vmatpush1.msra.mxu0 0.0
        %1225 = vmatprep.subr.mxu0 0.0
        %1226 = vmatpush1.msra.mxu0 0.0
        %1227 = vmatprep.subr.mxu0 0.0
        %1228 = vmatpush1.msra.mxu0 0.0
        %1229 = vmatprep.subr.mxu0 0.0
        %1230 = vmatpush1.msra.mxu0 0.0
        %1231 = vmatprep.subr.mxu0 0.0
        %1232 = vmatpush1.msra.mxu0 0.0
        %1233 = vmatprep.subr.mxu0 0.0
        %1234 = vmatpush1.msra.mxu0 0.0
        %1235 = vmatprep.subr.mxu0 0.0
        %1236 = vmatpush1.msra.mxu0 0.0
        %1237 = vmatprep.subr.mxu0 0.0
        %1238 = vmatpush1.msra.mxu0 0.0
        %1239 = vmatprep.subr.mxu0 0.0
        %1240 = vmatpush1.msra.mxu0 0.0
        %1241 = vmatprep.subr.mxu0 0.0
        %1242 = vmatpush1.msra.mxu0 0.0
        %1243 = vmatprep.subr.mxu0 0.0
        %1244 = vmatpush1.msra.mxu0 0.0
        %1245 = vmatprep.subr.mxu0 0.0
        %1246 = vmatpush1.msra.mxu0 0.0
        %1247 = vmatprep.subr.mxu0 0.0
        %1248 = vmatpush1.msra.mxu0 0.0
        %1249 = vmatprep.subr.mxu0 0.0
        %1250 = vmatpush1.msra.mxu0 0.0
        %1251 = vmatprep.subr.mxu0 0.0
        %1252 = vmatpush1.msra.mxu0 0.0
        %1253 = vmatprep.subr.mxu0 0.0
        %1254 = vmatpush1.msra.mxu0 0.0
        %1255 = vmatprep.subr.mxu0 0.0
        %1256 = vmatpush1.msra.mxu0 0.0
        %1257 = vmatprep.subr.mxu0 0.0
        %1258 = vmatpush1.msra.mxu0 0.0
        %1259 = vmatprep.subr.mxu0 0.0
        %1260 = vmatpush1.msra.mxu0 0.0
        %1261 = vmatprep.subr.mxu0 0.0
        %1262 = vmatpush1.msra.mxu0 0.0
        %1263 = vmatprep.subr.mxu0 0.0
        %1264 = vmatpush1.msra.mxu0 0.0
        %1265 = vmatprep.subr.mxu0 0.0
        %1266 = vmatpush1.msra.mxu0 0.0
        %1267 = vmatprep.subr.mxu0 0.0
        %1268 = vmatpush1.msra.mxu0 0.0
        %1269 = vmatprep.subr.mxu0 0.0
        %1270 = vmatpush1.msra.mxu0 0.0
        %1271 = vmatprep.mubr.f32.mxu0 0.0
        %1272 = vmatmul.mubr.f32.gmra.mrb[0].mxu0 %v1160
        %v1273 = vpop.f32.mrb[0].mxu0
        %v1274 = vadd.f32 %v1156, %v1273
        %v1275 = vpop.f32.mrb[0].mxu0
        %1276 = vmatprep.mubr.f32.mxu0 0.0
        %1277 = vmatmul.mubr.f32.gmra.mrb[0].mxu0 %v1163
        %v1278 = vpop.f32.mrb[0].mxu0
        %v1279 = vadd.f32 %v1156, %v1278
        %v1280 = vpop.f32.mrb[0].mxu0
        %1281 = vmatprep.mubr.f32.mxu0 0.0
        %1282 = vmatmul.mubr.f32.gmra.mrb[0].mxu0 %v1166
        %v1283 = vpop.f32.mrb[0].mxu0
        %v1284 = vadd.f32 %v1156, %v1283
        %v1285 = vpop.f32.mrb[0].mxu0
        %1286 = vmatprep.mubr.f32.mxu0 0.0
        %1287 = vmatmul.mubr.f32.gmra.mrb[0].mxu0 %v1169
        %v1288 = vpop.f32.mrb[0].mxu0
        %v1289 = vadd.f32 %v1156, %v1288
        %v1290 = vpop.f32.mrb[0].mxu0
        %1291 = vmatprep.mubr.f32.mxu0 0.0
        %1292 = vmatmul.mubr.f32.gmra.mrb[0].mxu0 %v1172
        %v1293 = vpop.f32.mrb[0].mxu0
        %v1294 = vadd.f32 %v1156, %v1293
        %v1295 = vpop.f32.mrb[0].mxu0
        %1296 = vmatprep.mubr.f32.mxu0 0.0
        %1297 = vmatmul.mubr.f32.gmra.mrb[0].mxu0 %v1175
        %v1298 = vpop.f32.mrb[0].mxu0
        %v1299 = vadd.f32 %v1156, %v1298
        %v1300 = vpop.f32.mrb[0].mxu0
        %1301 = vmatprep.mubr.f32.mxu0 0.0
        %1302 = vmatmul.mubr.f32.gmra.mrb[0].mxu0 %v1178
        %v1303 = vpop.f32.mrb[0].mxu0
        %v1304 = vadd.f32 %v1156, %v1303
        %v1305 = vpop.f32.mrb[0].mxu0
        %1306 = vmatprep.mubr.f32.mxu0 0.0
        %1307 = vmatmul.mubr.f32.gmra.mrb[0].mxu0 %v1181
        %v1308 = vpop.f32.mrb[0].mxu0
        %v1309 = vadd.f32 %v1156, %v1308
        %v1310 = vpop.f32.mrb[0].mxu0
        %1311 = vmatprep.mubr.f32.mxu0 0.0
        %1312 = vmatmul.mubr.f32.gmra.mrb[0].mxu0 %v1184
        %v1313 = vpop.f32.mrb[0].mxu0
        %v1314 = vadd.f32 %v1156, %v1313
        %v1315 = vpop.f32.mrb[0].mxu0
        %1316 = vmatprep.mubr.f32.mxu0 0.0
        %1317 = vmatmul.mubr.f32.gmra.mrb[0].mxu0 %v1187
        %v1318 = vpop.f32.mrb[0].mxu0
        %v1319 = vadd.f32 %v1156, %v1318
        %v1320 = vpop.f32.mrb[0].mxu0
        %1321 = vmatprep.mubr.f32.mxu0 0.0
        %1322 = vmatmul.mubr.f32.gmra.mrb[0].mxu0 %v1190
        %v1323 = vpop.f32.mrb[0].mxu0
        %v1324 = vadd.f32 %v1156, %v1323
        %v1325 = vpop.f32.mrb[0].mxu0
        %1326 = vmatprep.mubr.f32.mxu0 0.0
        %1327 = vmatmul.mubr.f32.gmra.mrb[0].mxu0 %v1193
        %v1328 = vpop.f32.mrb[0].mxu0
        %v1329 = vadd.f32 %v1156, %v1328
        %v1330 = vpop.f32.mrb[0].mxu0
        %1331 = vmatprep.mubr.f32.mxu0 0.0
        %1332 = vmatmul.mubr.f32.gmra.mrb[0].mxu0 %v1196
        %v1333 = vpop.f32.mrb[0].mxu0
        %v1334 = vadd.f32 %v1156, %v1333
        %v1335 = vpop.f32.mrb[0].mxu0
        %1336 = vmatprep.mubr.f32.mxu0 0.0
        %1337 = vmatmul.mubr.f32.gmra.mrb[0].mxu0 %v1199
        %v1338 = vpop.f32.mrb[0].mxu0
        %v1339 = vadd.f32 %v1156, %v1338
        %v1340 = vpop.f32.mrb[0].mxu0
        %1341 = vmatprep.mubr.f32.mxu0 0.0
        %1342 = vmatmul.mubr.f32.gmra.mrb[0].mxu0 %v1202
        %v1343 = vpop.f32.mrb[0].mxu0
        %v1344 = vadd.f32 %v1156, %v1343
        %v1345 = vpop.f32.mrb[0].mxu0
        %1346 = vmatprep.mubr.f32.mxu0 0.0
        %1347 = vmatmul.mubr.f32.gmra.mrb[0].mxu0 %v1205
        %v1348 = vpop.f32.mrb[0].mxu0
        %v1349 = vadd.f32 %v1156, %v1348
        %v1350 = vpop.f32.mrb[0].mxu0
        %1351 = vdwg.mxu0
        %v1352 = vld [vmem:[%s8] sm:$0xff]
        %v1353 = vld [vmem:[%s8 + $0x8] sm:$0xff]
        %v1354 = vld [vmem:[%s8 + $0x10] sm:$0xff]
        %v1355 = vld [vmem:[%s8 + $0x18] sm:$0xff]
        %v1356 = vld [vmem:[%s8 + $0x20] sm:$0xff]
        %v1357 = vld [vmem:[%s8 + $0x28] sm:$0xff]
        %v1358 = vld [vmem:[%s8 + $0x30] sm:$0xff]
        %v1359 = vld [vmem:[%s8 + $0x38] sm:$0xff]
        %v1360 = vld [vmem:[%s9] sm:$0x1]
        %v1362 = vlaneseq
        %v1363 = vshrl.u32 %v1362, 7
        %v1364 = vsub.s32 0, %v1363
        %v1365 = vrot.slane %v1360, %v1364
        %v1368 = vsel %vm683, %v651, 0
        %v1371 = vsel %vm683, %v652, 0
        %v1374 = vsel %vm683, %v653, 0
        %v1377 = vsel %vm683, %v654, 0
        %v1380 = vsel %vm683, %v655, 0
        %v1383 = vsel %vm683, %v656, 0
        %v1386 = vsel %vm683, %v657, 0
        %v1389 = vsel %vm683, %v658, 0
        %v1392 = vsel %vm683, %v659, 0
        %v1395 = vsel %vm683, %v660, 0
        %v1398 = vsel %vm683, %v661, 0
        %v1401 = vsel %vm683, %v662, 0
        %v1404 = vsel %vm683, %v663, 0
        %v1407 = vsel %vm683, %v664, 0
        %v1410 = vsel %vm683, %v665, 0
        %v1413 = vsel %vm683, %v666, 0
        %1415 = vmatprep.subr.mxu0 0.0
        %1416 = vmatpush1.msra.mxu0 %v1352
        %1417 = vmatprep.subr.mxu0 0.0
        %1418 = vmatpush1.msra.mxu0 %v1353
        %1419 = vmatprep.subr.mxu0 0.0
        %1420 = vmatpush1.msra.mxu0 %v1354
        %1421 = vmatprep.subr.mxu0 0.0
        %1422 = vmatpush1.msra.mxu0 %v1355
        %1423 = vmatprep.subr.mxu0 0.0
        %1424 = vmatpush1.msra.mxu0 %v1356
        %1425 = vmatprep.subr.mxu0 0.0
        %1426 = vmatpush1.msra.mxu0 %v1357
        %1427 = vmatprep.subr.mxu0 0.0
        %1428 = vmatpush1.msra.mxu0 %v1358
        %1429 = vmatprep.subr.mxu0 0.0
        %1430 = vmatpush1.msra.mxu0 %v1359
        %1431 = vmatprep.subr.mxu0 0.0
        %1432 = vmatpush1.msra.mxu0 0.0
        %1433 = vmatprep.subr.mxu0 0.0
        %1434 = vmatpush1.msra.mxu0 0.0
        %1435 = vmatprep.subr.mxu0 0.0
        %1436 = vmatpush1.msra.mxu0 0.0
        %1437 = vmatprep.subr.mxu0 0.0
        %1438 = vmatpush1.msra.mxu0 0.0
        %1439 = vmatprep.subr.mxu0 0.0
        %1440 = vmatpush1.msra.mxu0 0.0
        %1441 = vmatprep.subr.mxu0 0.0
        %1442 = vmatpush1.msra.mxu0 0.0
        %1443 = vmatprep.subr.mxu0 0.0
        %1444 = vmatpush1.msra.mxu0 0.0
        %1445 = vmatprep.subr.mxu0 0.0
        %1446 = vmatpush1.msra.mxu0 0.0
        %1447 = vmatprep.subr.mxu0 0.0
        %1448 = vmatpush1.msra.mxu0 0.0
        %1449 = vmatprep.subr.mxu0 0.0
        %1450 = vmatpush1.msra.mxu0 0.0
        %1451 = vmatprep.subr.mxu0 0.0
        %1452 = vmatpush1.msra.mxu0 0.0
        %1453 = vmatprep.subr.mxu0 0.0
        %1454 = vmatpush1.msra.mxu0 0.0
        %1455 = vmatprep.subr.mxu0 0.0
        %1456 = vmatpush1.msra.mxu0 0.0
        %1457 = vmatprep.subr.mxu0 0.0
        %1458 = vmatpush1.msra.mxu0 0.0
        %1459 = vmatprep.subr.mxu0 0.0
        %1460 = vmatpush1.msra.mxu0 0.0
        %1461 = vmatprep.subr.mxu0 0.0
        %1462 = vmatpush1.msra.mxu0 0.0
        %1463 = vmatprep.subr.mxu0 0.0
        %1464 = vmatpush1.msra.mxu0 0.0
        %1465 = vmatprep.subr.mxu0 0.0
        %1466 = vmatpush1.msra.mxu0 0.0
        %1467 = vmatprep.subr.mxu0 0.0
        %1468 = vmatpush1.msra.mxu0 0.0
        %1469 = vmatprep.subr.mxu0 0.0
        %1470 = vmatpush1.msra.mxu0 0.0
        %1471 = vmatprep.subr.mxu0 0.0
        %1472 = vmatpush1.msra.mxu0 0.0
        %1473 = vmatprep.subr.mxu0 0.0
        %1474 = vmatpush1.msra.mxu0 0.0
        %1475 = vmatprep.subr.mxu0 0.0
        %1476 = vmatpush1.msra.mxu0 0.0
        %1477 = vmatprep.subr.mxu0 0.0
        %1478 = vmatpush1.msra.mxu0 0.0
        %1479 = vmatprep.mubr.f32.mxu0 0.0
        %1480 = vmatmul.mubr.f32.gmra.mrb[0].mxu0 %v1368
        %v1481 = vpop.f32.mrb[0].mxu0
        %v1482 = vadd.f32 %v1365, %v1481
        %v1483 = vpop.f32.mrb[0].mxu0
        %1484 = vmatprep.mubr.f32.mxu0 0.0
        %1485 = vmatmul.mubr.f32.gmra.mrb[0].mxu0 %v1371
        %v1486 = vpop.f32.mrb[0].mxu0
        %v1487 = vadd.f32 %v1365, %v1486
        %v1488 = vpop.f32.mrb[0].mxu0
        %1489 = vmatprep.mubr.f32.mxu0 0.0
        %1490 = vmatmul.mubr.f32.gmra.mrb[0].mxu0 %v1374
        %v1491 = vpop.f32.mrb[0].mxu0
        %v1492 = vadd.f32 %v1365, %v1491
        %v1493 = vpop.f32.mrb[0].mxu0
        %1494 = vmatprep.mubr.f32.mxu0 0.0
        %1495 = vmatmul.mubr.f32.gmra.mrb[0].mxu0 %v1377
        %v1496 = vpop.f32.mrb[0].mxu0
        %v1497 = vadd.f32 %v1365, %v1496
        %v1498 = vpop.f32.mrb[0].mxu0
        %1499 = vmatprep.mubr.f32.mxu0 0.0
        %1500 = vmatmul.mubr.f32.gmra.mrb[0].mxu0 %v1380
        %v1501 = vpop.f32.mrb[0].mxu0
        %v1502 = vadd.f32 %v1365, %v1501
        %v1503 = vpop.f32.mrb[0].mxu0
        %1504 = vmatprep.mubr.f32.mxu0 0.0
        %1505 = vmatmul.mubr.f32.gmra.mrb[0].mxu0 %v1383
        %v1506 = vpop.f32.mrb[0].mxu0
        %v1507 = vadd.f32 %v1365, %v1506
        %v1508 = vpop.f32.mrb[0].mxu0
        %1509 = vmatprep.mubr.f32.mxu0 0.0
        %1510 = vmatmul.mubr.f32.gmra.mrb[0].mxu0 %v1386
        %v1511 = vpop.f32.mrb[0].mxu0
        %v1512 = vadd.f32 %v1365, %v1511
        %v1513 = vpop.f32.mrb[0].mxu0
        %1514 = vmatprep.mubr.f32.mxu0 0.0
        %1515 = vmatmul.mubr.f32.gmra.mrb[0].mxu0 %v1389
        %v1516 = vpop.f32.mrb[0].mxu0
        %v1517 = vadd.f32 %v1365, %v1516
        %v1518 = vpop.f32.mrb[0].mxu0
        %1519 = vmatprep.mubr.f32.mxu0 0.0
        %1520 = vmatmul.mubr.f32.gmra.mrb[0].mxu0 %v1392
        %v1521 = vpop.f32.mrb[0].mxu0
        %v1522 = vadd.f32 %v1365, %v1521
        %v1523 = vpop.f32.mrb[0].mxu0
        %1524 = vmatprep.mubr.f32.mxu0 0.0
        %1525 = vmatmul.mubr.f32.gmra.mrb[0].mxu0 %v1395
        %v1526 = vpop.f32.mrb[0].mxu0
        %v1527 = vadd.f32 %v1365, %v1526
        %v1528 = vpop.f32.mrb[0].mxu0
        %1529 = vmatprep.mubr.f32.mxu0 0.0
        %1530 = vmatmul.mubr.f32.gmra.mrb[0].mxu0 %v1398
        %v1531 = vpop.f32.mrb[0].mxu0
        %v1532 = vadd.f32 %v1365, %v1531
        %v1533 = vpop.f32.mrb[0].mxu0
        %1534 = vmatprep.mubr.f32.mxu0 0.0
        %1535 = vmatmul.mubr.f32.gmra.mrb[0].mxu0 %v1401
        %v1536 = vpop.f32.mrb[0].mxu0
        %v1537 = vadd.f32 %v1365, %v1536
        %v1538 = vpop.f32.mrb[0].mxu0
        %1539 = vmatprep.mubr.f32.mxu0 0.0
        %1540 = vmatmul.mubr.f32.gmra.mrb[0].mxu0 %v1404
        %v1541 = vpop.f32.mrb[0].mxu0
        %v1542 = vadd.f32 %v1365, %v1541
        %v1543 = vpop.f32.mrb[0].mxu0
        %1544 = vmatprep.mubr.f32.mxu0 0.0
        %1545 = vmatmul.mubr.f32.gmra.mrb[0].mxu0 %v1407
        %v1546 = vpop.f32.mrb[0].mxu0
        %v1547 = vadd.f32 %v1365, %v1546
        %v1548 = vpop.f32.mrb[0].mxu0
        %1549 = vmatprep.mubr.f32.mxu0 0.0
        %1550 = vmatmul.mubr.f32.gmra.mrb[0].mxu0 %v1410
        %v1551 = vpop.f32.mrb[0].mxu0
        %v1552 = vadd.f32 %v1365, %v1551
        %v1553 = vpop.f32.mrb[0].mxu0
        %1554 = vmatprep.mubr.f32.mxu0 0.0
        %1555 = vmatmul.mubr.f32.gmra.mrb[0].mxu0 %v1413
        %v1556 = vpop.f32.mrb[0].mxu0
        %v1557 = vadd.f32 %v1365, %v1556
        %v1558 = vpop.f32.mrb[0].mxu0
        %1559 = vdwg.mxu0
        %v1560 = vld [vmem:[%s10] sm:$0xff]
        %v1561 = vld [vmem:[%s10 + $0x8] sm:$0xff]
        %v1562 = vld [vmem:[%s10 + $0x10] sm:$0xff]
        %v1563 = vld [vmem:[%s10 + $0x18] sm:$0xff]
        %v1564 = vld [vmem:[%s11] sm:$0x1]
        %v1566 = vlaneseq
        %v1567 = vshrl.u32 %v1566, 7
        %v1568 = vsub.s32 0, %v1567
        %v1569 = vrot.slane %v1564, %v1568
        %1571 = vmatprep.subr.mxu0 0.0
        %1572 = vmatpush1.msra.mxu0 %v1560
        %1573 = vmatprep.subr.mxu0 0.0
        %1574 = vmatpush1.msra.mxu0 %v1561
        %1575 = vmatprep.subr.mxu0 0.0
        %1576 = vmatpush1.msra.mxu0 %v1562
        %1577 = vmatprep.subr.mxu0 0.0
        %1578 = vmatpush1.msra.mxu0 %v1563
        %1579 = vmatprep.subr.mxu0 0.0
        %1580 = vmatpush1.msra.mxu0 0.0
        %1581 = vmatprep.subr.mxu0 0.0
        %1582 = vmatpush1.msra.mxu0 0.0
        %1583 = vmatprep.subr.mxu0 0.0
        %1584 = vmatpush1.msra.mxu0 0.0
        %1585 = vmatprep.subr.mxu0 0.0
        %1586 = vmatpush1.msra.mxu0 0.0
        %1587 = vmatprep.subr.mxu0 0.0
        %1588 = vmatpush1.msra.mxu0 0.0
        %1589 = vmatprep.subr.mxu0 0.0
        %1590 = vmatpush1.msra.mxu0 0.0
        %1591 = vmatprep.subr.mxu0 0.0
        %1592 = vmatpush1.msra.mxu0 0.0
        %1593 = vmatprep.subr.mxu0 0.0
        %1594 = vmatpush1.msra.mxu0 0.0
        %1595 = vmatprep.subr.mxu0 0.0
        %1596 = vmatpush1.msra.mxu0 0.0
        %1597 = vmatprep.subr.mxu0 0.0
        %1598 = vmatpush1.msra.mxu0 0.0
        %1599 = vmatprep.subr.mxu0 0.0
        %1600 = vmatpush1.msra.mxu0 0.0
        %1601 = vmatprep.subr.mxu0 0.0
        %1602 = vmatpush1.msra.mxu0 0.0
        %1603 = vmatprep.subr.mxu0 0.0
        %1604 = vmatpush1.msra.mxu0 0.0
        %1605 = vmatprep.subr.mxu0 0.0
        %1606 = vmatpush1.msra.mxu0 0.0
        %1607 = vmatprep.subr.mxu0 0.0
        %1608 = vmatpush1.msra.mxu0 0.0
        %1609 = vmatprep.subr.mxu0 0.0
        %1610 = vmatpush1.msra.mxu0 0.0
        %1611 = vmatprep.subr.mxu0 0.0
        %1612 = vmatpush1.msra.mxu0 0.0
        %1613 = vmatprep.subr.mxu0 0.0
        %1614 = vmatpush1.msra.mxu0 0.0
        %1615 = vmatprep.subr.mxu0 0.0
        %1616 = vmatpush1.msra.mxu0 0.0
        %1617 = vmatprep.subr.mxu0 0.0
        %1618 = vmatpush1.msra.mxu0 0.0
        %1619 = vmatprep.subr.mxu0 0.0
        %1620 = vmatpush1.msra.mxu0 0.0
        %1621 = vmatprep.subr.mxu0 0.0
        %1622 = vmatpush1.msra.mxu0 0.0
        %1623 = vmatprep.subr.mxu0 0.0
        %1624 = vmatpush1.msra.mxu0 0.0
        %1625 = vmatprep.subr.mxu0 0.0
        %1626 = vmatpush1.msra.mxu0 0.0
        %1627 = vmatprep.subr.mxu0 0.0
        %1628 = vmatpush1.msra.mxu0 0.0
        %1629 = vmatprep.subr.mxu0 0.0
        %1630 = vmatpush1.msra.mxu0 0.0
        %1631 = vmatprep.subr.mxu0 0.0
        %1632 = vmatpush1.msra.mxu0 0.0
        %1633 = vmatprep.subr.mxu0 0.0
        %1634 = vmatpush1.msra.mxu0 0.0
        %1635 = vmatprep.mubr.f32.mxu0 0.0
        %1636 = vmatmul.mubr.f32.gmra.mrb[0].mxu0 %v1160
        %v1637 = vpop.f32.mrb[0].mxu0
        %v1638 = vadd.f32 %v1569, %v1637
        %v1639 = vpop.f32.mrb[0].mxu0
        %1640 = vmatprep.mubr.f32.mxu0 0.0
        %1641 = vmatmul.mubr.f32.gmra.mrb[0].mxu0 %v1163
        %v1642 = vpop.f32.mrb[0].mxu0
        %v1643 = vadd.f32 %v1569, %v1642
        %v1644 = vpop.f32.mrb[0].mxu0
        %1645 = vmatprep.mubr.f32.mxu0 0.0
        %1646 = vmatmul.mubr.f32.gmra.mrb[0].mxu0 %v1166
        %v1647 = vpop.f32.mrb[0].mxu0
        %v1648 = vadd.f32 %v1569, %v1647
        %v1649 = vpop.f32.mrb[0].mxu0
        %1650 = vmatprep.mubr.f32.mxu0 0.0
        %1651 = vmatmul.mubr.f32.gmra.mrb[0].mxu0 %v1169
        %v1652 = vpop.f32.mrb[0].mxu0
        %v1653 = vadd.f32 %v1569, %v1652
        %v1654 = vpop.f32.mrb[0].mxu0
        %1655 = vmatprep.mubr.f32.mxu0 0.0
        %1656 = vmatmul.mubr.f32.gmra.mrb[0].mxu0 %v1172
        %v1657 = vpop.f32.mrb[0].mxu0
        %v1658 = vadd.f32 %v1569, %v1657
        %v1659 = vpop.f32.mrb[0].mxu0
        %1660 = vmatprep.mubr.f32.mxu0 0.0
        %1661 = vmatmul.mubr.f32.gmra.mrb[0].mxu0 %v1175
        %v1662 = vpop.f32.mrb[0].mxu0
        %v1663 = vadd.f32 %v1569, %v1662
        %v1664 = vpop.f32.mrb[0].mxu0
        %1665 = vmatprep.mubr.f32.mxu0 0.0
        %1666 = vmatmul.mubr.f32.gmra.mrb[0].mxu0 %v1178
        %v1667 = vpop.f32.mrb[0].mxu0
        %v1668 = vadd.f32 %v1569, %v1667
        %v1669 = vpop.f32.mrb[0].mxu0
        %1670 = vmatprep.mubr.f32.mxu0 0.0
        %1671 = vmatmul.mubr.f32.gmra.mrb[0].mxu0 %v1181
        %v1672 = vpop.f32.mrb[0].mxu0
        %v1673 = vadd.f32 %v1569, %v1672
        %v1674 = vpop.f32.mrb[0].mxu0
        %1675 = vmatprep.mubr.f32.mxu0 0.0
        %1676 = vmatmul.mubr.f32.gmra.mrb[0].mxu0 %v1184
        %v1677 = vpop.f32.mrb[0].mxu0
        %v1678 = vadd.f32 %v1569, %v1677
        %v1679 = vpop.f32.mrb[0].mxu0
        %1680 = vmatprep.mubr.f32.mxu0 0.0
        %1681 = vmatmul.mubr.f32.gmra.mrb[0].mxu0 %v1187
        %v1682 = vpop.f32.mrb[0].mxu0
        %v1683 = vadd.f32 %v1569, %v1682
        %v1684 = vpop.f32.mrb[0].mxu0
        %1685 = vmatprep.mubr.f32.mxu0 0.0
        %1686 = vmatmul.mubr.f32.gmra.mrb[0].mxu0 %v1190
        %v1687 = vpop.f32.mrb[0].mxu0
        %v1688 = vadd.f32 %v1569, %v1687
        %v1689 = vpop.f32.mrb[0].mxu0
        %1690 = vmatprep.mubr.f32.mxu0 0.0
        %1691 = vmatmul.mubr.f32.gmra.mrb[0].mxu0 %v1193
        %v1692 = vpop.f32.mrb[0].mxu0
        %v1693 = vadd.f32 %v1569, %v1692
        %v1694 = vpop.f32.mrb[0].mxu0
        %1695 = vmatprep.mubr.f32.mxu0 0.0
        %1696 = vmatmul.mubr.f32.gmra.mrb[0].mxu0 %v1196
        %v1697 = vpop.f32.mrb[0].mxu0
        %v1698 = vadd.f32 %v1569, %v1697
        %v1699 = vpop.f32.mrb[0].mxu0
        %1700 = vmatprep.mubr.f32.mxu0 0.0
        %1701 = vmatmul.mubr.f32.gmra.mrb[0].mxu0 %v1199
        %v1702 = vpop.f32.mrb[0].mxu0
        %v1703 = vadd.f32 %v1569, %v1702
        %v1704 = vpop.f32.mrb[0].mxu0
        %1705 = vmatprep.mubr.f32.mxu0 0.0
        %1706 = vmatmul.mubr.f32.gmra.mrb[0].mxu0 %v1202
        %v1707 = vpop.f32.mrb[0].mxu0
        %v1708 = vadd.f32 %v1569, %v1707
        %v1709 = vpop.f32.mrb[0].mxu0
        %1710 = vmatprep.mubr.f32.mxu0 0.0
        %1711 = vmatmul.mubr.f32.gmra.mrb[0].mxu0 %v1205
        %v1712 = vpop.f32.mrb[0].mxu0
        %v1713 = vadd.f32 %v1569, %v1712
        %v1714 = vpop.f32.mrb[0].mxu0
        %1715 = vdwg.mxu0
        %v1716 = vld [vmem:[%s12] sm:$0xff]
        %v1717 = vld [vmem:[%s12 + $0x8] sm:$0xff]
        %v1718 = vld [vmem:[%s12 + $0x10] sm:$0xff]
        %v1719 = vld [vmem:[%s12 + $0x18] sm:$0xff]
        %v1720 = vld [vmem:[%s12 + $0x20] sm:$0xff]
        %v1721 = vld [vmem:[%s12 + $0x28] sm:$0xff]
        %v1722 = vld [vmem:[%s12 + $0x30] sm:$0xff]
        %v1723 = vld [vmem:[%s12 + $0x38] sm:$0xff]
        %v1724 = vld [vmem:[%s13] sm:$0x1]
        %v1726 = vlaneseq
        %v1727 = vshrl.u32 %v1726, 7
        %v1728 = vsub.s32 0, %v1727
        %v1729 = vrot.slane %v1724, %v1728
        %1731 = vmatprep.subr.mxu0 0.0
        %1732 = vmatpush1.msra.mxu0 %v1716
        %1733 = vmatprep.subr.mxu0 0.0
        %1734 = vmatpush1.msra.mxu0 %v1717
        %1735 = vmatprep.subr.mxu0 0.0
        %1736 = vmatpush1.msra.mxu0 %v1718
        %1737 = vmatprep.subr.mxu0 0.0
        %1738 = vmatpush1.msra.mxu0 %v1719
        %1739 = vmatprep.subr.mxu0 0.0
        %1740 = vmatpush1.msra.mxu0 %v1720
        %1741 = vmatprep.subr.mxu0 0.0
        %1742 = vmatpush1.msra.mxu0 %v1721
        %1743 = vmatprep.subr.mxu0 0.0
        %1744 = vmatpush1.msra.mxu0 %v1722
        %1745 = vmatprep.subr.mxu0 0.0
        %1746 = vmatpush1.msra.mxu0 %v1723
        %1747 = vmatprep.subr.mxu0 0.0
        %1748 = vmatpush1.msra.mxu0 0.0
        %1749 = vmatprep.subr.mxu0 0.0
        %1750 = vmatpush1.msra.mxu0 0.0
        %1751 = vmatprep.subr.mxu0 0.0
        %1752 = vmatpush1.msra.mxu0 0.0
        %1753 = vmatprep.subr.mxu0 0.0
        %1754 = vmatpush1.msra.mxu0 0.0
        %1755 = vmatprep.subr.mxu0 0.0
        %1756 = vmatpush1.msra.mxu0 0.0
        %1757 = vmatprep.subr.mxu0 0.0
        %1758 = vmatpush1.msra.mxu0 0.0
        %1759 = vmatprep.subr.mxu0 0.0
        %1760 = vmatpush1.msra.mxu0 0.0
        %1761 = vmatprep.subr.mxu0 0.0
        %1762 = vmatpush1.msra.mxu0 0.0
        %1763 = vmatprep.subr.mxu0 0.0
        %1764 = vmatpush1.msra.mxu0 0.0
        %1765 = vmatprep.subr.mxu0 0.0
        %1766 = vmatpush1.msra.mxu0 0.0
        %1767 = vmatprep.subr.mxu0 0.0
        %1768 = vmatpush1.msra.mxu0 0.0
        %1769 = vmatprep.subr.mxu0 0.0
        %1770 = vmatpush1.msra.mxu0 0.0
        %1771 = vmatprep.subr.mxu0 0.0
        %1772 = vmatpush1.msra.mxu0 0.0
        %1773 = vmatprep.subr.mxu0 0.0
        %1774 = vmatpush1.msra.mxu0 0.0
        %1775 = vmatprep.subr.mxu0 0.0
        %1776 = vmatpush1.msra.mxu0 0.0
        %1777 = vmatprep.subr.mxu0 0.0
        %1778 = vmatpush1.msra.mxu0 0.0
        %1779 = vmatprep.subr.mxu0 0.0
        %1780 = vmatpush1.msra.mxu0 0.0
        %1781 = vmatprep.subr.mxu0 0.0
        %1782 = vmatpush1.msra.mxu0 0.0
        %1783 = vmatprep.subr.mxu0 0.0
        %1784 = vmatpush1.msra.mxu0 0.0
        %1785 = vmatprep.subr.mxu0 0.0
        %1786 = vmatpush1.msra.mxu0 0.0
        %1787 = vmatprep.subr.mxu0 0.0
        %1788 = vmatpush1.msra.mxu0 0.0
        %1789 = vmatprep.subr.mxu0 0.0
        %1790 = vmatpush1.msra.mxu0 0.0
        %1791 = vmatprep.subr.mxu0 0.0
        %1792 = vmatpush1.msra.mxu0 0.0
        %1793 = vmatprep.subr.mxu0 0.0
        %1794 = vmatpush1.msra.mxu0 0.0
        %1795 = vmatprep.mubr.f32.mxu0 0.0
        %1796 = vmatmul.mubr.f32.gmra.mrb[0].mxu0 %v1368
        %v1797 = vpop.f32.mrb[0].mxu0
        %v1798 = vadd.f32 %v1729, %v1797
        %v1799 = vpop.f32.mrb[0].mxu0
        %1800 = vmatprep.mubr.f32.mxu0 0.0
        %1801 = vmatmul.mubr.f32.gmra.mrb[0].mxu0 %v1371
        %v1802 = vpop.f32.mrb[0].mxu0
        %v1803 = vadd.f32 %v1729, %v1802
        %v1804 = vpop.f32.mrb[0].mxu0
        %1805 = vmatprep.mubr.f32.mxu0 0.0
        %1806 = vmatmul.mubr.f32.gmra.mrb[0].mxu0 %v1374
        %v1807 = vpop.f32.mrb[0].mxu0
        %v1808 = vadd.f32 %v1729, %v1807
        %v1809 = vpop.f32.mrb[0].mxu0
        %1810 = vmatprep.mubr.f32.mxu0 0.0
        %1811 = vmatmul.mubr.f32.gmra.mrb[0].mxu0 %v1377
        %v1812 = vpop.f32.mrb[0].mxu0
        %v1813 = vadd.f32 %v1729, %v1812
        %v1814 = vpop.f32.mrb[0].mxu0
        %1815 = vmatprep.mubr.f32.mxu0 0.0
        %1816 = vmatmul.mubr.f32.gmra.mrb[0].mxu0 %v1380
        %v1817 = vpop.f32.mrb[0].mxu0
        %v1818 = vadd.f32 %v1729, %v1817
        %v1819 = vpop.f32.mrb[0].mxu0
        %1820 = vmatprep.mubr.f32.mxu0 0.0
        %1821 = vmatmul.mubr.f32.gmra.mrb[0].mxu0 %v1383
        %v1822 = vpop.f32.mrb[0].mxu0
        %v1823 = vadd.f32 %v1729, %v1822
        %v1824 = vpop.f32.mrb[0].mxu0
        %1825 = vmatprep.mubr.f32.mxu0 0.0
        %1826 = vmatmul.mubr.f32.gmra.mrb[0].mxu0 %v1386
        %v1827 = vpop.f32.mrb[0].mxu0
        %v1828 = vadd.f32 %v1729, %v1827
        %v1829 = vpop.f32.mrb[0].mxu0
        %1830 = vmatprep.mubr.f32.mxu0 0.0
        %1831 = vmatmul.mubr.f32.gmra.mrb[0].mxu0 %v1389
        %v1832 = vpop.f32.mrb[0].mxu0
        %v1833 = vadd.f32 %v1729, %v1832
        %v1834 = vpop.f32.mrb[0].mxu0
        %1835 = vmatprep.mubr.f32.mxu0 0.0
        %1836 = vmatmul.mubr.f32.gmra.mrb[0].mxu0 %v1392
        %v1837 = vpop.f32.mrb[0].mxu0
        %v1838 = vadd.f32 %v1729, %v1837
        %v1839 = vpop.f32.mrb[0].mxu0
        %1840 = vmatprep.mubr.f32.mxu0 0.0
        %1841 = vmatmul.mubr.f32.gmra.mrb[0].mxu0 %v1395
        %v1842 = vpop.f32.mrb[0].mxu0
        %v1843 = vadd.f32 %v1729, %v1842
        %v1844 = vpop.f32.mrb[0].mxu0
        %1845 = vmatprep.mubr.f32.mxu0 0.0
        %1846 = vmatmul.mubr.f32.gmra.mrb[0].mxu0 %v1398
        %v1847 = vpop.f32.mrb[0].mxu0
        %v1848 = vadd.f32 %v1729, %v1847
        %v1849 = vpop.f32.mrb[0].mxu0
        %1850 = vmatprep.mubr.f32.mxu0 0.0
        %1851 = vmatmul.mubr.f32.gmra.mrb[0].mxu0 %v1401
        %v1852 = vpop.f32.mrb[0].mxu0
        %v1853 = vadd.f32 %v1729, %v1852
        %v1854 = vpop.f32.mrb[0].mxu0
        %1855 = vmatprep.mubr.f32.mxu0 0.0
        %1856 = vmatmul.mubr.f32.gmra.mrb[0].mxu0 %v1404
        %v1857 = vpop.f32.mrb[0].mxu0
        %v1858 = vadd.f32 %v1729, %v1857
        %v1859 = vpop.f32.mrb[0].mxu0
        %1860 = vmatprep.mubr.f32.mxu0 0.0
        %1861 = vmatmul.mubr.f32.gmra.mrb[0].mxu0 %v1407
        %v1862 = vpop.f32.mrb[0].mxu0
        %v1863 = vadd.f32 %v1729, %v1862
        %v1864 = vpop.f32.mrb[0].mxu0
        %1865 = vmatprep.mubr.f32.mxu0 0.0
        %1866 = vmatmul.mubr.f32.gmra.mrb[0].mxu0 %v1410
        %v1867 = vpop.f32.mrb[0].mxu0
        %v1868 = vadd.f32 %v1729, %v1867
        %v1869 = vpop.f32.mrb[0].mxu0
        %1870 = vmatprep.mubr.f32.mxu0 0.0
        %1871 = vmatmul.mubr.f32.gmra.mrb[0].mxu0 %v1413
        %v1872 = vpop.f32.mrb[0].mxu0
        %v1873 = vadd.f32 %v1729, %v1872
        %v1874 = vpop.f32.mrb[0].mxu0
        %1875 = vdwg.mxu0
        %v1876 = vld [vmem:[%s14] sm:$0xff]
        %v1877 = vld [vmem:[%s14 + $0x8] sm:$0xff]
        %v1878 = vld [vmem:[%s14 + $0x10] sm:$0xff]
        %v1879 = vld [vmem:[%s14 + $0x18] sm:$0xff]
        %v1880 = vld [vmem:[%s15] sm:$0x1]
        %v1882 = vlaneseq
        %v1883 = vshrl.u32 %v1882, 7
        %v1884 = vsub.s32 0, %v1883
        %v1885 = vrot.slane %v1880, %v1884
        %1887 = vmatprep.subr.mxu0 0.0
        %1888 = vmatpush1.msra.mxu0 %v1876
        %1889 = vmatprep.subr.mxu0 0.0
        %1890 = vmatpush1.msra.mxu0 %v1877
        %1891 = vmatprep.subr.mxu0 0.0
        %1892 = vmatpush1.msra.mxu0 %v1878
        %1893 = vmatprep.subr.mxu0 0.0
        %1894 = vmatpush1.msra.mxu0 %v1879
        %1895 = vmatprep.subr.mxu0 0.0
        %1896 = vmatpush1.msra.mxu0 0.0
        %1897 = vmatprep.subr.mxu0 0.0
        %1898 = vmatpush1.msra.mxu0 0.0
        %1899 = vmatprep.subr.mxu0 0.0
        %1900 = vmatpush1.msra.mxu0 0.0
        %1901 = vmatprep.subr.mxu0 0.0
        %1902 = vmatpush1.msra.mxu0 0.0
        %1903 = vmatprep.subr.mxu0 0.0
        %1904 = vmatpush1.msra.mxu0 0.0
        %1905 = vmatprep.subr.mxu0 0.0
        %1906 = vmatpush1.msra.mxu0 0.0
        %1907 = vmatprep.subr.mxu0 0.0
        %1908 = vmatpush1.msra.mxu0 0.0
        %1909 = vmatprep.subr.mxu0 0.0
        %1910 = vmatpush1.msra.mxu0 0.0
        %1911 = vmatprep.subr.mxu0 0.0
        %1912 = vmatpush1.msra.mxu0 0.0
        %1913 = vmatprep.subr.mxu0 0.0
        %1914 = vmatpush1.msra.mxu0 0.0
        %1915 = vmatprep.subr.mxu0 0.0
        %1916 = vmatpush1.msra.mxu0 0.0
        %1917 = vmatprep.subr.mxu0 0.0
        %1918 = vmatpush1.msra.mxu0 0.0
        %1919 = vmatprep.subr.mxu0 0.0
        %1920 = vmatpush1.msra.mxu0 0.0
        %1921 = vmatprep.subr.mxu0 0.0
        %1922 = vmatpush1.msra.mxu0 0.0
        %1923 = vmatprep.subr.mxu0 0.0
        %1924 = vmatpush1.msra.mxu0 0.0
        %1925 = vmatprep.subr.mxu0 0.0
        %1926 = vmatpush1.msra.mxu0 0.0
        %1927 = vmatprep.subr.mxu0 0.0
        %1928 = vmatpush1.msra.mxu0 0.0
        %1929 = vmatprep.subr.mxu0 0.0
        %1930 = vmatpush1.msra.mxu0 0.0
        %1931 = vmatprep.subr.mxu0 0.0
        %1932 = vmatpush1.msra.mxu0 0.0
        %1933 = vmatprep.subr.mxu0 0.0
        %1934 = vmatpush1.msra.mxu0 0.0
        %1935 = vmatprep.subr.mxu0 0.0
        %1936 = vmatpush1.msra.mxu0 0.0
        %1937 = vmatprep.subr.mxu0 0.0
        %1938 = vmatpush1.msra.mxu0 0.0
        %1939 = vmatprep.subr.mxu0 0.0
        %1940 = vmatpush1.msra.mxu0 0.0
        %1941 = vmatprep.subr.mxu0 0.0
        %1942 = vmatpush1.msra.mxu0 0.0
        %1943 = vmatprep.subr.mxu0 0.0
        %1944 = vmatpush1.msra.mxu0 0.0
        %1945 = vmatprep.subr.mxu0 0.0
        %1946 = vmatpush1.msra.mxu0 0.0
        %1947 = vmatprep.subr.mxu0 0.0
        %1948 = vmatpush1.msra.mxu0 0.0
        %1949 = vmatprep.subr.mxu0 0.0
        %1950 = vmatpush1.msra.mxu0 0.0
        %1951 = vmatprep.mubr.f32.mxu0 0.0
        %1952 = vmatmul.mubr.f32.gmra.mrb[0].mxu0 %v1160
        %v1953 = vpop.f32.mrb[0].mxu0
        %v1954 = vadd.f32 %v1885, %v1953
        %v1955 = vpop.f32.mrb[0].mxu0
        %1956 = vmatprep.mubr.f32.mxu0 0.0
        %1957 = vmatmul.mubr.f32.gmra.mrb[0].mxu0 %v1163
        %v1958 = vpop.f32.mrb[0].mxu0
        %v1959 = vadd.f32 %v1885, %v1958
        %v1960 = vpop.f32.mrb[0].mxu0
        %1961 = vmatprep.mubr.f32.mxu0 0.0
        %1962 = vmatmul.mubr.f32.gmra.mrb[0].mxu0 %v1166
        %v1963 = vpop.f32.mrb[0].mxu0
        %v1964 = vadd.f32 %v1885, %v1963
        %v1965 = vpop.f32.mrb[0].mxu0
        %1966 = vmatprep.mubr.f32.mxu0 0.0
        %1967 = vmatmul.mubr.f32.gmra.mrb[0].mxu0 %v1169
        %v1968 = vpop.f32.mrb[0].mxu0
        %v1969 = vadd.f32 %v1885, %v1968
        %v1970 = vpop.f32.mrb[0].mxu0
        %1971 = vmatprep.mubr.f32.mxu0 0.0
        %1972 = vmatmul.mubr.f32.gmra.mrb[0].mxu0 %v1172
        %v1973 = vpop.f32.mrb[0].mxu0
        %v1974 = vadd.f32 %v1885, %v1973
        %v1975 = vpop.f32.mrb[0].mxu0
        %1976 = vmatprep.mubr.f32.mxu0 0.0
        %1977 = vmatmul.mubr.f32.gmra.mrb[0].mxu0 %v1175
        %v1978 = vpop.f32.mrb[0].mxu0
        %v1979 = vadd.f32 %v1885, %v1978
        %v1980 = vpop.f32.mrb[0].mxu0
        %1981 = vmatprep.mubr.f32.mxu0 0.0
        %1982 = vmatmul.mubr.f32.gmra.mrb[0].mxu0 %v1178
        %v1983 = vpop.f32.mrb[0].mxu0
        %v1984 = vadd.f32 %v1885, %v1983
        %v1985 = vpop.f32.mrb[0].mxu0
        %1986 = vmatprep.mubr.f32.mxu0 0.0
        %1987 = vmatmul.mubr.f32.gmra.mrb[0].mxu0 %v1181
        %v1988 = vpop.f32.mrb[0].mxu0
        %v1989 = vadd.f32 %v1885, %v1988
        %v1990 = vpop.f32.mrb[0].mxu0
        %1991 = vmatprep.mubr.f32.mxu0 0.0
        %1992 = vmatmul.mubr.f32.gmra.mrb[0].mxu0 %v1184
        %v1993 = vpop.f32.mrb[0].mxu0
        %v1994 = vadd.f32 %v1885, %v1993
        %v1995 = vpop.f32.mrb[0].mxu0
        %1996 = vmatprep.mubr.f32.mxu0 0.0
        %1997 = vmatmul.mubr.f32.gmra.mrb[0].mxu0 %v1187
        %v1998 = vpop.f32.mrb[0].mxu0
        %v1999 = vadd.f32 %v1885, %v1998
        %v2000 = vpop.f32.mrb[0].mxu0
        %2001 = vmatprep.mubr.f32.mxu0 0.0
        %2002 = vmatmul.mubr.f32.gmra.mrb[0].mxu0 %v1190
        %v2003 = vpop.f32.mrb[0].mxu0
        %v2004 = vadd.f32 %v1885, %v2003
        %v2005 = vpop.f32.mrb[0].mxu0
        %2006 = vmatprep.mubr.f32.mxu0 0.0
        %2007 = vmatmul.mubr.f32.gmra.mrb[0].mxu0 %v1193
        %v2008 = vpop.f32.mrb[0].mxu0
        %v2009 = vadd.f32 %v1885, %v2008
        %v2010 = vpop.f32.mrb[0].mxu0
        %2011 = vmatprep.mubr.f32.mxu0 0.0
        %2012 = vmatmul.mubr.f32.gmra.mrb[0].mxu0 %v1196
        %v2013 = vpop.f32.mrb[0].mxu0
        %v2014 = vadd.f32 %v1885, %v2013
        %v2015 = vpop.f32.mrb[0].mxu0
        %2016 = vmatprep.mubr.f32.mxu0 0.0
        %2017 = vmatmul.mubr.f32.gmra.mrb[0].mxu0 %v1199
        %v2018 = vpop.f32.mrb[0].mxu0
        %v2019 = vadd.f32 %v1885, %v2018
        %v2020 = vpop.f32.mrb[0].mxu0
        %2021 = vmatprep.mubr.f32.mxu0 0.0
        %2022 = vmatmul.mubr.f32.gmra.mrb[0].mxu0 %v1202
        %v2023 = vpop.f32.mrb[0].mxu0
        %v2024 = vadd.f32 %v1885, %v2023
        %v2025 = vpop.f32.mrb[0].mxu0
        %2026 = vmatprep.mubr.f32.mxu0 0.0
        %2027 = vmatmul.mubr.f32.gmra.mrb[0].mxu0 %v1205
        %v2028 = vpop.f32.mrb[0].mxu0
        %v2029 = vadd.f32 %v1885, %v2028
        %v2030 = vpop.f32.mrb[0].mxu0
        %2031 = vdwg.mxu0
        %v2033 = vsel %vm683, %v1069, 0
        %v2036 = vsel %vm683, %v1074, 0
        %v2039 = vsel %vm683, %v1274, 0
        %v2042 = vsel %vm683, %v1279, 0
        %2044 = vmatprep.subr.mxu0 0.0
        %2045 = vmatpush1.xpose.msra.mxu0 %v2039
        %2046 = vmatprep.subr.mxu0 0.0
        %2047 = vmatpush1.xpose.msra.mxu0 %v2042
        %2048 = vmatprep.subr.mxu0 0.0
        %2049 = vmatpush1.xpose.msra.mxu0 0.0
        %2050 = vmatprep.subr.mxu0 0.0
        %2051 = vmatpush1.xpose.msra.mxu0 0.0
        %2052 = vmatprep.subr.mxu0 0.0
        %2053 = vmatpush1.xpose.msra.mxu0 0.0
        %2054 = vmatprep.subr.mxu0 0.0
        %2055 = vmatpush1.xpose.msra.mxu0 0.0
        %2056 = vmatprep.subr.mxu0 0.0
        %2057 = vmatpush1.xpose.msra.mxu0 0.0
        %2058 = vmatprep.subr.mxu0 0.0
        %2059 = vmatpush1.xpose.msra.mxu0 0.0
        %2060 = vmatprep.subr.mxu0 0.0
        %2061 = vmatpush1.xpose.msra.mxu0 0.0
        %2062 = vmatprep.subr.mxu0 0.0
        %2063 = vmatpush1.xpose.msra.mxu0 0.0
        %2064 = vmatprep.subr.mxu0 0.0
        %2065 = vmatpush1.xpose.msra.mxu0 0.0
        %2066 = vmatprep.subr.mxu0 0.0
        %2067 = vmatpush1.xpose.msra.mxu0 0.0
        %2068 = vmatprep.subr.mxu0 0.0
        %2069 = vmatpush1.xpose.msra.mxu0 0.0
        %2070 = vmatprep.subr.mxu0 0.0
        %2071 = vmatpush1.xpose.msra.mxu0 0.0
        %2072 = vmatprep.subr.mxu0 0.0
        %2073 = vmatpush1.xpose.msra.mxu0 0.0
        %2074 = vmatprep.subr.mxu0 0.0
        %2075 = vmatpush1.xpose.msra.mxu0 0.0
        %2076 = vmatprep.subr.mxu0 0.0
        %2077 = vmatpush1.xpose.msra.mxu0 0.0
        %2078 = vmatprep.subr.mxu0 0.0
        %2079 = vmatpush1.xpose.msra.mxu0 0.0
        %2080 = vmatprep.subr.mxu0 0.0
        %2081 = vmatpush1.xpose.msra.mxu0 0.0
        %2082 = vmatprep.subr.mxu0 0.0
        %2083 = vmatpush1.xpose.msra.mxu0 0.0
        %2084 = vmatprep.subr.mxu0 0.0
        %2085 = vmatpush1.xpose.msra.mxu0 0.0
        %2086 = vmatprep.subr.mxu0 0.0
        %2087 = vmatpush1.xpose.msra.mxu0 0.0
        %2088 = vmatprep.subr.mxu0 0.0
        %2089 = vmatpush1.xpose.msra.mxu0 0.0
        %2090 = vmatprep.subr.mxu0 0.0
        %2091 = vmatpush1.xpose.msra.mxu0 0.0
        %2092 = vmatprep.subr.mxu0 0.0
        %2093 = vmatpush1.xpose.msra.mxu0 0.0
        %2094 = vmatprep.subr.mxu0 0.0
        %2095 = vmatpush1.xpose.msra.mxu0 0.0
        %2096 = vmatprep.subr.mxu0 0.0
        %2097 = vmatpush1.xpose.msra.mxu0 0.0
        %2098 = vmatprep.subr.mxu0 0.0
        %2099 = vmatpush1.xpose.msra.mxu0 0.0
        %2100 = vmatprep.subr.mxu0 0.0
        %2101 = vmatpush1.xpose.msra.mxu0 0.0
        %2102 = vmatprep.subr.mxu0 0.0
        %2103 = vmatpush1.xpose.msra.mxu0 0.0
        %2104 = vmatprep.subr.mxu0 0.0
        %2105 = vmatpush1.xpose.msra.mxu0 0.0
        %2106 = vmatprep.subr.mxu0 0.0
        %2107 = vmatpush1.xpose.msra.mxu0 0.0
        %2108 = vmatprep.mubr.f32.mxu0 0.0
        %2109 = vmatmul.mubr.f32.gmra.mrb[0].mxu0 %v2033
        %v2110 = vpop.f32.mrb[0].mxu0
        %v2111 = vadd.f32 0.0, %v2110
        %v2112 = vpop.f32.mrb[0].mxu0
        %2113 = vmatprep.mubr.f32.mxu0 0.0
        %2114 = vmatmul.mubr.f32.gmra.mrb[0].mxu0 %v2036
        %v2115 = vpop.f32.mrb[0].mxu0
        %v2116 = vadd.f32 0.0, %v2115
        %v2117 = vpop.f32.mrb[0].mxu0
        %2118 = vdwg.mxu0
        %v2120 = vsel %vm683, %v1079, 0
        %v2123 = vsel %vm683, %v1084, 0
        %v2126 = vsel %vm683, %v1284, 0
        %v2129 = vsel %vm683, %v1289, 0
        %2131 = vmatprep.subr.mxu0 0.0
        %2132 = vmatpush1.xpose.msra.mxu0 %v2126
        %2133 = vmatprep.subr.mxu0 0.0
        %2134 = vmatpush1.xpose.msra.mxu0 %v2129
        %2135 = vmatprep.subr.mxu0 0.0
        %2136 = vmatpush1.xpose.msra.mxu0 0.0
        %2137 = vmatprep.subr.mxu0 0.0
        %2138 = vmatpush1.xpose.msra.mxu0 0.0
        %2139 = vmatprep.subr.mxu0 0.0
        %2140 = vmatpush1.xpose.msra.mxu0 0.0
        %2141 = vmatprep.subr.mxu0 0.0
        %2142 = vmatpush1.xpose.msra.mxu0 0.0
        %2143 = vmatprep.subr.mxu0 0.0
        %2144 = vmatpush1.xpose.msra.mxu0 0.0
        %2145 = vmatprep.subr.mxu0 0.0
        %2146 = vmatpush1.xpose.msra.mxu0 0.0
        %2147 = vmatprep.subr.mxu0 0.0
        %2148 = vmatpush1.xpose.msra.mxu0 0.0
        %2149 = vmatprep.subr.mxu0 0.0
        %2150 = vmatpush1.xpose.msra.mxu0 0.0
        %2151 = vmatprep.subr.mxu0 0.0
        %2152 = vmatpush1.xpose.msra.mxu0 0.0
        %2153 = vmatprep.subr.mxu0 0.0
        %2154 = vmatpush1.xpose.msra.mxu0 0.0
        %2155 = vmatprep.subr.mxu0 0.0
        %2156 = vmatpush1.xpose.msra.mxu0 0.0
        %2157 = vmatprep.subr.mxu0 0.0
        %2158 = vmatpush1.xpose.msra.mxu0 0.0
        %2159 = vmatprep.subr.mxu0 0.0
        %2160 = vmatpush1.xpose.msra.mxu0 0.0
        %2161 = vmatprep.subr.mxu0 0.0
        %2162 = vmatpush1.xpose.msra.mxu0 0.0
        %2163 = vmatprep.subr.mxu0 0.0
        %2164 = vmatpush1.xpose.msra.mxu0 0.0
        %2165 = vmatprep.subr.mxu0 0.0
        %2166 = vmatpush1.xpose.msra.mxu0 0.0
        %2167 = vmatprep.subr.mxu0 0.0
        %2168 = vmatpush1.xpose.msra.mxu0 0.0
        %2169 = vmatprep.subr.mxu0 0.0
        %2170 = vmatpush1.xpose.msra.mxu0 0.0
        %2171 = vmatprep.subr.mxu0 0.0
        %2172 = vmatpush1.xpose.msra.mxu0 0.0
        %2173 = vmatprep.subr.mxu0 0.0
        %2174 = vmatpush1.xpose.msra.mxu0 0.0
        %2175 = vmatprep.subr.mxu0 0.0
        %2176 = vmatpush1.xpose.msra.mxu0 0.0
        %2177 = vmatprep.subr.mxu0 0.0
        %2178 = vmatpush1.xpose.msra.mxu0 0.0
        %2179 = vmatprep.subr.mxu0 0.0
        %2180 = vmatpush1.xpose.msra.mxu0 0.0
        %2181 = vmatprep.subr.mxu0 0.0
        %2182 = vmatpush1.xpose.msra.mxu0 0.0
        %2183 = vmatprep.subr.mxu0 0.0
        %2184 = vmatpush1.xpose.msra.mxu0 0.0
        %2185 = vmatprep.subr.mxu0 0.0
        %2186 = vmatpush1.xpose.msra.mxu0 0.0
        %2187 = vmatprep.subr.mxu0 0.0
        %2188 = vmatpush1.xpose.msra.mxu0 0.0
        %2189 = vmatprep.subr.mxu0 0.0
        %2190 = vmatpush1.xpose.msra.mxu0 0.0
        %2191 = vmatprep.subr.mxu0 0.0
        %2192 = vmatpush1.xpose.msra.mxu0 0.0
        %2193 = vmatprep.subr.mxu0 0.0
        %2194 = vmatpush1.xpose.msra.mxu0 0.0
        %2195 = vmatprep.mubr.f32.mxu0 0.0
        %2196 = vmatmul.mubr.f32.gmra.mrb[0].mxu0 %v2120
        %v2197 = vpop.f32.mrb[0].mxu0
        %v2198 = vadd.f32 0.0, %v2197
        %v2199 = vpop.f32.mrb[0].mxu0
        %2200 = vmatprep.mubr.f32.mxu0 0.0
        %2201 = vmatmul.mubr.f32.gmra.mrb[0].mxu0 %v2123
        %v2202 = vpop.f32.mrb[0].mxu0
        %v2203 = vadd.f32 0.0, %v2202
        %v2204 = vpop.f32.mrb[0].mxu0
        %2205 = vdwg.mxu0
        %v2207 = vsel %vm683, %v1089, 0
        %v2210 = vsel %vm683, %v1094, 0
        %v2213 = vsel %vm683, %v1294, 0
        %v2216 = vsel %vm683, %v1299, 0
        %2218 = vmatprep.subr.mxu0 0.0
        %2219 = vmatpush1.xpose.msra.mxu0 %v2213
        %2220 = vmatprep.subr.mxu0 0.0
        %2221 = vmatpush1.xpose.msra.mxu0 %v2216
        %2222 = vmatprep.subr.mxu0 0.0
        %2223 = vmatpush1.xpose.msra.mxu0 0.0
        %2224 = vmatprep.subr.mxu0 0.0
        %2225 = vmatpush1.xpose.msra.mxu0 0.0
        %2226 = vmatprep.subr.mxu0 0.0
        %2227 = vmatpush1.xpose.msra.mxu0 0.0
        %2228 = vmatprep.subr.mxu0 0.0
        %2229 = vmatpush1.xpose.msra.mxu0 0.0
        %2230 = vmatprep.subr.mxu0 0.0
        %2231 = vmatpush1.xpose.msra.mxu0 0.0
        %2232 = vmatprep.subr.mxu0 0.0
        %2233 = vmatpush1.xpose.msra.mxu0 0.0
        %2234 = vmatprep.subr.mxu0 0.0
        %2235 = vmatpush1.xpose.msra.mxu0 0.0
        %2236 = vmatprep.subr.mxu0 0.0
        %2237 = vmatpush1.xpose.msra.mxu0 0.0
        %2238 = vmatprep.subr.mxu0 0.0
        %2239 = vmatpush1.xpose.msra.mxu0 0.0
        %2240 = vmatprep.subr.mxu0 0.0
        %2241 = vmatpush1.xpose.msra.mxu0 0.0
        %2242 = vmatprep.subr.mxu0 0.0
        %2243 = vmatpush1.xpose.msra.mxu0 0.0
        %2244 = vmatprep.subr.mxu0 0.0
        %2245 = vmatpush1.xpose.msra.mxu0 0.0
        %2246 = vmatprep.subr.mxu0 0.0
        %2247 = vmatpush1.xpose.msra.mxu0 0.0
        %2248 = vmatprep.subr.mxu0 0.0
        %2249 = vmatpush1.xpose.msra.mxu0 0.0
        %2250 = vmatprep.subr.mxu0 0.0
        %2251 = vmatpush1.xpose.msra.mxu0 0.0
        %2252 = vmatprep.subr.mxu0 0.0
        %2253 = vmatpush1.xpose.msra.mxu0 0.0
        %2254 = vmatprep.subr.mxu0 0.0
        %2255 = vmatpush1.xpose.msra.mxu0 0.0
        %2256 = vmatprep.subr.mxu0 0.0
        %2257 = vmatpush1.xpose.msra.mxu0 0.0
        %2258 = vmatprep.subr.mxu0 0.0
        %2259 = vmatpush1.xpose.msra.mxu0 0.0
        %2260 = vmatprep.subr.mxu0 0.0
        %2261 = vmatpush1.xpose.msra.mxu0 0.0
        %2262 = vmatprep.subr.mxu0 0.0
        %2263 = vmatpush1.xpose.msra.mxu0 0.0
        %2264 = vmatprep.subr.mxu0 0.0
        %2265 = vmatpush1.xpose.msra.mxu0 0.0
        %2266 = vmatprep.subr.mxu0 0.0
        %2267 = vmatpush1.xpose.msra.mxu0 0.0
        %2268 = vmatprep.subr.mxu0 0.0
        %2269 = vmatpush1.xpose.msra.mxu0 0.0
        %2270 = vmatprep.subr.mxu0 0.0
        %2271 = vmatpush1.xpose.msra.mxu0 0.0
        %2272 = vmatprep.subr.mxu0 0.0
        %2273 = vmatpush1.xpose.msra.mxu0 0.0
        %2274 = vmatprep.subr.mxu0 0.0
        %2275 = vmatpush1.xpose.msra.mxu0 0.0
        %2276 = vmatprep.subr.mxu0 0.0
        %2277 = vmatpush1.xpose.msra.mxu0 0.0
        %2278 = vmatprep.subr.mxu0 0.0
        %2279 = vmatpush1.xpose.msra.mxu0 0.0
        %2280 = vmatprep.subr.mxu0 0.0
        %2281 = vmatpush1.xpose.msra.mxu0 0.0
        %2282 = vmatprep.mubr.f32.mxu0 0.0
        %2283 = vmatmul.mubr.f32.gmra.mrb[0].mxu0 %v2207
        %v2284 = vpop.f32.mrb[0].mxu0
        %v2285 = vadd.f32 0.0, %v2284
        %v2286 = vpop.f32.mrb[0].mxu0
        %2287 = vmatprep.mubr.f32.mxu0 0.0
        %2288 = vmatmul.mubr.f32.gmra.mrb[0].mxu0 %v2210
        %v2289 = vpop.f32.mrb[0].mxu0
        %v2290 = vadd.f32 0.0, %v2289
        %v2291 = vpop.f32.mrb[0].mxu0
        %2292 = vdwg.mxu0
        %v2294 = vsel %vm683, %v1099, 0
        %v2297 = vsel %vm683, %v1104, 0
        %v2300 = vsel %vm683, %v1304, 0
        %v2303 = vsel %vm683, %v1309, 0
        %2305 = vmatprep.subr.mxu0 0.0
        %2306 = vmatpush1.xpose.msra.mxu0 %v2300
        %2307 = vmatprep.subr.mxu0 0.0
        %2308 = vmatpush1.xpose.msra.mxu0 %v2303
        %2309 = vmatprep.subr.mxu0 0.0
        %2310 = vmatpush1.xpose.msra.mxu0 0.0
        %2311 = vmatprep.subr.mxu0 0.0
        %2312 = vmatpush1.xpose.msra.mxu0 0.0
        %2313 = vmatprep.subr.mxu0 0.0
        %2314 = vmatpush1.xpose.msra.mxu0 0.0
        %2315 = vmatprep.subr.mxu0 0.0
        %2316 = vmatpush1.xpose.msra.mxu0 0.0
        %2317 = vmatprep.subr.mxu0 0.0
        %2318 = vmatpush1.xpose.msra.mxu0 0.0
        %2319 = vmatprep.subr.mxu0 0.0
        %2320 = vmatpush1.xpose.msra.mxu0 0.0
        %2321 = vmatprep.subr.mxu0 0.0
        %2322 = vmatpush1.xpose.msra.mxu0 0.0
        %2323 = vmatprep.subr.mxu0 0.0
        %2324 = vmatpush1.xpose.msra.mxu0 0.0
        %2325 = vmatprep.subr.mxu0 0.0
        %2326 = vmatpush1.xpose.msra.mxu0 0.0
        %2327 = vmatprep.subr.mxu0 0.0
        %2328 = vmatpush1.xpose.msra.mxu0 0.0
        %2329 = vmatprep.subr.mxu0 0.0
        %2330 = vmatpush1.xpose.msra.mxu0 0.0
        %2331 = vmatprep.subr.mxu0 0.0
        %2332 = vmatpush1.xpose.msra.mxu0 0.0
        %2333 = vmatprep.subr.mxu0 0.0
        %2334 = vmatpush1.xpose.msra.mxu0 0.0
        %2335 = vmatprep.subr.mxu0 0.0
        %2336 = vmatpush1.xpose.msra.mxu0 0.0
        %2337 = vmatprep.subr.mxu0 0.0
        %2338 = vmatpush1.xpose.msra.mxu0 0.0
        %2339 = vmatprep.subr.mxu0 0.0
        %2340 = vmatpush1.xpose.msra.mxu0 0.0
        %2341 = vmatprep.subr.mxu0 0.0
        %2342 = vmatpush1.xpose.msra.mxu0 0.0
        %2343 = vmatprep.subr.mxu0 0.0
        %2344 = vmatpush1.xpose.msra.mxu0 0.0
        %2345 = vmatprep.subr.mxu0 0.0
        %2346 = vmatpush1.xpose.msra.mxu0 0.0
        %2347 = vmatprep.subr.mxu0 0.0
        %2348 = vmatpush1.xpose.msra.mxu0 0.0
        %2349 = vmatprep.subr.mxu0 0.0
        %2350 = vmatpush1.xpose.msra.mxu0 0.0
        %2351 = vmatprep.subr.mxu0 0.0
        %2352 = vmatpush1.xpose.msra.mxu0 0.0
        %2353 = vmatprep.subr.mxu0 0.0
        %2354 = vmatpush1.xpose.msra.mxu0 0.0
        %2355 = vmatprep.subr.mxu0 0.0
        %2356 = vmatpush1.xpose.msra.mxu0 0.0
        %2357 = vmatprep.subr.mxu0 0.0
        %2358 = vmatpush1.xpose.msra.mxu0 0.0
        %2359 = vmatprep.subr.mxu0 0.0
        %2360 = vmatpush1.xpose.msra.mxu0 0.0
        %2361 = vmatprep.subr.mxu0 0.0
        %2362 = vmatpush1.xpose.msra.mxu0 0.0
        %2363 = vmatprep.subr.mxu0 0.0
        %2364 = vmatpush1.xpose.msra.mxu0 0.0
        %2365 = vmatprep.subr.mxu0 0.0
        %2366 = vmatpush1.xpose.msra.mxu0 0.0
        %2367 = vmatprep.subr.mxu0 0.0
        %2368 = vmatpush1.xpose.msra.mxu0 0.0
        %2369 = vmatprep.mubr.f32.mxu0 0.0
        %2370 = vmatmul.mubr.f32.gmra.mrb[0].mxu0 %v2294
        %v2371 = vpop.f32.mrb[0].mxu0
        %v2372 = vadd.f32 0.0, %v2371
        %v2373 = vpop.f32.mrb[0].mxu0
        %2374 = vmatprep.mubr.f32.mxu0 0.0
        %2375 = vmatmul.mubr.f32.gmra.mrb[0].mxu0 %v2297
        %v2376 = vpop.f32.mrb[0].mxu0
        %v2377 = vadd.f32 0.0, %v2376
        %v2378 = vpop.f32.mrb[0].mxu0
        %2379 = vdwg.mxu0
        %v2381 = vsel %vm683, %v1109, 0
        %v2384 = vsel %vm683, %v1114, 0
        %v2387 = vsel %vm683, %v1314, 0
        %v2390 = vsel %vm683, %v1319, 0
        %2392 = vmatprep.subr.mxu0 0.0
        %2393 = vmatpush1.xpose.msra.mxu0 %v2387
        %2394 = vmatprep.subr.mxu0 0.0
        %2395 = vmatpush1.xpose.msra.mxu0 %v2390
        %2396 = vmatprep.subr.mxu0 0.0
        %2397 = vmatpush1.xpose.msra.mxu0 0.0
        %2398 = vmatprep.subr.mxu0 0.0
        %2399 = vmatpush1.xpose.msra.mxu0 0.0
        %2400 = vmatprep.subr.mxu0 0.0
        %2401 = vmatpush1.xpose.msra.mxu0 0.0
        %2402 = vmatprep.subr.mxu0 0.0
        %2403 = vmatpush1.xpose.msra.mxu0 0.0
        %2404 = vmatprep.subr.mxu0 0.0
        %2405 = vmatpush1.xpose.msra.mxu0 0.0
        %2406 = vmatprep.subr.mxu0 0.0
        %2407 = vmatpush1.xpose.msra.mxu0 0.0
        %2408 = vmatprep.subr.mxu0 0.0
        %2409 = vmatpush1.xpose.msra.mxu0 0.0
        %2410 = vmatprep.subr.mxu0 0.0
        %2411 = vmatpush1.xpose.msra.mxu0 0.0
        %2412 = vmatprep.subr.mxu0 0.0
        %2413 = vmatpush1.xpose.msra.mxu0 0.0
        %2414 = vmatprep.subr.mxu0 0.0
        %2415 = vmatpush1.xpose.msra.mxu0 0.0
        %2416 = vmatprep.subr.mxu0 0.0
        %2417 = vmatpush1.xpose.msra.mxu0 0.0
        %2418 = vmatprep.subr.mxu0 0.0
        %2419 = vmatpush1.xpose.msra.mxu0 0.0
        %2420 = vmatprep.subr.mxu0 0.0
        %2421 = vmatpush1.xpose.msra.mxu0 0.0
        %2422 = vmatprep.subr.mxu0 0.0
        %2423 = vmatpush1.xpose.msra.mxu0 0.0
        %2424 = vmatprep.subr.mxu0 0.0
        %2425 = vmatpush1.xpose.msra.mxu0 0.0
        %2426 = vmatprep.subr.mxu0 0.0
        %2427 = vmatpush1.xpose.msra.mxu0 0.0
        %2428 = vmatprep.subr.mxu0 0.0
        %2429 = vmatpush1.xpose.msra.mxu0 0.0
        %2430 = vmatprep.subr.mxu0 0.0
        %2431 = vmatpush1.xpose.msra.mxu0 0.0
        %2432 = vmatprep.subr.mxu0 0.0
        %2433 = vmatpush1.xpose.msra.mxu0 0.0
        %2434 = vmatprep.subr.mxu0 0.0
        %2435 = vmatpush1.xpose.msra.mxu0 0.0
        %2436 = vmatprep.subr.mxu0 0.0
        %2437 = vmatpush1.xpose.msra.mxu0 0.0
        %2438 = vmatprep.subr.mxu0 0.0
        %2439 = vmatpush1.xpose.msra.mxu0 0.0
        %2440 = vmatprep.subr.mxu0 0.0
        %2441 = vmatpush1.xpose.msra.mxu0 0.0
        %2442 = vmatprep.subr.mxu0 0.0
        %2443 = vmatpush1.xpose.msra.mxu0 0.0
        %2444 = vmatprep.subr.mxu0 0.0
        %2445 = vmatpush1.xpose.msra.mxu0 0.0
        %2446 = vmatprep.subr.mxu0 0.0
        %2447 = vmatpush1.xpose.msra.mxu0 0.0
        %2448 = vmatprep.subr.mxu0 0.0
        %2449 = vmatpush1.xpose.msra.mxu0 0.0
        %2450 = vmatprep.subr.mxu0 0.0
        %2451 = vmatpush1.xpose.msra.mxu0 0.0
        %2452 = vmatprep.subr.mxu0 0.0
        %2453 = vmatpush1.xpose.msra.mxu0 0.0
        %2454 = vmatprep.subr.mxu0 0.0
        %2455 = vmatpush1.xpose.msra.mxu0 0.0
        %2456 = vmatprep.mubr.f32.mxu0 0.0
        %2457 = vmatmul.mubr.f32.gmra.mrb[0].mxu0 %v2381
        %v2458 = vpop.f32.mrb[0].mxu0
        %v2459 = vadd.f32 0.0, %v2458
        %v2460 = vpop.f32.mrb[0].mxu0
        %2461 = vmatprep.mubr.f32.mxu0 0.0
        %2462 = vmatmul.mubr.f32.gmra.mrb[0].mxu0 %v2384
        %v2463 = vpop.f32.mrb[0].mxu0
        %v2464 = vadd.f32 0.0, %v2463
        %v2465 = vpop.f32.mrb[0].mxu0
        %2466 = vdwg.mxu0
        %v2468 = vsel %vm683, %v1119, 0
        %v2471 = vsel %vm683, %v1124, 0
        %v2474 = vsel %vm683, %v1324, 0
        %v2477 = vsel %vm683, %v1329, 0
        %2479 = vmatprep.subr.mxu0 0.0
        %2480 = vmatpush1.xpose.msra.mxu0 %v2474
        %2481 = vmatprep.subr.mxu0 0.0
        %2482 = vmatpush1.xpose.msra.mxu0 %v2477
        %2483 = vmatprep.subr.mxu0 0.0
        %2484 = vmatpush1.xpose.msra.mxu0 0.0
        %2485 = vmatprep.subr.mxu0 0.0
        %2486 = vmatpush1.xpose.msra.mxu0 0.0
        %2487 = vmatprep.subr.mxu0 0.0
        %2488 = vmatpush1.xpose.msra.mxu0 0.0
        %2489 = vmatprep.subr.mxu0 0.0
        %2490 = vmatpush1.xpose.msra.mxu0 0.0
        %2491 = vmatprep.subr.mxu0 0.0
        %2492 = vmatpush1.xpose.msra.mxu0 0.0
        %2493 = vmatprep.subr.mxu0 0.0
        %2494 = vmatpush1.xpose.msra.mxu0 0.0
        %2495 = vmatprep.subr.mxu0 0.0
        %2496 = vmatpush1.xpose.msra.mxu0 0.0
        %2497 = vmatprep.subr.mxu0 0.0
        %2498 = vmatpush1.xpose.msra.mxu0 0.0
        %2499 = vmatprep.subr.mxu0 0.0
        %2500 = vmatpush1.xpose.msra.mxu0 0.0
        %2501 = vmatprep.subr.mxu0 0.0
        %2502 = vmatpush1.xpose.msra.mxu0 0.0
        %2503 = vmatprep.subr.mxu0 0.0
        %2504 = vmatpush1.xpose.msra.mxu0 0.0
        %2505 = vmatprep.subr.mxu0 0.0
        %2506 = vmatpush1.xpose.msra.mxu0 0.0
        %2507 = vmatprep.subr.mxu0 0.0
        %2508 = vmatpush1.xpose.msra.mxu0 0.0
        %2509 = vmatprep.subr.mxu0 0.0
        %2510 = vmatpush1.xpose.msra.mxu0 0.0
        %2511 = vmatprep.subr.mxu0 0.0
        %2512 = vmatpush1.xpose.msra.mxu0 0.0
        %2513 = vmatprep.subr.mxu0 0.0
        %2514 = vmatpush1.xpose.msra.mxu0 0.0
        %2515 = vmatprep.subr.mxu0 0.0
        %2516 = vmatpush1.xpose.msra.mxu0 0.0
        %2517 = vmatprep.subr.mxu0 0.0
        %2518 = vmatpush1.xpose.msra.mxu0 0.0
        %2519 = vmatprep.subr.mxu0 0.0
        %2520 = vmatpush1.xpose.msra.mxu0 0.0
        %2521 = vmatprep.subr.mxu0 0.0
        %2522 = vmatpush1.xpose.msra.mxu0 0.0
        %2523 = vmatprep.subr.mxu0 0.0
        %2524 = vmatpush1.xpose.msra.mxu0 0.0
        %2525 = vmatprep.subr.mxu0 0.0
        %2526 = vmatpush1.xpose.msra.mxu0 0.0
        %2527 = vmatprep.subr.mxu0 0.0
        %2528 = vmatpush1.xpose.msra.mxu0 0.0
        %2529 = vmatprep.subr.mxu0 0.0
        %2530 = vmatpush1.xpose.msra.mxu0 0.0
        %2531 = vmatprep.subr.mxu0 0.0
        %2532 = vmatpush1.xpose.msra.mxu0 0.0
        %2533 = vmatprep.subr.mxu0 0.0
        %2534 = vmatpush1.xpose.msra.mxu0 0.0
        %2535 = vmatprep.subr.mxu0 0.0
        %2536 = vmatpush1.xpose.msra.mxu0 0.0
        %2537 = vmatprep.subr.mxu0 0.0
        %2538 = vmatpush1.xpose.msra.mxu0 0.0
        %2539 = vmatprep.subr.mxu0 0.0
        %2540 = vmatpush1.xpose.msra.mxu0 0.0
        %2541 = vmatprep.subr.mxu0 0.0
        %2542 = vmatpush1.xpose.msra.mxu0 0.0
        %2543 = vmatprep.mubr.f32.mxu0 0.0
        %2544 = vmatmul.mubr.f32.gmra.mrb[0].mxu0 %v2468
        %v2545 = vpop.f32.mrb[0].mxu0
        %v2546 = vadd.f32 0.0, %v2545
        %v2547 = vpop.f32.mrb[0].mxu0
        %2548 = vmatprep.mubr.f32.mxu0 0.0
        %2549 = vmatmul.mubr.f32.gmra.mrb[0].mxu0 %v2471
        %v2550 = vpop.f32.mrb[0].mxu0
        %v2551 = vadd.f32 0.0, %v2550
        %v2552 = vpop.f32.mrb[0].mxu0
        %2553 = vdwg.mxu0
        %v2555 = vsel %vm683, %v1129, 0
        %v2558 = vsel %vm683, %v1134, 0
        %v2561 = vsel %vm683, %v1334, 0
        %v2564 = vsel %vm683, %v1339, 0
        %2566 = vmatprep.subr.mxu0 0.0
        %2567 = vmatpush1.xpose.msra.mxu0 %v2561
        %2568 = vmatprep.subr.mxu0 0.0
        %2569 = vmatpush1.xpose.msra.mxu0 %v2564
        %2570 = vmatprep.subr.mxu0 0.0
        %2571 = vmatpush1.xpose.msra.mxu0 0.0
        %2572 = vmatprep.subr.mxu0 0.0
        %2573 = vmatpush1.xpose.msra.mxu0 0.0
        %2574 = vmatprep.subr.mxu0 0.0
        %2575 = vmatpush1.xpose.msra.mxu0 0.0
        %2576 = vmatprep.subr.mxu0 0.0
        %2577 = vmatpush1.xpose.msra.mxu0 0.0
        %2578 = vmatprep.subr.mxu0 0.0
        %2579 = vmatpush1.xpose.msra.mxu0 0.0
        %2580 = vmatprep.subr.mxu0 0.0
        %2581 = vmatpush1.xpose.msra.mxu0 0.0
        %2582 = vmatprep.subr.mxu0 0.0
        %2583 = vmatpush1.xpose.msra.mxu0 0.0
        %2584 = vmatprep.subr.mxu0 0.0
        %2585 = vmatpush1.xpose.msra.mxu0 0.0
        %2586 = vmatprep.subr.mxu0 0.0
        %2587 = vmatpush1.xpose.msra.mxu0 0.0
        %2588 = vmatprep.subr.mxu0 0.0
        %2589 = vmatpush1.xpose.msra.mxu0 0.0
        %2590 = vmatprep.subr.mxu0 0.0
        %2591 = vmatpush1.xpose.msra.mxu0 0.0
        %2592 = vmatprep.subr.mxu0 0.0
        %2593 = vmatpush1.xpose.msra.mxu0 0.0
        %2594 = vmatprep.subr.mxu0 0.0
        %2595 = vmatpush1.xpose.msra.mxu0 0.0
        %2596 = vmatprep.subr.mxu0 0.0
        %2597 = vmatpush1.xpose.msra.mxu0 0.0
        %2598 = vmatprep.subr.mxu0 0.0
        %2599 = vmatpush1.xpose.msra.mxu0 0.0
        %2600 = vmatprep.subr.mxu0 0.0
        %2601 = vmatpush1.xpose.msra.mxu0 0.0
        %2602 = vmatprep.subr.mxu0 0.0
        %2603 = vmatpush1.xpose.msra.mxu0 0.0
        %2604 = vmatprep.subr.mxu0 0.0
        %2605 = vmatpush1.xpose.msra.mxu0 0.0
        %2606 = vmatprep.subr.mxu0 0.0
        %2607 = vmatpush1.xpose.msra.mxu0 0.0
        %2608 = vmatprep.subr.mxu0 0.0
        %2609 = vmatpush1.xpose.msra.mxu0 0.0
        %2610 = vmatprep.subr.mxu0 0.0
        %2611 = vmatpush1.xpose.msra.mxu0 0.0
        %2612 = vmatprep.subr.mxu0 0.0
        %2613 = vmatpush1.xpose.msra.mxu0 0.0
        %2614 = vmatprep.subr.mxu0 0.0
        %2615 = vmatpush1.xpose.msra.mxu0 0.0
        %2616 = vmatprep.subr.mxu0 0.0
        %2617 = vmatpush1.xpose.msra.mxu0 0.0
        %2618 = vmatprep.subr.mxu0 0.0
        %2619 = vmatpush1.xpose.msra.mxu0 0.0
        %2620 = vmatprep.subr.mxu0 0.0
        %2621 = vmatpush1.xpose.msra.mxu0 0.0
        %2622 = vmatprep.subr.mxu0 0.0
        %2623 = vmatpush1.xpose.msra.mxu0 0.0
        %2624 = vmatprep.subr.mxu0 0.0
        %2625 = vmatpush1.xpose.msra.mxu0 0.0
        %2626 = vmatprep.subr.mxu0 0.0
        %2627 = vmatpush1.xpose.msra.mxu0 0.0
        %2628 = vmatprep.subr.mxu0 0.0
        %2629 = vmatpush1.xpose.msra.mxu0 0.0
        %2630 = vmatprep.mubr.f32.mxu0 0.0
        %2631 = vmatmul.mubr.f32.gmra.mrb[0].mxu0 %v2555
        %v2632 = vpop.f32.mrb[0].mxu0
        %v2633 = vadd.f32 0.0, %v2632
        %v2634 = vpop.f32.mrb[0].mxu0
        %2635 = vmatprep.mubr.f32.mxu0 0.0
        %2636 = vmatmul.mubr.f32.gmra.mrb[0].mxu0 %v2558
        %v2637 = vpop.f32.mrb[0].mxu0
        %v2638 = vadd.f32 0.0, %v2637
        %v2639 = vpop.f32.mrb[0].mxu0
        %2640 = vdwg.mxu0
        %v2642 = vsel %vm683, %v1139, 0
        %v2645 = vsel %vm683, %v1144, 0
        %v2648 = vsel %vm683, %v1344, 0
        %v2651 = vsel %vm683, %v1349, 0
        %2653 = vmatprep.subr.mxu0 0.0
        %2654 = vmatpush1.xpose.msra.mxu0 %v2648
        %2655 = vmatprep.subr.mxu0 0.0
        %2656 = vmatpush1.xpose.msra.mxu0 %v2651
        %2657 = vmatprep.subr.mxu0 0.0
        %2658 = vmatpush1.xpose.msra.mxu0 0.0
        %2659 = vmatprep.subr.mxu0 0.0
        %2660 = vmatpush1.xpose.msra.mxu0 0.0
        %2661 = vmatprep.subr.mxu0 0.0
        %2662 = vmatpush1.xpose.msra.mxu0 0.0
        %2663 = vmatprep.subr.mxu0 0.0
        %2664 = vmatpush1.xpose.msra.mxu0 0.0
        %2665 = vmatprep.subr.mxu0 0.0
        %2666 = vmatpush1.xpose.msra.mxu0 0.0
        %2667 = vmatprep.subr.mxu0 0.0
        %2668 = vmatpush1.xpose.msra.mxu0 0.0
        %2669 = vmatprep.subr.mxu0 0.0
        %2670 = vmatpush1.xpose.msra.mxu0 0.0
        %2671 = vmatprep.subr.mxu0 0.0
        %2672 = vmatpush1.xpose.msra.mxu0 0.0
        %2673 = vmatprep.subr.mxu0 0.0
        %2674 = vmatpush1.xpose.msra.mxu0 0.0
        %2675 = vmatprep.subr.mxu0 0.0
        %2676 = vmatpush1.xpose.msra.mxu0 0.0
        %2677 = vmatprep.subr.mxu0 0.0
        %2678 = vmatpush1.xpose.msra.mxu0 0.0
        %2679 = vmatprep.subr.mxu0 0.0
        %2680 = vmatpush1.xpose.msra.mxu0 0.0
        %2681 = vmatprep.subr.mxu0 0.0
        %2682 = vmatpush1.xpose.msra.mxu0 0.0
        %2683 = vmatprep.subr.mxu0 0.0
        %2684 = vmatpush1.xpose.msra.mxu0 0.0
        %2685 = vmatprep.subr.mxu0 0.0
        %2686 = vmatpush1.xpose.msra.mxu0 0.0
        %2687 = vmatprep.subr.mxu0 0.0
        %2688 = vmatpush1.xpose.msra.mxu0 0.0
        %2689 = vmatprep.subr.mxu0 0.0
        %2690 = vmatpush1.xpose.msra.mxu0 0.0
        %2691 = vmatprep.subr.mxu0 0.0
        %2692 = vmatpush1.xpose.msra.mxu0 0.0
        %2693 = vmatprep.subr.mxu0 0.0
        %2694 = vmatpush1.xpose.msra.mxu0 0.0
        %2695 = vmatprep.subr.mxu0 0.0
        %2696 = vmatpush1.xpose.msra.mxu0 0.0
        %2697 = vmatprep.subr.mxu0 0.0
        %2698 = vmatpush1.xpose.msra.mxu0 0.0
        %2699 = vmatprep.subr.mxu0 0.0
        %2700 = vmatpush1.xpose.msra.mxu0 0.0
        %2701 = vmatprep.subr.mxu0 0.0
        %2702 = vmatpush1.xpose.msra.mxu0 0.0
        %2703 = vmatprep.subr.mxu0 0.0
        %2704 = vmatpush1.xpose.msra.mxu0 0.0
        %2705 = vmatprep.subr.mxu0 0.0
        %2706 = vmatpush1.xpose.msra.mxu0 0.0
        %2707 = vmatprep.subr.mxu0 0.0
        %2708 = vmatpush1.xpose.msra.mxu0 0.0
        %2709 = vmatprep.subr.mxu0 0.0
        %2710 = vmatpush1.xpose.msra.mxu0 0.0
        %2711 = vmatprep.subr.mxu0 0.0
        %2712 = vmatpush1.xpose.msra.mxu0 0.0
        %2713 = vmatprep.subr.mxu0 0.0
        %2714 = vmatpush1.xpose.msra.mxu0 0.0
        %2715 = vmatprep.subr.mxu0 0.0
        %2716 = vmatpush1.xpose.msra.mxu0 0.0
        %2717 = vmatprep.mubr.f32.mxu0 0.0
        %2718 = vmatmul.mubr.f32.gmra.mrb[0].mxu0 %v2642
        %v2719 = vpop.f32.mrb[0].mxu0
        %v2720 = vadd.f32 0.0, %v2719
        %v2721 = vpop.f32.mrb[0].mxu0
        %2722 = vmatprep.mubr.f32.mxu0 0.0
        %2723 = vmatmul.mubr.f32.gmra.mrb[0].mxu0 %v2645
        %v2724 = vpop.f32.mrb[0].mxu0
        %v2725 = vadd.f32 0.0, %v2724
        %v2726 = vpop.f32.mrb[0].mxu0
        %2727 = vdwg.mxu0
        %v2728 = vmul.f32 %v2111, 0.14433756
        %v2729 = vmul.f32 %v2116, 0.14433756
        %v2730 = vmul.f32 %v2198, 0.14433756
        %v2731 = vmul.f32 %v2203, 0.14433756
        %v2732 = vmul.f32 %v2285, 0.14433756
        %v2733 = vmul.f32 %v2290, 0.14433756
        %v2734 = vmul.f32 %v2372, 0.14433756
        %v2735 = vmul.f32 %v2377, 0.14433756
        %v2736 = vmul.f32 %v2459, 0.14433756
        %v2737 = vmul.f32 %v2464, 0.14433756
        %v2738 = vmul.f32 %v2546, 0.14433756
        %v2739 = vmul.f32 %v2551, 0.14433756
        %v2740 = vmul.f32 %v2633, 0.14433756
        %v2741 = vmul.f32 %v2638, 0.14433756
        %v2742 = vmul.f32 %v2720, 0.14433756
        %v2743 = vmul.f32 %v2725, 0.14433756
        %vm2744 = vcmask 130048
        %v2745 = vsel %vm2744, %v2728, -inf
        %2746 = vmax.xlane.f32.xlu0 %v2745
        %v2747 = vpop.xlane.xlu0 %2746
        %v2748 = vsel %vm2744, %v2729, -inf
        %2749 = vmax.xlane.f32.xlu0 %v2748
        %v2750 = vpop.xlane.xlu0 %2749
        %v2751 = vsel %vm2744, %v2730, -inf
        %2752 = vmax.xlane.f32.xlu0 %v2751
        %v2753 = vpop.xlane.xlu0 %2752
        %v2754 = vsel %vm2744, %v2731, -inf
        %2755 = vmax.xlane.f32.xlu0 %v2754
        %v2756 = vpop.xlane.xlu0 %2755
        %v2757 = vsel %vm2744, %v2732, -inf
        %2758 = vmax.xlane.f32.xlu0 %v2757
        %v2759 = vpop.xlane.xlu0 %2758
        %v2760 = vsel %vm2744, %v2733, -inf
        %2761 = vmax.xlane.f32.xlu0 %v2760
        %v2762 = vpop.xlane.xlu0 %2761
        %v2763 = vsel %vm2744, %v2734, -inf
        %2764 = vmax.xlane.f32.xlu0 %v2763
        %v2765 = vpop.xlane.xlu0 %2764
        %v2766 = vsel %vm2744, %v2735, -inf
        %2767 = vmax.xlane.f32.xlu0 %v2766
        %v2768 = vpop.xlane.xlu0 %2767
        %v2769 = vsel %vm2744, %v2736, -inf
        %2770 = vmax.xlane.f32.xlu0 %v2769
        %v2771 = vpop.xlane.xlu0 %2770
        %v2772 = vsel %vm2744, %v2737, -inf
        %2773 = vmax.xlane.f32.xlu0 %v2772
        %v2774 = vpop.xlane.xlu0 %2773
        %v2775 = vsel %vm2744, %v2738, -inf
        %2776 = vmax.xlane.f32.xlu0 %v2775
        %v2777 = vpop.xlane.xlu0 %2776
        %v2778 = vsel %vm2744, %v2739, -inf
        %2779 = vmax.xlane.f32.xlu0 %v2778
        %v2780 = vpop.xlane.xlu0 %2779
        %v2781 = vsel %vm2744, %v2740, -inf
        %2782 = vmax.xlane.f32.xlu0 %v2781
        %v2783 = vpop.xlane.xlu0 %2782
        %v2784 = vsel %vm2744, %v2741, -inf
        %2785 = vmax.xlane.f32.xlu0 %v2784
        %v2786 = vpop.xlane.xlu0 %2785
        %v2787 = vsel %vm2744, %v2742, -inf
        %2788 = vmax.xlane.f32.xlu0 %v2787
        %v2789 = vpop.xlane.xlu0 %2788
        %v2790 = vsel %vm2744, %v2743, -inf
        %2791 = vmax.xlane.f32.xlu0 %v2790
        %v2792 = vpop.xlane.xlu0 %2791
        %v2793 = vsub.f32 %v2728, %v2747
        %v2794 = vsub.f32 %v2729, %v2750
        %v2795 = vsub.f32 %v2730, %v2753
        %v2796 = vsub.f32 %v2731, %v2756
        %v2797 = vsub.f32 %v2732, %v2759
        %v2798 = vsub.f32 %v2733, %v2762
        %v2799 = vsub.f32 %v2734, %v2765
        %v2800 = vsub.f32 %v2735, %v2768
        %v2801 = vsub.f32 %v2736, %v2771
        %v2802 = vsub.f32 %v2737, %v2774
        %v2803 = vsub.f32 %v2738, %v2777
        %v2804 = vsub.f32 %v2739, %v2780
        %v2805 = vsub.f32 %v2740, %v2783
        %v2806 = vsub.f32 %v2741, %v2786
        %v2807 = vsub.f32 %v2742, %v2789
        %v2808 = vsub.f32 %v2743, %v2792
        %v2809 = vmul.f32 %v2793, 1.442695
        %v2810 = vpow.pop %v2809
        %v2811 = vmul.f32 %v2794, 1.442695
        %v2812 = vpow.pop %v2811
        %v2813 = vmul.f32 %v2795, 1.442695
        %v2814 = vpow.pop %v2813
        %v2815 = vmul.f32 %v2796, 1.442695
        %v2816 = vpow.pop %v2815
        %v2817 = vmul.f32 %v2797, 1.442695
        %v2818 = vpow.pop %v2817
        %v2819 = vmul.f32 %v2798, 1.442695
        %v2820 = vpow.pop %v2819
        %v2821 = vmul.f32 %v2799, 1.442695
        %v2822 = vpow.pop %v2821
        %v2823 = vmul.f32 %v2800, 1.442695
        %v2824 = vpow.pop %v2823
        %v2825 = vmul.f32 %v2801, 1.442695
        %v2826 = vpow.pop %v2825
        %v2827 = vmul.f32 %v2802, 1.442695
        %v2828 = vpow.pop %v2827
        %v2829 = vmul.f32 %v2803, 1.442695
        %v2830 = vpow.pop %v2829
        %v2831 = vmul.f32 %v2804, 1.442695
        %v2832 = vpow.pop %v2831
        %v2833 = vmul.f32 %v2805, 1.442695
        %v2834 = vpow.pop %v2833
        %v2835 = vmul.f32 %v2806, 1.442695
        %v2836 = vpow.pop %v2835
        %v2837 = vmul.f32 %v2807, 1.442695
        %v2838 = vpow.pop %v2837
        %v2839 = vmul.f32 %v2808, 1.442695
        %v2840 = vpow.pop %v2839
        %v2841 = vsel %vm2744, %v2810, 0.0
        %2842 = vadd.xlane.f32.xlu0 %v2841
        %v2843 = vpop.xlane.xlu0 %2842
        %v2844 = vsel %vm2744, %v2812, 0.0
        %2845 = vadd.xlane.f32.xlu0 %v2844
        %v2846 = vpop.xlane.xlu0 %2845
        %v2847 = vsel %vm2744, %v2814, 0.0
        %2848 = vadd.xlane.f32.xlu0 %v2847
        %v2849 = vpop.xlane.xlu0 %2848
        %v2850 = vsel %vm2744, %v2816, 0.0
        %2851 = vadd.xlane.f32.xlu0 %v2850
        %v2852 = vpop.xlane.xlu0 %2851
        %v2853 = vsel %vm2744, %v2818, 0.0
        %2854 = vadd.xlane.f32.xlu0 %v2853
        %v2855 = vpop.xlane.xlu0 %2854
        %v2856 = vsel %vm2744, %v2820, 0.0
        %2857 = vadd.xlane.f32.xlu0 %v2856
        %v2858 = vpop.xlane.xlu0 %2857
        %v2859 = vsel %vm2744, %v2822, 0.0
        %2860 = vadd.xlane.f32.xlu0 %v2859
        %v2861 = vpop.xlane.xlu0 %2860
        %v2862 = vsel %vm2744, %v2824, 0.0
        %2863 = vadd.xlane.f32.xlu0 %v2862
        %v2864 = vpop.xlane.xlu0 %2863
        %v2865 = vsel %vm2744, %v2826, 0.0
        %2866 = vadd.xlane.f32.xlu0 %v2865
        %v2867 = vpop.xlane.xlu0 %2866
        %v2868 = vsel %vm2744, %v2828, 0.0
        %2869 = vadd.xlane.f32.xlu0 %v2868
        %v2870 = vpop.xlane.xlu0 %2869
        %v2871 = vsel %vm2744, %v2830, 0.0
        %2872 = vadd.xlane.f32.xlu0 %v2871
        %v2873 = vpop.xlane.xlu0 %2872
        %v2874 = vsel %vm2744, %v2832, 0.0
        %2875 = vadd.xlane.f32.xlu0 %v2874
        %v2876 = vpop.xlane.xlu0 %2875
        %v2877 = vsel %vm2744, %v2834, 0.0
        %2878 = vadd.xlane.f32.xlu0 %v2877
        %v2879 = vpop.xlane.xlu0 %2878
        %v2880 = vsel %vm2744, %v2836, 0.0
        %2881 = vadd.xlane.f32.xlu0 %v2880
        %v2882 = vpop.xlane.xlu0 %2881
        %v2883 = vsel %vm2744, %v2838, 0.0
        %2884 = vadd.xlane.f32.xlu0 %v2883
        %v2885 = vpop.xlane.xlu0 %2884
        %v2886 = vsel %vm2744, %v2840, 0.0
        %2887 = vadd.xlane.f32.xlu0 %v2886
        %v2888 = vpop.xlane.xlu0 %2887
        %v2889 = vrcp.pop %v2843
        %v2890 = vmul.f32 %v2810, %v2889
        %v2891 = vrcp.pop %v2846
        %v2892 = vmul.f32 %v2812, %v2891
        %v2893 = vrcp.pop %v2849
        %v2894 = vmul.f32 %v2814, %v2893
        %v2895 = vrcp.pop %v2852
        %v2896 = vmul.f32 %v2816, %v2895
        %v2897 = vrcp.pop %v2855
        %v2898 = vmul.f32 %v2818, %v2897
        %v2899 = vrcp.pop %v2858
        %v2900 = vmul.f32 %v2820, %v2899
        %v2901 = vrcp.pop %v2861
        %v2902 = vmul.f32 %v2822, %v2901
        %v2903 = vrcp.pop %v2864
        %v2904 = vmul.f32 %v2824, %v2903
        %v2905 = vrcp.pop %v2867
        %v2906 = vmul.f32 %v2826, %v2905
        %v2907 = vrcp.pop %v2870
        %v2908 = vmul.f32 %v2828, %v2907
        %v2909 = vrcp.pop %v2873
        %v2910 = vmul.f32 %v2830, %v2909
        %v2911 = vrcp.pop %v2876
        %v2912 = vmul.f32 %v2832, %v2911
        %v2913 = vrcp.pop %v2879
        %v2914 = vmul.f32 %v2834, %v2913
        %v2915 = vrcp.pop %v2882
        %v2916 = vmul.f32 %v2836, %v2915
        %v2917 = vrcp.pop %v2885
        %v2918 = vmul.f32 %v2838, %v2917
        %v2919 = vrcp.pop %v2888
        %v2920 = vmul.f32 %v2840, %v2919
        %v2922 = vsel %vm2744, %v2890, 0
        %v2925 = vsel %vm2744, %v2892, 0
        %2927 = vmatprep.subr.mxu0 0.0
        %2928 = vmatpush1.msra.mxu0 %v1638
        %2929 = vmatprep.subr.mxu0 0.0
        %2930 = vmatpush1.msra.mxu0 %v1643
        %2931 = vmatprep.subr.mxu0 0.0
        %2932 = vmatpush1.msra.mxu0 0.0
        %2933 = vmatprep.subr.mxu0 0.0
        %2934 = vmatpush1.msra.mxu0 0.0
        %2935 = vmatprep.subr.mxu0 0.0
        %2936 = vmatpush1.msra.mxu0 0.0
        %2937 = vmatprep.subr.mxu0 0.0
        %2938 = vmatpush1.msra.mxu0 0.0
        %2939 = vmatprep.subr.mxu0 0.0
        %2940 = vmatpush1.msra.mxu0 0.0
        %2941 = vmatprep.subr.mxu0 0.0
        %2942 = vmatpush1.msra.mxu0 0.0
        %2943 = vmatprep.subr.mxu0 0.0
        %2944 = vmatpush1.msra.mxu0 0.0
        %2945 = vmatprep.subr.mxu0 0.0
        %2946 = vmatpush1.msra.mxu0 0.0
        %2947 = vmatprep.subr.mxu0 0.0
        %2948 = vmatpush1.msra.mxu0 0.0
        %2949 = vmatprep.subr.mxu0 0.0
        %2950 = vmatpush1.msra.mxu0 0.0
        %2951 = vmatprep.subr.mxu0 0.0
        %2952 = vmatpush1.msra.mxu0 0.0
        %2953 = vmatprep.subr.mxu0 0.0
        %2954 = vmatpush1.msra.mxu0 0.0
        %2955 = vmatprep.subr.mxu0 0.0
        %2956 = vmatpush1.msra.mxu0 0.0
        %2957 = vmatprep.subr.mxu0 0.0
        %2958 = vmatpush1.msra.mxu0 0.0
        %2959 = vmatprep.subr.mxu0 0.0
        %2960 = vmatpush1.msra.mxu0 0.0
        %2961 = vmatprep.subr.mxu0 0.0
        %2962 = vmatpush1.msra.mxu0 0.0
        %2963 = vmatprep.subr.mxu0 0.0
        %2964 = vmatpush1.msra.mxu0 0.0
        %2965 = vmatprep.subr.mxu0 0.0
        %2966 = vmatpush1.msra.mxu0 0.0
        %2967 = vmatprep.subr.mxu0 0.0
        %2968 = vmatpush1.msra.mxu0 0.0
        %2969 = vmatprep.subr.mxu0 0.0
        %2970 = vmatpush1.msra.mxu0 0.0
        %2971 = vmatprep.subr.mxu0 0.0
        %2972 = vmatpush1.msra.mxu0 0.0
        %2973 = vmatprep.subr.mxu0 0.0
        %2974 = vmatpush1.msra.mxu0 0.0
        %2975 = vmatprep.subr.mxu0 0.0
        %2976 = vmatpush1.msra.mxu0 0.0
        %2977 = vmatprep.subr.mxu0 0.0
        %2978 = vmatpush1.msra.mxu0 0.0
        %2979 = vmatprep.subr.mxu0 0.0
        %2980 = vmatpush1.msra.mxu0 0.0
        %2981 = vmatprep.subr.mxu0 0.0
        %2982 = vmatpush1.msra.mxu0 0.0
        %2983 = vmatprep.subr.mxu0 0.0
        %2984 = vmatpush1.msra.mxu0 0.0
        %2985 = vmatprep.subr.mxu0 0.0
        %2986 = vmatpush1.msra.mxu0 0.0
        %2987 = vmatprep.subr.mxu0 0.0
        %2988 = vmatpush1.msra.mxu0 0.0
        %2989 = vmatprep.subr.mxu0 0.0
        %2990 = vmatpush1.msra.mxu0 0.0
        %2991 = vmatprep.mubr.f32.mxu0 0.0
        %2992 = vmatmul.mubr.f32.gmra.mrb[0].mxu0 %v2922
        %v2993 = vpop.f32.mrb[0].mxu0
        %v2994 = vadd.f32 0.0, %v2993
        %v2995 = vpop.f32.mrb[0].mxu0
        %2996 = vmatprep.mubr.f32.mxu0 0.0
        %2997 = vmatmul.mubr.f32.gmra.mrb[0].mxu0 %v2925
        %v2998 = vpop.f32.mrb[0].mxu0
        %v2999 = vadd.f32 0.0, %v2998
        %v3000 = vpop.f32.mrb[0].mxu0
        %3001 = vdwg.mxu0
        %v3003 = vsel %vm2744, %v2894, 0
        %v3006 = vsel %vm2744, %v2896, 0
        %3008 = vmatprep.subr.mxu0 0.0
        %3009 = vmatpush1.msra.mxu0 %v1648
        %3010 = vmatprep.subr.mxu0 0.0
        %3011 = vmatpush1.msra.mxu0 %v1653
        %3012 = vmatprep.subr.mxu0 0.0
        %3013 = vmatpush1.msra.mxu0 0.0
        %3014 = vmatprep.subr.mxu0 0.0
        %3015 = vmatpush1.msra.mxu0 0.0
        %3016 = vmatprep.subr.mxu0 0.0
        %3017 = vmatpush1.msra.mxu0 0.0
        %3018 = vmatprep.subr.mxu0 0.0
        %3019 = vmatpush1.msra.mxu0 0.0
        %3020 = vmatprep.subr.mxu0 0.0
        %3021 = vmatpush1.msra.mxu0 0.0
        %3022 = vmatprep.subr.mxu0 0.0
        %3023 = vmatpush1.msra.mxu0 0.0
        %3024 = vmatprep.subr.mxu0 0.0
        %3025 = vmatpush1.msra.mxu0 0.0
        %3026 = vmatprep.subr.mxu0 0.0
        %3027 = vmatpush1.msra.mxu0 0.0
        %3028 = vmatprep.subr.mxu0 0.0
        %3029 = vmatpush1.msra.mxu0 0.0
        %3030 = vmatprep.subr.mxu0 0.0
        %3031 = vmatpush1.msra.mxu0 0.0
        %3032 = vmatprep.subr.mxu0 0.0
        %3033 = vmatpush1.msra.mxu0 0.0
        %3034 = vmatprep.subr.mxu0 0.0
        %3035 = vmatpush1.msra.mxu0 0.0
        %3036 = vmatprep.subr.mxu0 0.0
        %3037 = vmatpush1.msra.mxu0 0.0
        %3038 = vmatprep.subr.mxu0 0.0
        %3039 = vmatpush1.msra.mxu0 0.0
        %3040 = vmatprep.subr.mxu0 0.0
        %3041 = vmatpush1.msra.mxu0 0.0
        %3042 = vmatprep.subr.mxu0 0.0
        %3043 = vmatpush1.msra.mxu0 0.0
        %3044 = vmatprep.subr.mxu0 0.0
        %3045 = vmatpush1.msra.mxu0 0.0
        %3046 = vmatprep.subr.mxu0 0.0
        %3047 = vmatpush1.msra.mxu0 0.0
        %3048 = vmatprep.subr.mxu0 0.0
        %3049 = vmatpush1.msra.mxu0 0.0
        %3050 = vmatprep.subr.mxu0 0.0
        %3051 = vmatpush1.msra.mxu0 0.0
        %3052 = vmatprep.subr.mxu0 0.0
        %3053 = vmatpush1.msra.mxu0 0.0
        %3054 = vmatprep.subr.mxu0 0.0
        %3055 = vmatpush1.msra.mxu0 0.0
        %3056 = vmatprep.subr.mxu0 0.0
        %3057 = vmatpush1.msra.mxu0 0.0
        %3058 = vmatprep.subr.mxu0 0.0
        %3059 = vmatpush1.msra.mxu0 0.0
        %3060 = vmatprep.subr.mxu0 0.0
        %3061 = vmatpush1.msra.mxu0 0.0
        %3062 = vmatprep.subr.mxu0 0.0
        %3063 = vmatpush1.msra.mxu0 0.0
        %3064 = vmatprep.subr.mxu0 0.0
        %3065 = vmatpush1.msra.mxu0 0.0
        %3066 = vmatprep.subr.mxu0 0.0
        %3067 = vmatpush1.msra.mxu0 0.0
        %3068 = vmatprep.subr.mxu0 0.0
        %3069 = vmatpush1.msra.mxu0 0.0
        %3070 = vmatprep.subr.mxu0 0.0
        %3071 = vmatpush1.msra.mxu0 0.0
        %3072 = vmatprep.mubr.f32.mxu0 0.0
        %3073 = vmatmul.mubr.f32.gmra.mrb[0].mxu0 %v3003
        %v3074 = vpop.f32.mrb[0].mxu0
        %v3075 = vadd.f32 0.0, %v3074
        %v3076 = vpop.f32.mrb[0].mxu0
        %3077 = vmatprep.mubr.f32.mxu0 0.0
        %3078 = vmatmul.mubr.f32.gmra.mrb[0].mxu0 %v3006
        %v3079 = vpop.f32.mrb[0].mxu0
        %v3080 = vadd.f32 0.0, %v3079
        %v3081 = vpop.f32.mrb[0].mxu0
        %3082 = vdwg.mxu0
        %v3084 = vsel %vm2744, %v2898, 0
        %v3087 = vsel %vm2744, %v2900, 0
        %3089 = vmatprep.subr.mxu0 0.0
        %3090 = vmatpush1.msra.mxu0 %v1658
        %3091 = vmatprep.subr.mxu0 0.0
        %3092 = vmatpush1.msra.mxu0 %v1663
        %3093 = vmatprep.subr.mxu0 0.0
        %3094 = vmatpush1.msra.mxu0 0.0
        %3095 = vmatprep.subr.mxu0 0.0
        %3096 = vmatpush1.msra.mxu0 0.0
        %3097 = vmatprep.subr.mxu0 0.0
        %3098 = vmatpush1.msra.mxu0 0.0
        %3099 = vmatprep.subr.mxu0 0.0
        %3100 = vmatpush1.msra.mxu0 0.0
        %3101 = vmatprep.subr.mxu0 0.0
        %3102 = vmatpush1.msra.mxu0 0.0
        %3103 = vmatprep.subr.mxu0 0.0
        %3104 = vmatpush1.msra.mxu0 0.0
        %3105 = vmatprep.subr.mxu0 0.0
        %3106 = vmatpush1.msra.mxu0 0.0
        %3107 = vmatprep.subr.mxu0 0.0
        %3108 = vmatpush1.msra.mxu0 0.0
        %3109 = vmatprep.subr.mxu0 0.0
        %3110 = vmatpush1.msra.mxu0 0.0
        %3111 = vmatprep.subr.mxu0 0.0
        %3112 = vmatpush1.msra.mxu0 0.0
        %3113 = vmatprep.subr.mxu0 0.0
        %3114 = vmatpush1.msra.mxu0 0.0
        %3115 = vmatprep.subr.mxu0 0.0
        %3116 = vmatpush1.msra.mxu0 0.0
        %3117 = vmatprep.subr.mxu0 0.0
        %3118 = vmatpush1.msra.mxu0 0.0
        %3119 = vmatprep.subr.mxu0 0.0
        %3120 = vmatpush1.msra.mxu0 0.0
        %3121 = vmatprep.subr.mxu0 0.0
        %3122 = vmatpush1.msra.mxu0 0.0
        %3123 = vmatprep.subr.mxu0 0.0
        %3124 = vmatpush1.msra.mxu0 0.0
        %3125 = vmatprep.subr.mxu0 0.0
        %3126 = vmatpush1.msra.mxu0 0.0
        %3127 = vmatprep.subr.mxu0 0.0
        %3128 = vmatpush1.msra.mxu0 0.0
        %3129 = vmatprep.subr.mxu0 0.0
        %3130 = vmatpush1.msra.mxu0 0.0
        %3131 = vmatprep.subr.mxu0 0.0
        %3132 = vmatpush1.msra.mxu0 0.0
        %3133 = vmatprep.subr.mxu0 0.0
        %3134 = vmatpush1.msra.mxu0 0.0
        %3135 = vmatprep.subr.mxu0 0.0
        %3136 = vmatpush1.msra.mxu0 0.0
        %3137 = vmatprep.subr.mxu0 0.0
        %3138 = vmatpush1.msra.mxu0 0.0
        %3139 = vmatprep.subr.mxu0 0.0
        %3140 = vmatpush1.msra.mxu0 0.0
        %3141 = vmatprep.subr.mxu0 0.0
        %3142 = vmatpush1.msra.mxu0 0.0
        %3143 = vmatprep.subr.mxu0 0.0
        %3144 = vmatpush1.msra.mxu0 0.0
        %3145 = vmatprep.subr.mxu0 0.0
        %3146 = vmatpush1.msra.mxu0 0.0
        %3147 = vmatprep.subr.mxu0 0.0
        %3148 = vmatpush1.msra.mxu0 0.0
        %3149 = vmatprep.subr.mxu0 0.0
        %3150 = vmatpush1.msra.mxu0 0.0
        %3151 = vmatprep.subr.mxu0 0.0
        %3152 = vmatpush1.msra.mxu0 0.0
        %3153 = vmatprep.mubr.f32.mxu0 0.0
        %3154 = vmatmul.mubr.f32.gmra.mrb[0].mxu0 %v3084
        %v3155 = vpop.f32.mrb[0].mxu0
        %v3156 = vadd.f32 0.0, %v3155
        %v3157 = vpop.f32.mrb[0].mxu0
        %3158 = vmatprep.mubr.f32.mxu0 0.0
        %3159 = vmatmul.mubr.f32.gmra.mrb[0].mxu0 %v3087
        %v3160 = vpop.f32.mrb[0].mxu0
        %v3161 = vadd.f32 0.0, %v3160
        %v3162 = vpop.f32.mrb[0].mxu0
        %3163 = vdwg.mxu0
        %v3165 = vsel %vm2744, %v2902, 0
        %v3168 = vsel %vm2744, %v2904, 0
        %3170 = vmatprep.subr.mxu0 0.0
        %3171 = vmatpush1.msra.mxu0 %v1668
        %3172 = vmatprep.subr.mxu0 0.0
        %3173 = vmatpush1.msra.mxu0 %v1673
        %3174 = vmatprep.subr.mxu0 0.0
        %3175 = vmatpush1.msra.mxu0 0.0
        %3176 = vmatprep.subr.mxu0 0.0
        %3177 = vmatpush1.msra.mxu0 0.0
        %3178 = vmatprep.subr.mxu0 0.0
        %3179 = vmatpush1.msra.mxu0 0.0
        %3180 = vmatprep.subr.mxu0 0.0
        %3181 = vmatpush1.msra.mxu0 0.0
        %3182 = vmatprep.subr.mxu0 0.0
        %3183 = vmatpush1.msra.mxu0 0.0
        %3184 = vmatprep.subr.mxu0 0.0
        %3185 = vmatpush1.msra.mxu0 0.0
        %3186 = vmatprep.subr.mxu0 0.0
        %3187 = vmatpush1.msra.mxu0 0.0
        %3188 = vmatprep.subr.mxu0 0.0
        %3189 = vmatpush1.msra.mxu0 0.0
        %3190 = vmatprep.subr.mxu0 0.0
        %3191 = vmatpush1.msra.mxu0 0.0
        %3192 = vmatprep.subr.mxu0 0.0
        %3193 = vmatpush1.msra.mxu0 0.0
        %3194 = vmatprep.subr.mxu0 0.0
        %3195 = vmatpush1.msra.mxu0 0.0
        %3196 = vmatprep.subr.mxu0 0.0
        %3197 = vmatpush1.msra.mxu0 0.0
        %3198 = vmatprep.subr.mxu0 0.0
        %3199 = vmatpush1.msra.mxu0 0.0
        %3200 = vmatprep.subr.mxu0 0.0
        %3201 = vmatpush1.msra.mxu0 0.0
        %3202 = vmatprep.subr.mxu0 0.0
        %3203 = vmatpush1.msra.mxu0 0.0
        %3204 = vmatprep.subr.mxu0 0.0
        %3205 = vmatpush1.msra.mxu0 0.0
        %3206 = vmatprep.subr.mxu0 0.0
        %3207 = vmatpush1.msra.mxu0 0.0
        %3208 = vmatprep.subr.mxu0 0.0
        %3209 = vmatpush1.msra.mxu0 0.0
        %3210 = vmatprep.subr.mxu0 0.0
        %3211 = vmatpush1.msra.mxu0 0.0
        %3212 = vmatprep.subr.mxu0 0.0
        %3213 = vmatpush1.msra.mxu0 0.0
        %3214 = vmatprep.subr.mxu0 0.0
        %3215 = vmatpush1.msra.mxu0 0.0
        %3216 = vmatprep.subr.mxu0 0.0
        %3217 = vmatpush1.msra.mxu0 0.0
        %3218 = vmatprep.subr.mxu0 0.0
        %3219 = vmatpush1.msra.mxu0 0.0
        %3220 = vmatprep.subr.mxu0 0.0
        %3221 = vmatpush1.msra.mxu0 0.0
        %3222 = vmatprep.subr.mxu0 0.0
        %3223 = vmatpush1.msra.mxu0 0.0
        %3224 = vmatprep.subr.mxu0 0.0
        %3225 = vmatpush1.msra.mxu0 0.0
        %3226 = vmatprep.subr.mxu0 0.0
        %3227 = vmatpush1.msra.mxu0 0.0
        %3228 = vmatprep.subr.mxu0 0.0
        %3229 = vmatpush1.msra.mxu0 0.0
        %3230 = vmatprep.subr.mxu0 0.0
        %3231 = vmatpush1.msra.mxu0 0.0
        %3232 = vmatprep.subr.mxu0 0.0
        %3233 = vmatpush1.msra.mxu0 0.0
        %3234 = vmatprep.mubr.f32.mxu0 0.0
        %3235 = vmatmul.mubr.f32.gmra.mrb[0].mxu0 %v3165
        %v3236 = vpop.f32.mrb[0].mxu0
        %v3237 = vadd.f32 0.0, %v3236
        %v3238 = vpop.f32.mrb[0].mxu0
        %3239 = vmatprep.mubr.f32.mxu0 0.0
        %3240 = vmatmul.mubr.f32.gmra.mrb[0].mxu0 %v3168
        %v3241 = vpop.f32.mrb[0].mxu0
        %v3242 = vadd.f32 0.0, %v3241
        %v3243 = vpop.f32.mrb[0].mxu0
        %3244 = vdwg.mxu0
        %v3246 = vsel %vm2744, %v2906, 0
        %v3249 = vsel %vm2744, %v2908, 0
        %3251 = vmatprep.subr.mxu0 0.0
        %3252 = vmatpush1.msra.mxu0 %v1678
        %3253 = vmatprep.subr.mxu0 0.0
        %3254 = vmatpush1.msra.mxu0 %v1683
        %3255 = vmatprep.subr.mxu0 0.0
        %3256 = vmatpush1.msra.mxu0 0.0
        %3257 = vmatprep.subr.mxu0 0.0
        %3258 = vmatpush1.msra.mxu0 0.0
        %3259 = vmatprep.subr.mxu0 0.0
        %3260 = vmatpush1.msra.mxu0 0.0
        %3261 = vmatprep.subr.mxu0 0.0
        %3262 = vmatpush1.msra.mxu0 0.0
        %3263 = vmatprep.subr.mxu0 0.0
        %3264 = vmatpush1.msra.mxu0 0.0
        %3265 = vmatprep.subr.mxu0 0.0
        %3266 = vmatpush1.msra.mxu0 0.0
        %3267 = vmatprep.subr.mxu0 0.0
        %3268 = vmatpush1.msra.mxu0 0.0
        %3269 = vmatprep.subr.mxu0 0.0
        %3270 = vmatpush1.msra.mxu0 0.0
        %3271 = vmatprep.subr.mxu0 0.0
        %3272 = vmatpush1.msra.mxu0 0.0
        %3273 = vmatprep.subr.mxu0 0.0
        %3274 = vmatpush1.msra.mxu0 0.0
        %3275 = vmatprep.subr.mxu0 0.0
        %3276 = vmatpush1.msra.mxu0 0.0
        %3277 = vmatprep.subr.mxu0 0.0
        %3278 = vmatpush1.msra.mxu0 0.0
        %3279 = vmatprep.subr.mxu0 0.0
        %3280 = vmatpush1.msra.mxu0 0.0
        %3281 = vmatprep.subr.mxu0 0.0
        %3282 = vmatpush1.msra.mxu0 0.0
        %3283 = vmatprep.subr.mxu0 0.0
        %3284 = vmatpush1.msra.mxu0 0.0
        %3285 = vmatprep.subr.mxu0 0.0
        %3286 = vmatpush1.msra.mxu0 0.0
        %3287 = vmatprep.subr.mxu0 0.0
        %3288 = vmatpush1.msra.mxu0 0.0
        %3289 = vmatprep.subr.mxu0 0.0
        %3290 = vmatpush1.msra.mxu0 0.0
        %3291 = vmatprep.subr.mxu0 0.0
        %3292 = vmatpush1.msra.mxu0 0.0
        %3293 = vmatprep.subr.mxu0 0.0
        %3294 = vmatpush1.msra.mxu0 0.0
        %3295 = vmatprep.subr.mxu0 0.0
        %3296 = vmatpush1.msra.mxu0 0.0
        %3297 = vmatprep.subr.mxu0 0.0
        %3298 = vmatpush1.msra.mxu0 0.0
        %3299 = vmatprep.subr.mxu0 0.0
        %3300 = vmatpush1.msra.mxu0 0.0
        %3301 = vmatprep.subr.mxu0 0.0
        %3302 = vmatpush1.msra.mxu0 0.0
        %3303 = vmatprep.subr.mxu0 0.0
        %3304 = vmatpush1.msra.mxu0 0.0
        %3305 = vmatprep.subr.mxu0 0.0
        %3306 = vmatpush1.msra.mxu0 0.0
        %3307 = vmatprep.subr.mxu0 0.0
        %3308 = vmatpush1.msra.mxu0 0.0
        %3309 = vmatprep.subr.mxu0 0.0
        %3310 = vmatpush1.msra.mxu0 0.0
        %3311 = vmatprep.subr.mxu0 0.0
        %3312 = vmatpush1.msra.mxu0 0.0
        %3313 = vmatprep.subr.mxu0 0.0
        %3314 = vmatpush1.msra.mxu0 0.0
        %3315 = vmatprep.mubr.f32.mxu0 0.0
        %3316 = vmatmul.mubr.f32.gmra.mrb[0].mxu0 %v3246
        %v3317 = vpop.f32.mrb[0].mxu0
        %v3318 = vadd.f32 0.0, %v3317
        %v3319 = vpop.f32.mrb[0].mxu0
        %3320 = vmatprep.mubr.f32.mxu0 0.0
        %3321 = vmatmul.mubr.f32.gmra.mrb[0].mxu0 %v3249
        %v3322 = vpop.f32.mrb[0].mxu0
        %v3323 = vadd.f32 0.0, %v3322
        %v3324 = vpop.f32.mrb[0].mxu0
        %3325 = vdwg.mxu0
        %v3327 = vsel %vm2744, %v2910, 0
        %v3330 = vsel %vm2744, %v2912, 0
        %3332 = vmatprep.subr.mxu0 0.0
        %3333 = vmatpush1.msra.mxu0 %v1688
        %3334 = vmatprep.subr.mxu0 0.0
        %3335 = vmatpush1.msra.mxu0 %v1693
        %3336 = vmatprep.subr.mxu0 0.0
        %3337 = vmatpush1.msra.mxu0 0.0
        %3338 = vmatprep.subr.mxu0 0.0
        %3339 = vmatpush1.msra.mxu0 0.0
        %3340 = vmatprep.subr.mxu0 0.0
        %3341 = vmatpush1.msra.mxu0 0.0
        %3342 = vmatprep.subr.mxu0 0.0
        %3343 = vmatpush1.msra.mxu0 0.0
        %3344 = vmatprep.subr.mxu0 0.0
        %3345 = vmatpush1.msra.mxu0 0.0
        %3346 = vmatprep.subr.mxu0 0.0
        %3347 = vmatpush1.msra.mxu0 0.0
        %3348 = vmatprep.subr.mxu0 0.0
        %3349 = vmatpush1.msra.mxu0 0.0
        %3350 = vmatprep.subr.mxu0 0.0
        %3351 = vmatpush1.msra.mxu0 0.0
        %3352 = vmatprep.subr.mxu0 0.0
        %3353 = vmatpush1.msra.mxu0 0.0
        %3354 = vmatprep.subr.mxu0 0.0
        %3355 = vmatpush1.msra.mxu0 0.0
        %3356 = vmatprep.subr.mxu0 0.0
        %3357 = vmatpush1.msra.mxu0 0.0
        %3358 = vmatprep.subr.mxu0 0.0
        %3359 = vmatpush1.msra.mxu0 0.0
        %3360 = vmatprep.subr.mxu0 0.0
        %3361 = vmatpush1.msra.mxu0 0.0
        %3362 = vmatprep.subr.mxu0 0.0
        %3363 = vmatpush1.msra.mxu0 0.0
        %3364 = vmatprep.subr.mxu0 0.0
        %3365 = vmatpush1.msra.mxu0 0.0
        %3366 = vmatprep.subr.mxu0 0.0
        %3367 = vmatpush1.msra.mxu0 0.0
        %3368 = vmatprep.subr.mxu0 0.0
        %3369 = vmatpush1.msra.mxu0 0.0
        %3370 = vmatprep.subr.mxu0 0.0
        %3371 = vmatpush1.msra.mxu0 0.0
        %3372 = vmatprep.subr.mxu0 0.0
        %3373 = vmatpush1.msra.mxu0 0.0
        %3374 = vmatprep.subr.mxu0 0.0
        %3375 = vmatpush1.msra.mxu0 0.0
        %3376 = vmatprep.subr.mxu0 0.0
        %3377 = vmatpush1.msra.mxu0 0.0
        %3378 = vmatprep.subr.mxu0 0.0
        %3379 = vmatpush1.msra.mxu0 0.0
        %3380 = vmatprep.subr.mxu0 0.0
        %3381 = vmatpush1.msra.mxu0 0.0
        %3382 = vmatprep.subr.mxu0 0.0
        %3383 = vmatpush1.msra.mxu0 0.0
        %3384 = vmatprep.subr.mxu0 0.0
        %3385 = vmatpush1.msra.mxu0 0.0
        %3386 = vmatprep.subr.mxu0 0.0
        %3387 = vmatpush1.msra.mxu0 0.0
        %3388 = vmatprep.subr.mxu0 0.0
        %3389 = vmatpush1.msra.mxu0 0.0
        %3390 = vmatprep.subr.mxu0 0.0
        %3391 = vmatpush1.msra.mxu0 0.0
        %3392 = vmatprep.subr.mxu0 0.0
        %3393 = vmatpush1.msra.mxu0 0.0
        %3394 = vmatprep.subr.mxu0 0.0
        %3395 = vmatpush1.msra.mxu0 0.0
        %3396 = vmatprep.mubr.f32.mxu0 0.0
        %3397 = vmatmul.mubr.f32.gmra.mrb[0].mxu0 %v3327
        %v3398 = vpop.f32.mrb[0].mxu0
        %v3399 = vadd.f32 0.0, %v3398
        %v3400 = vpop.f32.mrb[0].mxu0
        %3401 = vmatprep.mubr.f32.mxu0 0.0
        %3402 = vmatmul.mubr.f32.gmra.mrb[0].mxu0 %v3330
        %v3403 = vpop.f32.mrb[0].mxu0
        %v3404 = vadd.f32 0.0, %v3403
        %v3405 = vpop.f32.mrb[0].mxu0
        %3406 = vdwg.mxu0
        %v3408 = vsel %vm2744, %v2914, 0
        %v3411 = vsel %vm2744, %v2916, 0
        %3413 = vmatprep.subr.mxu0 0.0
        %3414 = vmatpush1.msra.mxu0 %v1698
        %3415 = vmatprep.subr.mxu0 0.0
        %3416 = vmatpush1.msra.mxu0 %v1703
        %3417 = vmatprep.subr.mxu0 0.0
        %3418 = vmatpush1.msra.mxu0 0.0
        %3419 = vmatprep.subr.mxu0 0.0
        %3420 = vmatpush1.msra.mxu0 0.0
        %3421 = vmatprep.subr.mxu0 0.0
        %3422 = vmatpush1.msra.mxu0 0.0
        %3423 = vmatprep.subr.mxu0 0.0
        %3424 = vmatpush1.msra.mxu0 0.0
        %3425 = vmatprep.subr.mxu0 0.0
        %3426 = vmatpush1.msra.mxu0 0.0
        %3427 = vmatprep.subr.mxu0 0.0
        %3428 = vmatpush1.msra.mxu0 0.0
        %3429 = vmatprep.subr.mxu0 0.0
        %3430 = vmatpush1.msra.mxu0 0.0
        %3431 = vmatprep.subr.mxu0 0.0
        %3432 = vmatpush1.msra.mxu0 0.0
        %3433 = vmatprep.subr.mxu0 0.0
        %3434 = vmatpush1.msra.mxu0 0.0
        %3435 = vmatprep.subr.mxu0 0.0
        %3436 = vmatpush1.msra.mxu0 0.0
        %3437 = vmatprep.subr.mxu0 0.0
        %3438 = vmatpush1.msra.mxu0 0.0
        %3439 = vmatprep.subr.mxu0 0.0
        %3440 = vmatpush1.msra.mxu0 0.0
        %3441 = vmatprep.subr.mxu0 0.0
        %3442 = vmatpush1.msra.mxu0 0.0
        %3443 = vmatprep.subr.mxu0 0.0
        %3444 = vmatpush1.msra.mxu0 0.0
        %3445 = vmatprep.subr.mxu0 0.0
        %3446 = vmatpush1.msra.mxu0 0.0
        %3447 = vmatprep.subr.mxu0 0.0
        %3448 = vmatpush1.msra.mxu0 0.0
        %3449 = vmatprep.subr.mxu0 0.0
        %3450 = vmatpush1.msra.mxu0 0.0
        %3451 = vmatprep.subr.mxu0 0.0
        %3452 = vmatpush1.msra.mxu0 0.0
        %3453 = vmatprep.subr.mxu0 0.0
        %3454 = vmatpush1.msra.mxu0 0.0
        %3455 = vmatprep.subr.mxu0 0.0
        %3456 = vmatpush1.msra.mxu0 0.0
        %3457 = vmatprep.subr.mxu0 0.0
        %3458 = vmatpush1.msra.mxu0 0.0
        %3459 = vmatprep.subr.mxu0 0.0
        %3460 = vmatpush1.msra.mxu0 0.0
        %3461 = vmatprep.subr.mxu0 0.0
        %3462 = vmatpush1.msra.mxu0 0.0
        %3463 = vmatprep.subr.mxu0 0.0
        %3464 = vmatpush1.msra.mxu0 0.0
        %3465 = vmatprep.subr.mxu0 0.0
        %3466 = vmatpush1.msra.mxu0 0.0
        %3467 = vmatprep.subr.mxu0 0.0
        %3468 = vmatpush1.msra.mxu0 0.0
        %3469 = vmatprep.subr.mxu0 0.0
        %3470 = vmatpush1.msra.mxu0 0.0
        %3471 = vmatprep.subr.mxu0 0.0
        %3472 = vmatpush1.msra.mxu0 0.0
        %3473 = vmatprep.subr.mxu0 0.0
        %3474 = vmatpush1.msra.mxu0 0.0
        %3475 = vmatprep.subr.mxu0 0.0
        %3476 = vmatpush1.msra.mxu0 0.0
        %3477 = vmatprep.mubr.f32.mxu0 0.0
        %3478 = vmatmul.mubr.f32.gmra.mrb[0].mxu0 %v3408
        %v3479 = vpop.f32.mrb[0].mxu0
        %v3480 = vadd.f32 0.0, %v3479
        %v3481 = vpop.f32.mrb[0].mxu0
        %3482 = vmatprep.mubr.f32.mxu0 0.0
        %3483 = vmatmul.mubr.f32.gmra.mrb[0].mxu0 %v3411
        %v3484 = vpop.f32.mrb[0].mxu0
        %v3485 = vadd.f32 0.0, %v3484
        %v3486 = vpop.f32.mrb[0].mxu0
        %3487 = vdwg.mxu0
        %v3489 = vsel %vm2744, %v2918, 0
        %v3492 = vsel %vm2744, %v2920, 0
        %3494 = vmatprep.subr.mxu0 0.0
        %3495 = vmatpush1.msra.mxu0 %v1708
        %3496 = vmatprep.subr.mxu0 0.0
        %3497 = vmatpush1.msra.mxu0 %v1713
        %3498 = vmatprep.subr.mxu0 0.0
        %3499 = vmatpush1.msra.mxu0 0.0
        %3500 = vmatprep.subr.mxu0 0.0
        %3501 = vmatpush1.msra.mxu0 0.0
        %3502 = vmatprep.subr.mxu0 0.0
        %3503 = vmatpush1.msra.mxu0 0.0
        %3504 = vmatprep.subr.mxu0 0.0
        %3505 = vmatpush1.msra.mxu0 0.0
        %3506 = vmatprep.subr.mxu0 0.0
        %3507 = vmatpush1.msra.mxu0 0.0
        %3508 = vmatprep.subr.mxu0 0.0
        %3509 = vmatpush1.msra.mxu0 0.0
        %3510 = vmatprep.subr.mxu0 0.0
        %3511 = vmatpush1.msra.mxu0 0.0
        %3512 = vmatprep.subr.mxu0 0.0
        %3513 = vmatpush1.msra.mxu0 0.0
        %3514 = vmatprep.subr.mxu0 0.0
        %3515 = vmatpush1.msra.mxu0 0.0
        %3516 = vmatprep.subr.mxu0 0.0
        %3517 = vmatpush1.msra.mxu0 0.0
        %3518 = vmatprep.subr.mxu0 0.0
        %3519 = vmatpush1.msra.mxu0 0.0
        %3520 = vmatprep.subr.mxu0 0.0
        %3521 = vmatpush1.msra.mxu0 0.0
        %3522 = vmatprep.subr.mxu0 0.0
        %3523 = vmatpush1.msra.mxu0 0.0
        %3524 = vmatprep.subr.mxu0 0.0
        %3525 = vmatpush1.msra.mxu0 0.0
        %3526 = vmatprep.subr.mxu0 0.0
        %3527 = vmatpush1.msra.mxu0 0.0
        %3528 = vmatprep.subr.mxu0 0.0
        %3529 = vmatpush1.msra.mxu0 0.0
        %3530 = vmatprep.subr.mxu0 0.0
        %3531 = vmatpush1.msra.mxu0 0.0
        %3532 = vmatprep.subr.mxu0 0.0
        %3533 = vmatpush1.msra.mxu0 0.0
        %3534 = vmatprep.subr.mxu0 0.0
        %3535 = vmatpush1.msra.mxu0 0.0
        %3536 = vmatprep.subr.mxu0 0.0
        %3537 = vmatpush1.msra.mxu0 0.0
        %3538 = vmatprep.subr.mxu0 0.0
        %3539 = vmatpush1.msra.mxu0 0.0
        %3540 = vmatprep.subr.mxu0 0.0
        %3541 = vmatpush1.msra.mxu0 0.0
        %3542 = vmatprep.subr.mxu0 0.0
        %3543 = vmatpush1.msra.mxu0 0.0
        %3544 = vmatprep.subr.mxu0 0.0
        %3545 = vmatpush1.msra.mxu0 0.0
        %3546 = vmatprep.subr.mxu0 0.0
        %3547 = vmatpush1.msra.mxu0 0.0
        %3548 = vmatprep.subr.mxu0 0.0
        %3549 = vmatpush1.msra.mxu0 0.0
        %3550 = vmatprep.subr.mxu0 0.0
        %3551 = vmatpush1.msra.mxu0 0.0
        %3552 = vmatprep.subr.mxu0 0.0
        %3553 = vmatpush1.msra.mxu0 0.0
        %3554 = vmatprep.subr.mxu0 0.0
        %3555 = vmatpush1.msra.mxu0 0.0
        %3556 = vmatprep.subr.mxu0 0.0
        %3557 = vmatpush1.msra.mxu0 0.0
        %3558 = vmatprep.mubr.f32.mxu0 0.0
        %3559 = vmatmul.mubr.f32.gmra.mrb[0].mxu0 %v3489
        %v3560 = vpop.f32.mrb[0].mxu0
        %v3561 = vadd.f32 0.0, %v3560
        %v3562 = vpop.f32.mrb[0].mxu0
        %3563 = vmatprep.mubr.f32.mxu0 0.0
        %3564 = vmatmul.mubr.f32.gmra.mrb[0].mxu0 %v3492
        %v3565 = vpop.f32.mrb[0].mxu0
        %v3566 = vadd.f32 0.0, %v3565
        %v3567 = vpop.f32.mrb[0].mxu0
        %3568 = vdwg.mxu0
        %3569 = vxpose.xlu0.b32.start [1/16] %v2728, 128
        %3570 = vxpose.xlu0.b32.cont [2/16] %v2729, 128
        %3571 = vxpose.xlu0.b32.cont [3/16] 0.0, 128
        %3572 = vxpose.xlu0.b32.cont [4/16] 0.0, 128
        %3573 = vxpose.xlu0.b32.cont [5/16] 0.0, 128
        %3574 = vxpose.xlu0.b32.cont [6/16] 0.0, 128
        %3575 = vxpose.xlu0.b32.cont [7/16] 0.0, 128
        %3576 = vxpose.xlu0.b32.cont [8/16] 0.0, 128
        %3577 = vxpose.xlu0.b32.cont [9/16] 0.0, 128
        %3578 = vxpose.xlu0.b32.cont [10/16] 0.0, 128
        %3579 = vxpose.xlu0.b32.cont [11/16] 0.0, 128
        %3580 = vxpose.xlu0.b32.cont [12/16] 0.0, 128
        %3581 = vxpose.xlu0.b32.cont [13/16] 0.0, 128
        %3582 = vxpose.xlu0.b32.cont [14/16] 0.0, 128
        %3583 = vxpose.xlu0.b32.cont [15/16] 0.0, 128
        %3584 = vxpose.xlu0.b32.end [16/16] 0.0, 128
        %v3585 = vpop.trf.xlu0
        %v3586 = vpop.trf.xlu0
        %v3587 = vpop.trf.xlu0
        %v3588 = vpop.trf.xlu0
        %v3589 = vpop.trf.xlu0
        %v3590 = vpop.trf.xlu0
        %v3591 = vpop.trf.xlu0
        %v3592 = vpop.trf.xlu0
        %v3593 = vpop.trf.xlu0
        %v3594 = vpop.trf.xlu0
        %v3595 = vpop.trf.xlu0
        %v3596 = vpop.trf.xlu0
        %v3597 = vpop.trf.xlu0
        %v3598 = vpop.trf.xlu0
        %v3599 = vpop.trf.xlu0
        %v3600 = vpop.trf.xlu0
        %3601 = vxpose.xlu0.b32.start [1/16] %v2730, 128
        %3602 = vxpose.xlu0.b32.cont [2/16] %v2731, 128
        %3603 = vxpose.xlu0.b32.cont [3/16] 0.0, 128
        %3604 = vxpose.xlu0.b32.cont [4/16] 0.0, 128
        %3605 = vxpose.xlu0.b32.cont [5/16] 0.0, 128
        %3606 = vxpose.xlu0.b32.cont [6/16] 0.0, 128
        %3607 = vxpose.xlu0.b32.cont [7/16] 0.0, 128
        %3608 = vxpose.xlu0.b32.cont [8/16] 0.0, 128
        %3609 = vxpose.xlu0.b32.cont [9/16] 0.0, 128
        %3610 = vxpose.xlu0.b32.cont [10/16] 0.0, 128
        %3611 = vxpose.xlu0.b32.cont [11/16] 0.0, 128
        %3612 = vxpose.xlu0.b32.cont [12/16] 0.0, 128
        %3613 = vxpose.xlu0.b32.cont [13/16] 0.0, 128
        %3614 = vxpose.xlu0.b32.cont [14/16] 0.0, 128
        %3615 = vxpose.xlu0.b32.cont [15/16] 0.0, 128
        %3616 = vxpose.xlu0.b32.end [16/16] 0.0, 128
        %v3617 = vpop.trf.xlu0
        %v3618 = vpop.trf.xlu0
        %v3619 = vpop.trf.xlu0
        %v3620 = vpop.trf.xlu0
        %v3621 = vpop.trf.xlu0
        %v3622 = vpop.trf.xlu0
        %v3623 = vpop.trf.xlu0
        %v3624 = vpop.trf.xlu0
        %v3625 = vpop.trf.xlu0
        %v3626 = vpop.trf.xlu0
        %v3627 = vpop.trf.xlu0
        %v3628 = vpop.trf.xlu0
        %v3629 = vpop.trf.xlu0
        %v3630 = vpop.trf.xlu0
        %v3631 = vpop.trf.xlu0
        %v3632 = vpop.trf.xlu0
        %3633 = vxpose.xlu0.b32.start [1/16] %v2732, 128
        %3634 = vxpose.xlu0.b32.cont [2/16] %v2733, 128
        %3635 = vxpose.xlu0.b32.cont [3/16] 0.0, 128
        %3636 = vxpose.xlu0.b32.cont [4/16] 0.0, 128
        %3637 = vxpose.xlu0.b32.cont [5/16] 0.0, 128
        %3638 = vxpose.xlu0.b32.cont [6/16] 0.0, 128
        %3639 = vxpose.xlu0.b32.cont [7/16] 0.0, 128
        %3640 = vxpose.xlu0.b32.cont [8/16] 0.0, 128
        %3641 = vxpose.xlu0.b32.cont [9/16] 0.0, 128
        %3642 = vxpose.xlu0.b32.cont [10/16] 0.0, 128
        %3643 = vxpose.xlu0.b32.cont [11/16] 0.0, 128
        %3644 = vxpose.xlu0.b32.cont [12/16] 0.0, 128
        %3645 = vxpose.xlu0.b32.cont [13/16] 0.0, 128
        %3646 = vxpose.xlu0.b32.cont [14/16] 0.0, 128
        %3647 = vxpose.xlu0.b32.cont [15/16] 0.0, 128
        %3648 = vxpose.xlu0.b32.end [16/16] 0.0, 128
        %v3649 = vpop.trf.xlu0
        %v3650 = vpop.trf.xlu0
        %v3651 = vpop.trf.xlu0
        %v3652 = vpop.trf.xlu0
        %v3653 = vpop.trf.xlu0
        %v3654 = vpop.trf.xlu0
        %v3655 = vpop.trf.xlu0
        %v3656 = vpop.trf.xlu0
        %v3657 = vpop.trf.xlu0
        %v3658 = vpop.trf.xlu0
        %v3659 = vpop.trf.xlu0
        %v3660 = vpop.trf.xlu0
        %v3661 = vpop.trf.xlu0
        %v3662 = vpop.trf.xlu0
        %v3663 = vpop.trf.xlu0
        %v3664 = vpop.trf.xlu0
        %3665 = vxpose.xlu0.b32.start [1/16] %v2734, 128
        %3666 = vxpose.xlu0.b32.cont [2/16] %v2735, 128
        %3667 = vxpose.xlu0.b32.cont [3/16] 0.0, 128
        %3668 = vxpose.xlu0.b32.cont [4/16] 0.0, 128
        %3669 = vxpose.xlu0.b32.cont [5/16] 0.0, 128
        %3670 = vxpose.xlu0.b32.cont [6/16] 0.0, 128
        %3671 = vxpose.xlu0.b32.cont [7/16] 0.0, 128
        %3672 = vxpose.xlu0.b32.cont [8/16] 0.0, 128
        %3673 = vxpose.xlu0.b32.cont [9/16] 0.0, 128
        %3674 = vxpose.xlu0.b32.cont [10/16] 0.0, 128
        %3675 = vxpose.xlu0.b32.cont [11/16] 0.0, 128
        %3676 = vxpose.xlu0.b32.cont [12/16] 0.0, 128
        %3677 = vxpose.xlu0.b32.cont [13/16] 0.0, 128
        %3678 = vxpose.xlu0.b32.cont [14/16] 0.0, 128
        %3679 = vxpose.xlu0.b32.cont [15/16] 0.0, 128
        %3680 = vxpose.xlu0.b32.end [16/16] 0.0, 128
        %v3681 = vpop.trf.xlu0
        %v3682 = vpop.trf.xlu0
        %v3683 = vpop.trf.xlu0
        %v3684 = vpop.trf.xlu0
        %v3685 = vpop.trf.xlu0
        %v3686 = vpop.trf.xlu0
        %v3687 = vpop.trf.xlu0
        %v3688 = vpop.trf.xlu0
        %v3689 = vpop.trf.xlu0
        %v3690 = vpop.trf.xlu0
        %v3691 = vpop.trf.xlu0
        %v3692 = vpop.trf.xlu0
        %v3693 = vpop.trf.xlu0
        %v3694 = vpop.trf.xlu0
        %v3695 = vpop.trf.xlu0
        %v3696 = vpop.trf.xlu0
        %3697 = vxpose.xlu0.b32.start [1/16] %v2736, 128
        %3698 = vxpose.xlu0.b32.cont [2/16] %v2737, 128
        %3699 = vxpose.xlu0.b32.cont [3/16] 0.0, 128
        %3700 = vxpose.xlu0.b32.cont [4/16] 0.0, 128
        %3701 = vxpose.xlu0.b32.cont [5/16] 0.0, 128
        %3702 = vxpose.xlu0.b32.cont [6/16] 0.0, 128
        %3703 = vxpose.xlu0.b32.cont [7/16] 0.0, 128
        %3704 = vxpose.xlu0.b32.cont [8/16] 0.0, 128
        %3705 = vxpose.xlu0.b32.cont [9/16] 0.0, 128
        %3706 = vxpose.xlu0.b32.cont [10/16] 0.0, 128
        %3707 = vxpose.xlu0.b32.cont [11/16] 0.0, 128
        %3708 = vxpose.xlu0.b32.cont [12/16] 0.0, 128
        %3709 = vxpose.xlu0.b32.cont [13/16] 0.0, 128
        %3710 = vxpose.xlu0.b32.cont [14/16] 0.0, 128
        %3711 = vxpose.xlu0.b32.cont [15/16] 0.0, 128
        %3712 = vxpose.xlu0.b32.end [16/16] 0.0, 128
        %v3713 = vpop.trf.xlu0
        %v3714 = vpop.trf.xlu0
        %v3715 = vpop.trf.xlu0
        %v3716 = vpop.trf.xlu0
        %v3717 = vpop.trf.xlu0
        %v3718 = vpop.trf.xlu0
        %v3719 = vpop.trf.xlu0
        %v3720 = vpop.trf.xlu0
        %v3721 = vpop.trf.xlu0
        %v3722 = vpop.trf.xlu0
        %v3723 = vpop.trf.xlu0
        %v3724 = vpop.trf.xlu0
        %v3725 = vpop.trf.xlu0
        %v3726 = vpop.trf.xlu0
        %v3727 = vpop.trf.xlu0
        %v3728 = vpop.trf.xlu0
        %3729 = vxpose.xlu0.b32.start [1/16] %v2738, 128
        %3730 = vxpose.xlu0.b32.cont [2/16] %v2739, 128
        %3731 = vxpose.xlu0.b32.cont [3/16] 0.0, 128
        %3732 = vxpose.xlu0.b32.cont [4/16] 0.0, 128
        %3733 = vxpose.xlu0.b32.cont [5/16] 0.0, 128
        %3734 = vxpose.xlu0.b32.cont [6/16] 0.0, 128
        %3735 = vxpose.xlu0.b32.cont [7/16] 0.0, 128
        %3736 = vxpose.xlu0.b32.cont [8/16] 0.0, 128
        %3737 = vxpose.xlu0.b32.cont [9/16] 0.0, 128
        %3738 = vxpose.xlu0.b32.cont [10/16] 0.0, 128
        %3739 = vxpose.xlu0.b32.cont [11/16] 0.0, 128
        %3740 = vxpose.xlu0.b32.cont [12/16] 0.0, 128
        %3741 = vxpose.xlu0.b32.cont [13/16] 0.0, 128
        %3742 = vxpose.xlu0.b32.cont [14/16] 0.0, 128
        %3743 = vxpose.xlu0.b32.cont [15/16] 0.0, 128
        %3744 = vxpose.xlu0.b32.end [16/16] 0.0, 128
        %v3745 = vpop.trf.xlu0
        %v3746 = vpop.trf.xlu0
        %v3747 = vpop.trf.xlu0
        %v3748 = vpop.trf.xlu0
        %v3749 = vpop.trf.xlu0
        %v3750 = vpop.trf.xlu0
        %v3751 = vpop.trf.xlu0
        %v3752 = vpop.trf.xlu0
        %v3753 = vpop.trf.xlu0
        %v3754 = vpop.trf.xlu0
        %v3755 = vpop.trf.xlu0
        %v3756 = vpop.trf.xlu0
        %v3757 = vpop.trf.xlu0
        %v3758 = vpop.trf.xlu0
        %v3759 = vpop.trf.xlu0
        %v3760 = vpop.trf.xlu0
        %3761 = vxpose.xlu0.b32.start [1/16] %v2740, 128
        %3762 = vxpose.xlu0.b32.cont [2/16] %v2741, 128
        %3763 = vxpose.xlu0.b32.cont [3/16] 0.0, 128
        %3764 = vxpose.xlu0.b32.cont [4/16] 0.0, 128
        %3765 = vxpose.xlu0.b32.cont [5/16] 0.0, 128
        %3766 = vxpose.xlu0.b32.cont [6/16] 0.0, 128
        %3767 = vxpose.xlu0.b32.cont [7/16] 0.0, 128
        %3768 = vxpose.xlu0.b32.cont [8/16] 0.0, 128
        %3769 = vxpose.xlu0.b32.cont [9/16] 0.0, 128
        %3770 = vxpose.xlu0.b32.cont [10/16] 0.0, 128
        %3771 = vxpose.xlu0.b32.cont [11/16] 0.0, 128
        %3772 = vxpose.xlu0.b32.cont [12/16] 0.0, 128
        %3773 = vxpose.xlu0.b32.cont [13/16] 0.0, 128
        %3774 = vxpose.xlu0.b32.cont [14/16] 0.0, 128
        %3775 = vxpose.xlu0.b32.cont [15/16] 0.0, 128
        %3776 = vxpose.xlu0.b32.end [16/16] 0.0, 128
        %v3777 = vpop.trf.xlu0
        %v3778 = vpop.trf.xlu0
        %v3779 = vpop.trf.xlu0
        %v3780 = vpop.trf.xlu0
        %v3781 = vpop.trf.xlu0
        %v3782 = vpop.trf.xlu0
        %v3783 = vpop.trf.xlu0
        %v3784 = vpop.trf.xlu0
        %v3785 = vpop.trf.xlu0
        %v3786 = vpop.trf.xlu0
        %v3787 = vpop.trf.xlu0
        %v3788 = vpop.trf.xlu0
        %v3789 = vpop.trf.xlu0
        %v3790 = vpop.trf.xlu0
        %v3791 = vpop.trf.xlu0
        %v3792 = vpop.trf.xlu0
        %3793 = vxpose.xlu0.b32.start [1/16] %v2742, 128
        %3794 = vxpose.xlu0.b32.cont [2/16] %v2743, 128
        %3795 = vxpose.xlu0.b32.cont [3/16] 0.0, 128
        %3796 = vxpose.xlu0.b32.cont [4/16] 0.0, 128
        %3797 = vxpose.xlu0.b32.cont [5/16] 0.0, 128
        %3798 = vxpose.xlu0.b32.cont [6/16] 0.0, 128
        %3799 = vxpose.xlu0.b32.cont [7/16] 0.0, 128
        %3800 = vxpose.xlu0.b32.cont [8/16] 0.0, 128
        %3801 = vxpose.xlu0.b32.cont [9/16] 0.0, 128
        %3802 = vxpose.xlu0.b32.cont [10/16] 0.0, 128
        %3803 = vxpose.xlu0.b32.cont [11/16] 0.0, 128
        %3804 = vxpose.xlu0.b32.cont [12/16] 0.0, 128
        %3805 = vxpose.xlu0.b32.cont [13/16] 0.0, 128
        %3806 = vxpose.xlu0.b32.cont [14/16] 0.0, 128
        %3807 = vxpose.xlu0.b32.cont [15/16] 0.0, 128
        %3808 = vxpose.xlu0.b32.end [16/16] 0.0, 128
        %v3809 = vpop.trf.xlu0
        %v3810 = vpop.trf.xlu0
        %v3811 = vpop.trf.xlu0
        %v3812 = vpop.trf.xlu0
        %v3813 = vpop.trf.xlu0
        %v3814 = vpop.trf.xlu0
        %v3815 = vpop.trf.xlu0
        %v3816 = vpop.trf.xlu0
        %v3817 = vpop.trf.xlu0
        %v3818 = vpop.trf.xlu0
        %v3819 = vpop.trf.xlu0
        %v3820 = vpop.trf.xlu0
        %v3821 = vpop.trf.xlu0
        %v3822 = vpop.trf.xlu0
        %v3823 = vpop.trf.xlu0
        %v3824 = vpop.trf.xlu0
        %v3825 = vsel %vm2744, %v3585, -inf
        %3826 = vmax.xlane.f32.xlu0 %v3825
        %v3827 = vpop.xlane.xlu0 %3826
        %v3828 = vsel %vm2744, %v3586, -inf
        %3829 = vmax.xlane.f32.xlu0 %v3828
        %v3830 = vpop.xlane.xlu0 %3829
        %v3831 = vsel %vm2744, %v3617, -inf
        %3832 = vmax.xlane.f32.xlu0 %v3831
        %v3833 = vpop.xlane.xlu0 %3832
        %v3834 = vsel %vm2744, %v3618, -inf
        %3835 = vmax.xlane.f32.xlu0 %v3834
        %v3836 = vpop.xlane.xlu0 %3835
        %v3837 = vsel %vm2744, %v3649, -inf
        %3838 = vmax.xlane.f32.xlu0 %v3837
        %v3839 = vpop.xlane.xlu0 %3838
        %v3840 = vsel %vm2744, %v3650, -inf
        %3841 = vmax.xlane.f32.xlu0 %v3840
        %v3842 = vpop.xlane.xlu0 %3841
        %v3843 = vsel %vm2744, %v3681, -inf
        %3844 = vmax.xlane.f32.xlu0 %v3843
        %v3845 = vpop.xlane.xlu0 %3844
        %v3846 = vsel %vm2744, %v3682, -inf
        %3847 = vmax.xlane.f32.xlu0 %v3846
        %v3848 = vpop.xlane.xlu0 %3847
        %v3849 = vsel %vm2744, %v3713, -inf
        %3850 = vmax.xlane.f32.xlu0 %v3849
        %v3851 = vpop.xlane.xlu0 %3850
        %v3852 = vsel %vm2744, %v3714, -inf
        %3853 = vmax.xlane.f32.xlu0 %v3852
        %v3854 = vpop.xlane.xlu0 %3853
        %v3855 = vsel %vm2744, %v3745, -inf
        %3856 = vmax.xlane.f32.xlu0 %v3855
        %v3857 = vpop.xlane.xlu0 %3856
        %v3858 = vsel %vm2744, %v3746, -inf
        %3859 = vmax.xlane.f32.xlu0 %v3858
        %v3860 = vpop.xlane.xlu0 %3859
        %v3861 = vsel %vm2744, %v3777, -inf
        %3862 = vmax.xlane.f32.xlu0 %v3861
        %v3863 = vpop.xlane.xlu0 %3862
        %v3864 = vsel %vm2744, %v3778, -inf
        %3865 = vmax.xlane.f32.xlu0 %v3864
        %v3866 = vpop.xlane.xlu0 %3865
        %v3867 = vsel %vm2744, %v3809, -inf
        %3868 = vmax.xlane.f32.xlu0 %v3867
        %v3869 = vpop.xlane.xlu0 %3868
        %v3870 = vsel %vm2744, %v3810, -inf
        %3871 = vmax.xlane.f32.xlu0 %v3870
        %v3872 = vpop.xlane.xlu0 %3871
        %v3873 = vsub.f32 %v3585, %v3827
        %v3874 = vsub.f32 %v3586, %v3830
        %v3875 = vsub.f32 %v3617, %v3833
        %v3876 = vsub.f32 %v3618, %v3836
        %v3877 = vsub.f32 %v3649, %v3839
        %v3878 = vsub.f32 %v3650, %v3842
        %v3879 = vsub.f32 %v3681, %v3845
        %v3880 = vsub.f32 %v3682, %v3848
        %v3881 = vsub.f32 %v3713, %v3851
        %v3882 = vsub.f32 %v3714, %v3854
        %v3883 = vsub.f32 %v3745, %v3857
        %v3884 = vsub.f32 %v3746, %v3860
        %v3885 = vsub.f32 %v3777, %v3863
        %v3886 = vsub.f32 %v3778, %v3866
        %v3887 = vsub.f32 %v3809, %v3869
        %v3888 = vsub.f32 %v3810, %v3872
        %v3889 = vmul.f32 %v3873, 1.442695
        %v3890 = vpow.pop %v3889
        %v3891 = vmul.f32 %v3874, 1.442695
        %v3892 = vpow.pop %v3891
        %v3893 = vmul.f32 %v3875, 1.442695
        %v3894 = vpow.pop %v3893
        %v3895 = vmul.f32 %v3876, 1.442695
        %v3896 = vpow.pop %v3895
        %v3897 = vmul.f32 %v3877, 1.442695
        %v3898 = vpow.pop %v3897
        %v3899 = vmul.f32 %v3878, 1.442695
        %v3900 = vpow.pop %v3899
        %v3901 = vmul.f32 %v3879, 1.442695
        %v3902 = vpow.pop %v3901
        %v3903 = vmul.f32 %v3880, 1.442695
        %v3904 = vpow.pop %v3903
        %v3905 = vmul.f32 %v3881, 1.442695
        %v3906 = vpow.pop %v3905
        %v3907 = vmul.f32 %v3882, 1.442695
        %v3908 = vpow.pop %v3907
        %v3909 = vmul.f32 %v3883, 1.442695
        %v3910 = vpow.pop %v3909
        %v3911 = vmul.f32 %v3884, 1.442695
        %v3912 = vpow.pop %v3911
        %v3913 = vmul.f32 %v3885, 1.442695
        %v3914 = vpow.pop %v3913
        %v3915 = vmul.f32 %v3886, 1.442695
        %v3916 = vpow.pop %v3915
        %v3917 = vmul.f32 %v3887, 1.442695
        %v3918 = vpow.pop %v3917
        %v3919 = vmul.f32 %v3888, 1.442695
        %v3920 = vpow.pop %v3919
        %v3921 = vsel %vm2744, %v3890, 0.0
        %3922 = vadd.xlane.f32.xlu0 %v3921
        %v3923 = vpop.xlane.xlu0 %3922
        %v3924 = vsel %vm2744, %v3892, 0.0
        %3925 = vadd.xlane.f32.xlu0 %v3924
        %v3926 = vpop.xlane.xlu0 %3925
        %v3927 = vsel %vm2744, %v3894, 0.0
        %3928 = vadd.xlane.f32.xlu0 %v3927
        %v3929 = vpop.xlane.xlu0 %3928
        %v3930 = vsel %vm2744, %v3896, 0.0
        %3931 = vadd.xlane.f32.xlu0 %v3930
        %v3932 = vpop.xlane.xlu0 %3931
        %v3933 = vsel %vm2744, %v3898, 0.0
        %3934 = vadd.xlane.f32.xlu0 %v3933
        %v3935 = vpop.xlane.xlu0 %3934
        %v3936 = vsel %vm2744, %v3900, 0.0
        %3937 = vadd.xlane.f32.xlu0 %v3936
        %v3938 = vpop.xlane.xlu0 %3937
        %v3939 = vsel %vm2744, %v3902, 0.0
        %3940 = vadd.xlane.f32.xlu0 %v3939
        %v3941 = vpop.xlane.xlu0 %3940
        %v3942 = vsel %vm2744, %v3904, 0.0
        %3943 = vadd.xlane.f32.xlu0 %v3942
        %v3944 = vpop.xlane.xlu0 %3943
        %v3945 = vsel %vm2744, %v3906, 0.0
        %3946 = vadd.xlane.f32.xlu0 %v3945
        %v3947 = vpop.xlane.xlu0 %3946
        %v3948 = vsel %vm2744, %v3908, 0.0
        %3949 = vadd.xlane.f32.xlu0 %v3948
        %v3950 = vpop.xlane.xlu0 %3949
        %v3951 = vsel %vm2744, %v3910, 0.0
        %3952 = vadd.xlane.f32.xlu0 %v3951
        %v3953 = vpop.xlane.xlu0 %3952
        %v3954 = vsel %vm2744, %v3912, 0.0
        %3955 = vadd.xlane.f32.xlu0 %v3954
        %v3956 = vpop.xlane.xlu0 %3955
        %v3957 = vsel %vm2744, %v3914, 0.0
        %3958 = vadd.xlane.f32.xlu0 %v3957
        %v3959 = vpop.xlane.xlu0 %3958
        %v3960 = vsel %vm2744, %v3916, 0.0
        %3961 = vadd.xlane.f32.xlu0 %v3960
        %v3962 = vpop.xlane.xlu0 %3961
        %v3963 = vsel %vm2744, %v3918, 0.0
        %3964 = vadd.xlane.f32.xlu0 %v3963
        %v3965 = vpop.xlane.xlu0 %3964
        %v3966 = vsel %vm2744, %v3920, 0.0
        %3967 = vadd.xlane.f32.xlu0 %v3966
        %v3968 = vpop.xlane.xlu0 %3967
        %v3969 = vrcp.pop %v3923
        %v3970 = vmul.f32 %v3890, %v3969
        %v3971 = vrcp.pop %v3926
        %v3972 = vmul.f32 %v3892, %v3971
        %v3973 = vrcp.pop %v3929
        %v3974 = vmul.f32 %v3894, %v3973
        %v3975 = vrcp.pop %v3932
        %v3976 = vmul.f32 %v3896, %v3975
        %v3977 = vrcp.pop %v3935
        %v3978 = vmul.f32 %v3898, %v3977
        %v3979 = vrcp.pop %v3938
        %v3980 = vmul.f32 %v3900, %v3979
        %v3981 = vrcp.pop %v3941
        %v3982 = vmul.f32 %v3902, %v3981
        %v3983 = vrcp.pop %v3944
        %v3984 = vmul.f32 %v3904, %v3983
        %v3985 = vrcp.pop %v3947
        %v3986 = vmul.f32 %v3906, %v3985
        %v3987 = vrcp.pop %v3950
        %v3988 = vmul.f32 %v3908, %v3987
        %v3989 = vrcp.pop %v3953
        %v3990 = vmul.f32 %v3910, %v3989
        %v3991 = vrcp.pop %v3956
        %v3992 = vmul.f32 %v3912, %v3991
        %v3993 = vrcp.pop %v3959
        %v3994 = vmul.f32 %v3914, %v3993
        %v3995 = vrcp.pop %v3962
        %v3996 = vmul.f32 %v3916, %v3995
        %v3997 = vrcp.pop %v3965
        %v3998 = vmul.f32 %v3918, %v3997
        %v3999 = vrcp.pop %v3968
        %v4000 = vmul.f32 %v3920, %v3999
        %v4002 = vsel %vm2744, %v3970, 0
        %v4005 = vsel %vm2744, %v3972, 0
        %4007 = vmatprep.subr.mxu0 0.0
        %4008 = vmatpush1.msra.mxu0 %v1482
        %4009 = vmatprep.subr.mxu0 0.0
        %4010 = vmatpush1.msra.mxu0 %v1487
        %4011 = vmatprep.subr.mxu0 0.0
        %4012 = vmatpush1.msra.mxu0 0.0
        %4013 = vmatprep.subr.mxu0 0.0
        %4014 = vmatpush1.msra.mxu0 0.0
        %4015 = vmatprep.subr.mxu0 0.0
        %4016 = vmatpush1.msra.mxu0 0.0
        %4017 = vmatprep.subr.mxu0 0.0
        %4018 = vmatpush1.msra.mxu0 0.0
        %4019 = vmatprep.subr.mxu0 0.0
        %4020 = vmatpush1.msra.mxu0 0.0
        %4021 = vmatprep.subr.mxu0 0.0
        %4022 = vmatpush1.msra.mxu0 0.0
        %4023 = vmatprep.subr.mxu0 0.0
        %4024 = vmatpush1.msra.mxu0 0.0
        %4025 = vmatprep.subr.mxu0 0.0
        %4026 = vmatpush1.msra.mxu0 0.0
        %4027 = vmatprep.subr.mxu0 0.0
        %4028 = vmatpush1.msra.mxu0 0.0
        %4029 = vmatprep.subr.mxu0 0.0
        %4030 = vmatpush1.msra.mxu0 0.0
        %4031 = vmatprep.subr.mxu0 0.0
        %4032 = vmatpush1.msra.mxu0 0.0
        %4033 = vmatprep.subr.mxu0 0.0
        %4034 = vmatpush1.msra.mxu0 0.0
        %4035 = vmatprep.subr.mxu0 0.0
        %4036 = vmatpush1.msra.mxu0 0.0
        %4037 = vmatprep.subr.mxu0 0.0
        %4038 = vmatpush1.msra.mxu0 0.0
        %4039 = vmatprep.subr.mxu0 0.0
        %4040 = vmatpush1.msra.mxu0 0.0
        %4041 = vmatprep.subr.mxu0 0.0
        %4042 = vmatpush1.msra.mxu0 0.0
        %4043 = vmatprep.subr.mxu0 0.0
        %4044 = vmatpush1.msra.mxu0 0.0
        %4045 = vmatprep.subr.mxu0 0.0
        %4046 = vmatpush1.msra.mxu0 0.0
        %4047 = vmatprep.subr.mxu0 0.0
        %4048 = vmatpush1.msra.mxu0 0.0
        %4049 = vmatprep.subr.mxu0 0.0
        %4050 = vmatpush1.msra.mxu0 0.0
        %4051 = vmatprep.subr.mxu0 0.0
        %4052 = vmatpush1.msra.mxu0 0.0
        %4053 = vmatprep.subr.mxu0 0.0
        %4054 = vmatpush1.msra.mxu0 0.0
        %4055 = vmatprep.subr.mxu0 0.0
        %4056 = vmatpush1.msra.mxu0 0.0
        %4057 = vmatprep.subr.mxu0 0.0
        %4058 = vmatpush1.msra.mxu0 0.0
        %4059 = vmatprep.subr.mxu0 0.0
        %4060 = vmatpush1.msra.mxu0 0.0
        %4061 = vmatprep.subr.mxu0 0.0
        %4062 = vmatpush1.msra.mxu0 0.0
        %4063 = vmatprep.subr.mxu0 0.0
        %4064 = vmatpush1.msra.mxu0 0.0
        %4065 = vmatprep.subr.mxu0 0.0
        %4066 = vmatpush1.msra.mxu0 0.0
        %4067 = vmatprep.subr.mxu0 0.0
        %4068 = vmatpush1.msra.mxu0 0.0
        %4069 = vmatprep.subr.mxu0 0.0
        %4070 = vmatpush1.msra.mxu0 0.0
        %4071 = vmatprep.mubr.f32.mxu0 0.0
        %4072 = vmatmul.mubr.f32.gmra.mrb[0].mxu0 %v4002
        %v4073 = vpop.f32.mrb[0].mxu0
        %v4074 = vadd.f32 0.0, %v4073
        %v4075 = vpop.f32.mrb[0].mxu0
        %4076 = vmatprep.mubr.f32.mxu0 0.0
        %4077 = vmatmul.mubr.f32.gmra.mrb[0].mxu0 %v4005
        %v4078 = vpop.f32.mrb[0].mxu0
        %v4079 = vadd.f32 0.0, %v4078
        %v4080 = vpop.f32.mrb[0].mxu0
        %4081 = vdwg.mxu0
        %v4083 = vsel %vm2744, %v3974, 0
        %v4086 = vsel %vm2744, %v3976, 0
        %4088 = vmatprep.subr.mxu0 0.0
        %4089 = vmatpush1.msra.mxu0 %v1492
        %4090 = vmatprep.subr.mxu0 0.0
        %4091 = vmatpush1.msra.mxu0 %v1497
        %4092 = vmatprep.subr.mxu0 0.0
        %4093 = vmatpush1.msra.mxu0 0.0
        %4094 = vmatprep.subr.mxu0 0.0
        %4095 = vmatpush1.msra.mxu0 0.0
        %4096 = vmatprep.subr.mxu0 0.0
        %4097 = vmatpush1.msra.mxu0 0.0
        %4098 = vmatprep.subr.mxu0 0.0
        %4099 = vmatpush1.msra.mxu0 0.0
        %4100 = vmatprep.subr.mxu0 0.0
        %4101 = vmatpush1.msra.mxu0 0.0
        %4102 = vmatprep.subr.mxu0 0.0
        %4103 = vmatpush1.msra.mxu0 0.0
        %4104 = vmatprep.subr.mxu0 0.0
        %4105 = vmatpush1.msra.mxu0 0.0
        %4106 = vmatprep.subr.mxu0 0.0
        %4107 = vmatpush1.msra.mxu0 0.0
        %4108 = vmatprep.subr.mxu0 0.0
        %4109 = vmatpush1.msra.mxu0 0.0
        %4110 = vmatprep.subr.mxu0 0.0
        %4111 = vmatpush1.msra.mxu0 0.0
        %4112 = vmatprep.subr.mxu0 0.0
        %4113 = vmatpush1.msra.mxu0 0.0
        %4114 = vmatprep.subr.mxu0 0.0
        %4115 = vmatpush1.msra.mxu0 0.0
        %4116 = vmatprep.subr.mxu0 0.0
        %4117 = vmatpush1.msra.mxu0 0.0
        %4118 = vmatprep.subr.mxu0 0.0
        %4119 = vmatpush1.msra.mxu0 0.0
        %4120 = vmatprep.subr.mxu0 0.0
        %4121 = vmatpush1.msra.mxu0 0.0
        %4122 = vmatprep.subr.mxu0 0.0
        %4123 = vmatpush1.msra.mxu0 0.0
        %4124 = vmatprep.subr.mxu0 0.0
        %4125 = vmatpush1.msra.mxu0 0.0
        %4126 = vmatprep.subr.mxu0 0.0
        %4127 = vmatpush1.msra.mxu0 0.0
        %4128 = vmatprep.subr.mxu0 0.0
        %4129 = vmatpush1.msra.mxu0 0.0
        %4130 = vmatprep.subr.mxu0 0.0
        %4131 = vmatpush1.msra.mxu0 0.0
        %4132 = vmatprep.subr.mxu0 0.0
        %4133 = vmatpush1.msra.mxu0 0.0
        %4134 = vmatprep.subr.mxu0 0.0
        %4135 = vmatpush1.msra.mxu0 0.0
        %4136 = vmatprep.subr.mxu0 0.0
        %4137 = vmatpush1.msra.mxu0 0.0
        %4138 = vmatprep.subr.mxu0 0.0
        %4139 = vmatpush1.msra.mxu0 0.0
        %4140 = vmatprep.subr.mxu0 0.0
        %4141 = vmatpush1.msra.mxu0 0.0
        %4142 = vmatprep.subr.mxu0 0.0
        %4143 = vmatpush1.msra.mxu0 0.0
        %4144 = vmatprep.subr.mxu0 0.0
        %4145 = vmatpush1.msra.mxu0 0.0
        %4146 = vmatprep.subr.mxu0 0.0
        %4147 = vmatpush1.msra.mxu0 0.0
        %4148 = vmatprep.subr.mxu0 0.0
        %4149 = vmatpush1.msra.mxu0 0.0
        %4150 = vmatprep.subr.mxu0 0.0
        %4151 = vmatpush1.msra.mxu0 0.0
        %4152 = vmatprep.mubr.f32.mxu0 0.0
        %4153 = vmatmul.mubr.f32.gmra.mrb[0].mxu0 %v4083
        %v4154 = vpop.f32.mrb[0].mxu0
        %v4155 = vadd.f32 0.0, %v4154
        %v4156 = vpop.f32.mrb[0].mxu0
        %4157 = vmatprep.mubr.f32.mxu0 0.0
        %4158 = vmatmul.mubr.f32.gmra.mrb[0].mxu0 %v4086
        %v4159 = vpop.f32.mrb[0].mxu0
        %v4160 = vadd.f32 0.0, %v4159
        %v4161 = vpop.f32.mrb[0].mxu0
        %4162 = vdwg.mxu0
        %v4164 = vsel %vm2744, %v3978, 0
        %v4167 = vsel %vm2744, %v3980, 0
        %4169 = vmatprep.subr.mxu0 0.0
        %4170 = vmatpush1.msra.mxu0 %v1502
        %4171 = vmatprep.subr.mxu0 0.0
        %4172 = vmatpush1.msra.mxu0 %v1507
        %4173 = vmatprep.subr.mxu0 0.0
        %4174 = vmatpush1.msra.mxu0 0.0
        %4175 = vmatprep.subr.mxu0 0.0
        %4176 = vmatpush1.msra.mxu0 0.0
        %4177 = vmatprep.subr.mxu0 0.0
        %4178 = vmatpush1.msra.mxu0 0.0
        %4179 = vmatprep.subr.mxu0 0.0
        %4180 = vmatpush1.msra.mxu0 0.0
        %4181 = vmatprep.subr.mxu0 0.0
        %4182 = vmatpush1.msra.mxu0 0.0
        %4183 = vmatprep.subr.mxu0 0.0
        %4184 = vmatpush1.msra.mxu0 0.0
        %4185 = vmatprep.subr.mxu0 0.0
        %4186 = vmatpush1.msra.mxu0 0.0
        %4187 = vmatprep.subr.mxu0 0.0
        %4188 = vmatpush1.msra.mxu0 0.0
        %4189 = vmatprep.subr.mxu0 0.0
        %4190 = vmatpush1.msra.mxu0 0.0
        %4191 = vmatprep.subr.mxu0 0.0
        %4192 = vmatpush1.msra.mxu0 0.0
        %4193 = vmatprep.subr.mxu0 0.0
        %4194 = vmatpush1.msra.mxu0 0.0
        %4195 = vmatprep.subr.mxu0 0.0
        %4196 = vmatpush1.msra.mxu0 0.0
        %4197 = vmatprep.subr.mxu0 0.0
        %4198 = vmatpush1.msra.mxu0 0.0
        %4199 = vmatprep.subr.mxu0 0.0
        %4200 = vmatpush1.msra.mxu0 0.0
        %4201 = vmatprep.subr.mxu0 0.0
        %4202 = vmatpush1.msra.mxu0 0.0
        %4203 = vmatprep.subr.mxu0 0.0
        %4204 = vmatpush1.msra.mxu0 0.0
        %4205 = vmatprep.subr.mxu0 0.0
        %4206 = vmatpush1.msra.mxu0 0.0
        %4207 = vmatprep.subr.mxu0 0.0
        %4208 = vmatpush1.msra.mxu0 0.0
        %4209 = vmatprep.subr.mxu0 0.0
        %4210 = vmatpush1.msra.mxu0 0.0
        %4211 = vmatprep.subr.mxu0 0.0
        %4212 = vmatpush1.msra.mxu0 0.0
        %4213 = vmatprep.subr.mxu0 0.0
        %4214 = vmatpush1.msra.mxu0 0.0
        %4215 = vmatprep.subr.mxu0 0.0
        %4216 = vmatpush1.msra.mxu0 0.0
        %4217 = vmatprep.subr.mxu0 0.0
        %4218 = vmatpush1.msra.mxu0 0.0
        %4219 = vmatprep.subr.mxu0 0.0
        %4220 = vmatpush1.msra.mxu0 0.0
        %4221 = vmatprep.subr.mxu0 0.0
        %4222 = vmatpush1.msra.mxu0 0.0
        %4223 = vmatprep.subr.mxu0 0.0
        %4224 = vmatpush1.msra.mxu0 0.0
        %4225 = vmatprep.subr.mxu0 0.0
        %4226 = vmatpush1.msra.mxu0 0.0
        %4227 = vmatprep.subr.mxu0 0.0
        %4228 = vmatpush1.msra.mxu0 0.0
        %4229 = vmatprep.subr.mxu0 0.0
        %4230 = vmatpush1.msra.mxu0 0.0
        %4231 = vmatprep.subr.mxu0 0.0
        %4232 = vmatpush1.msra.mxu0 0.0
        %4233 = vmatprep.mubr.f32.mxu0 0.0
        %4234 = vmatmul.mubr.f32.gmra.mrb[0].mxu0 %v4164
        %v4235 = vpop.f32.mrb[0].mxu0
        %v4236 = vadd.f32 0.0, %v4235
        %v4237 = vpop.f32.mrb[0].mxu0
        %4238 = vmatprep.mubr.f32.mxu0 0.0
        %4239 = vmatmul.mubr.f32.gmra.mrb[0].mxu0 %v4167
        %v4240 = vpop.f32.mrb[0].mxu0
        %v4241 = vadd.f32 0.0, %v4240
        %v4242 = vpop.f32.mrb[0].mxu0
        %4243 = vdwg.mxu0
        %v4245 = vsel %vm2744, %v3982, 0
        %v4248 = vsel %vm2744, %v3984, 0
        %4250 = vmatprep.subr.mxu0 0.0
        %4251 = vmatpush1.msra.mxu0 %v1512
        %4252 = vmatprep.subr.mxu0 0.0
        %4253 = vmatpush1.msra.mxu0 %v1517
        %4254 = vmatprep.subr.mxu0 0.0
        %4255 = vmatpush1.msra.mxu0 0.0
        %4256 = vmatprep.subr.mxu0 0.0
        %4257 = vmatpush1.msra.mxu0 0.0
        %4258 = vmatprep.subr.mxu0 0.0
        %4259 = vmatpush1.msra.mxu0 0.0
        %4260 = vmatprep.subr.mxu0 0.0
        %4261 = vmatpush1.msra.mxu0 0.0
        %4262 = vmatprep.subr.mxu0 0.0
        %4263 = vmatpush1.msra.mxu0 0.0
        %4264 = vmatprep.subr.mxu0 0.0
        %4265 = vmatpush1.msra.mxu0 0.0
        %4266 = vmatprep.subr.mxu0 0.0
        %4267 = vmatpush1.msra.mxu0 0.0
        %4268 = vmatprep.subr.mxu0 0.0
        %4269 = vmatpush1.msra.mxu0 0.0
        %4270 = vmatprep.subr.mxu0 0.0
        %4271 = vmatpush1.msra.mxu0 0.0
        %4272 = vmatprep.subr.mxu0 0.0
        %4273 = vmatpush1.msra.mxu0 0.0
        %4274 = vmatprep.subr.mxu0 0.0
        %4275 = vmatpush1.msra.mxu0 0.0
        %4276 = vmatprep.subr.mxu0 0.0
        %4277 = vmatpush1.msra.mxu0 0.0
        %4278 = vmatprep.subr.mxu0 0.0
        %4279 = vmatpush1.msra.mxu0 0.0
        %4280 = vmatprep.subr.mxu0 0.0
        %4281 = vmatpush1.msra.mxu0 0.0
        %4282 = vmatprep.subr.mxu0 0.0
        %4283 = vmatpush1.msra.mxu0 0.0
        %4284 = vmatprep.subr.mxu0 0.0
        %4285 = vmatpush1.msra.mxu0 0.0
        %4286 = vmatprep.subr.mxu0 0.0
        %4287 = vmatpush1.msra.mxu0 0.0
        %4288 = vmatprep.subr.mxu0 0.0
        %4289 = vmatpush1.msra.mxu0 0.0
        %4290 = vmatprep.subr.mxu0 0.0
        %4291 = vmatpush1.msra.mxu0 0.0
        %4292 = vmatprep.subr.mxu0 0.0
        %4293 = vmatpush1.msra.mxu0 0.0
        %4294 = vmatprep.subr.mxu0 0.0
        %4295 = vmatpush1.msra.mxu0 0.0
        %4296 = vmatprep.subr.mxu0 0.0
        %4297 = vmatpush1.msra.mxu0 0.0
        %4298 = vmatprep.subr.mxu0 0.0
        %4299 = vmatpush1.msra.mxu0 0.0
        %4300 = vmatprep.subr.mxu0 0.0
        %4301 = vmatpush1.msra.mxu0 0.0
        %4302 = vmatprep.subr.mxu0 0.0
        %4303 = vmatpush1.msra.mxu0 0.0
        %4304 = vmatprep.subr.mxu0 0.0
        %4305 = vmatpush1.msra.mxu0 0.0
        %4306 = vmatprep.subr.mxu0 0.0
        %4307 = vmatpush1.msra.mxu0 0.0
        %4308 = vmatprep.subr.mxu0 0.0
        %4309 = vmatpush1.msra.mxu0 0.0
        %4310 = vmatprep.subr.mxu0 0.0
        %4311 = vmatpush1.msra.mxu0 0.0
        %4312 = vmatprep.subr.mxu0 0.0
        %4313 = vmatpush1.msra.mxu0 0.0
        %4314 = vmatprep.mubr.f32.mxu0 0.0
        %4315 = vmatmul.mubr.f32.gmra.mrb[0].mxu0 %v4245
        %v4316 = vpop.f32.mrb[0].mxu0
        %v4317 = vadd.f32 0.0, %v4316
        %v4318 = vpop.f32.mrb[0].mxu0
        %4319 = vmatprep.mubr.f32.mxu0 0.0
        %4320 = vmatmul.mubr.f32.gmra.mrb[0].mxu0 %v4248
        %v4321 = vpop.f32.mrb[0].mxu0
        %v4322 = vadd.f32 0.0, %v4321
        %v4323 = vpop.f32.mrb[0].mxu0
        %4324 = vdwg.mxu0
        %v4326 = vsel %vm2744, %v3986, 0
        %v4329 = vsel %vm2744, %v3988, 0
        %4331 = vmatprep.subr.mxu0 0.0
        %4332 = vmatpush1.msra.mxu0 %v1522
        %4333 = vmatprep.subr.mxu0 0.0
        %4334 = vmatpush1.msra.mxu0 %v1527
        %4335 = vmatprep.subr.mxu0 0.0
        %4336 = vmatpush1.msra.mxu0 0.0
        %4337 = vmatprep.subr.mxu0 0.0
        %4338 = vmatpush1.msra.mxu0 0.0
        %4339 = vmatprep.subr.mxu0 0.0
        %4340 = vmatpush1.msra.mxu0 0.0
        %4341 = vmatprep.subr.mxu0 0.0
        %4342 = vmatpush1.msra.mxu0 0.0
        %4343 = vmatprep.subr.mxu0 0.0
        %4344 = vmatpush1.msra.mxu0 0.0
        %4345 = vmatprep.subr.mxu0 0.0
        %4346 = vmatpush1.msra.mxu0 0.0
        %4347 = vmatprep.subr.mxu0 0.0
        %4348 = vmatpush1.msra.mxu0 0.0
        %4349 = vmatprep.subr.mxu0 0.0
        %4350 = vmatpush1.msra.mxu0 0.0
        %4351 = vmatprep.subr.mxu0 0.0
        %4352 = vmatpush1.msra.mxu0 0.0
        %4353 = vmatprep.subr.mxu0 0.0
        %4354 = vmatpush1.msra.mxu0 0.0
        %4355 = vmatprep.subr.mxu0 0.0
        %4356 = vmatpush1.msra.mxu0 0.0
        %4357 = vmatprep.subr.mxu0 0.0
        %4358 = vmatpush1.msra.mxu0 0.0
        %4359 = vmatprep.subr.mxu0 0.0
        %4360 = vmatpush1.msra.mxu0 0.0
        %4361 = vmatprep.subr.mxu0 0.0
        %4362 = vmatpush1.msra.mxu0 0.0
        %4363 = vmatprep.subr.mxu0 0.0
        %4364 = vmatpush1.msra.mxu0 0.0
        %4365 = vmatprep.subr.mxu0 0.0
        %4366 = vmatpush1.msra.mxu0 0.0
        %4367 = vmatprep.subr.mxu0 0.0
        %4368 = vmatpush1.msra.mxu0 0.0
        %4369 = vmatprep.subr.mxu0 0.0
        %4370 = vmatpush1.msra.mxu0 0.0
        %4371 = vmatprep.subr.mxu0 0.0
        %4372 = vmatpush1.msra.mxu0 0.0
        %4373 = vmatprep.subr.mxu0 0.0
        %4374 = vmatpush1.msra.mxu0 0.0
        %4375 = vmatprep.subr.mxu0 0.0
        %4376 = vmatpush1.msra.mxu0 0.0
        %4377 = vmatprep.subr.mxu0 0.0
        %4378 = vmatpush1.msra.mxu0 0.0
        %4379 = vmatprep.subr.mxu0 0.0
        %4380 = vmatpush1.msra.mxu0 0.0
        %4381 = vmatprep.subr.mxu0 0.0
        %4382 = vmatpush1.msra.mxu0 0.0
        %4383 = vmatprep.subr.mxu0 0.0
        %4384 = vmatpush1.msra.mxu0 0.0
        %4385 = vmatprep.subr.mxu0 0.0
        %4386 = vmatpush1.msra.mxu0 0.0
        %4387 = vmatprep.subr.mxu0 0.0
        %4388 = vmatpush1.msra.mxu0 0.0
        %4389 = vmatprep.subr.mxu0 0.0
        %4390 = vmatpush1.msra.mxu0 0.0
        %4391 = vmatprep.subr.mxu0 0.0
        %4392 = vmatpush1.msra.mxu0 0.0
        %4393 = vmatprep.subr.mxu0 0.0
        %4394 = vmatpush1.msra.mxu0 0.0
        %4395 = vmatprep.mubr.f32.mxu0 0.0
        %4396 = vmatmul.mubr.f32.gmra.mrb[0].mxu0 %v4326
        %v4397 = vpop.f32.mrb[0].mxu0
        %v4398 = vadd.f32 0.0, %v4397
        %v4399 = vpop.f32.mrb[0].mxu0
        %4400 = vmatprep.mubr.f32.mxu0 0.0
        %4401 = vmatmul.mubr.f32.gmra.mrb[0].mxu0 %v4329
        %v4402 = vpop.f32.mrb[0].mxu0
        %v4403 = vadd.f32 0.0, %v4402
        %v4404 = vpop.f32.mrb[0].mxu0
        %4405 = vdwg.mxu0
        %v4407 = vsel %vm2744, %v3990, 0
        %v4410 = vsel %vm2744, %v3992, 0
        %4412 = vmatprep.subr.mxu0 0.0
        %4413 = vmatpush1.msra.mxu0 %v1532
        %4414 = vmatprep.subr.mxu0 0.0
        %4415 = vmatpush1.msra.mxu0 %v1537
        %4416 = vmatprep.subr.mxu0 0.0
        %4417 = vmatpush1.msra.mxu0 0.0
        %4418 = vmatprep.subr.mxu0 0.0
        %4419 = vmatpush1.msra.mxu0 0.0
        %4420 = vmatprep.subr.mxu0 0.0
        %4421 = vmatpush1.msra.mxu0 0.0
        %4422 = vmatprep.subr.mxu0 0.0
        %4423 = vmatpush1.msra.mxu0 0.0
        %4424 = vmatprep.subr.mxu0 0.0
        %4425 = vmatpush1.msra.mxu0 0.0
        %4426 = vmatprep.subr.mxu0 0.0
        %4427 = vmatpush1.msra.mxu0 0.0
        %4428 = vmatprep.subr.mxu0 0.0
        %4429 = vmatpush1.msra.mxu0 0.0
        %4430 = vmatprep.subr.mxu0 0.0
        %4431 = vmatpush1.msra.mxu0 0.0
        %4432 = vmatprep.subr.mxu0 0.0
        %4433 = vmatpush1.msra.mxu0 0.0
        %4434 = vmatprep.subr.mxu0 0.0
        %4435 = vmatpush1.msra.mxu0 0.0
        %4436 = vmatprep.subr.mxu0 0.0
        %4437 = vmatpush1.msra.mxu0 0.0
        %4438 = vmatprep.subr.mxu0 0.0
        %4439 = vmatpush1.msra.mxu0 0.0
        %4440 = vmatprep.subr.mxu0 0.0
        %4441 = vmatpush1.msra.mxu0 0.0
        %4442 = vmatprep.subr.mxu0 0.0
        %4443 = vmatpush1.msra.mxu0 0.0
        %4444 = vmatprep.subr.mxu0 0.0
        %4445 = vmatpush1.msra.mxu0 0.0
        %4446 = vmatprep.subr.mxu0 0.0
        %4447 = vmatpush1.msra.mxu0 0.0
        %4448 = vmatprep.subr.mxu0 0.0
        %4449 = vmatpush1.msra.mxu0 0.0
        %4450 = vmatprep.subr.mxu0 0.0
        %4451 = vmatpush1.msra.mxu0 0.0
        %4452 = vmatprep.subr.mxu0 0.0
        %4453 = vmatpush1.msra.mxu0 0.0
        %4454 = vmatprep.subr.mxu0 0.0
        %4455 = vmatpush1.msra.mxu0 0.0
        %4456 = vmatprep.subr.mxu0 0.0
        %4457 = vmatpush1.msra.mxu0 0.0
        %4458 = vmatprep.subr.mxu0 0.0
        %4459 = vmatpush1.msra.mxu0 0.0
        %4460 = vmatprep.subr.mxu0 0.0
        %4461 = vmatpush1.msra.mxu0 0.0
        %4462 = vmatprep.subr.mxu0 0.0
        %4463 = vmatpush1.msra.mxu0 0.0
        %4464 = vmatprep.subr.mxu0 0.0
        %4465 = vmatpush1.msra.mxu0 0.0
        %4466 = vmatprep.subr.mxu0 0.0
        %4467 = vmatpush1.msra.mxu0 0.0
        %4468 = vmatprep.subr.mxu0 0.0
        %4469 = vmatpush1.msra.mxu0 0.0
        %4470 = vmatprep.subr.mxu0 0.0
        %4471 = vmatpush1.msra.mxu0 0.0
        %4472 = vmatprep.subr.mxu0 0.0
        %4473 = vmatpush1.msra.mxu0 0.0
        %4474 = vmatprep.subr.mxu0 0.0
        %4475 = vmatpush1.msra.mxu0 0.0
        %4476 = vmatprep.mubr.f32.mxu0 0.0
        %4477 = vmatmul.mubr.f32.gmra.mrb[0].mxu0 %v4407
        %v4478 = vpop.f32.mrb[0].mxu0
        %v4479 = vadd.f32 0.0, %v4478
        %v4480 = vpop.f32.mrb[0].mxu0
        %4481 = vmatprep.mubr.f32.mxu0 0.0
        %4482 = vmatmul.mubr.f32.gmra.mrb[0].mxu0 %v4410
        %v4483 = vpop.f32.mrb[0].mxu0
        %v4484 = vadd.f32 0.0, %v4483
        %v4485 = vpop.f32.mrb[0].mxu0
        %4486 = vdwg.mxu0
        %v4488 = vsel %vm2744, %v3994, 0
        %v4491 = vsel %vm2744, %v3996, 0
        %4493 = vmatprep.subr.mxu0 0.0
        %4494 = vmatpush1.msra.mxu0 %v1542
        %4495 = vmatprep.subr.mxu0 0.0
        %4496 = vmatpush1.msra.mxu0 %v1547
        %4497 = vmatprep.subr.mxu0 0.0
        %4498 = vmatpush1.msra.mxu0 0.0
        %4499 = vmatprep.subr.mxu0 0.0
        %4500 = vmatpush1.msra.mxu0 0.0
        %4501 = vmatprep.subr.mxu0 0.0
        %4502 = vmatpush1.msra.mxu0 0.0
        %4503 = vmatprep.subr.mxu0 0.0
        %4504 = vmatpush1.msra.mxu0 0.0
        %4505 = vmatprep.subr.mxu0 0.0
        %4506 = vmatpush1.msra.mxu0 0.0
        %4507 = vmatprep.subr.mxu0 0.0
        %4508 = vmatpush1.msra.mxu0 0.0
        %4509 = vmatprep.subr.mxu0 0.0
        %4510 = vmatpush1.msra.mxu0 0.0
        %4511 = vmatprep.subr.mxu0 0.0
        %4512 = vmatpush1.msra.mxu0 0.0
        %4513 = vmatprep.subr.mxu0 0.0
        %4514 = vmatpush1.msra.mxu0 0.0
        %4515 = vmatprep.subr.mxu0 0.0
        %4516 = vmatpush1.msra.mxu0 0.0
        %4517 = vmatprep.subr.mxu0 0.0
        %4518 = vmatpush1.msra.mxu0 0.0
        %4519 = vmatprep.subr.mxu0 0.0
        %4520 = vmatpush1.msra.mxu0 0.0
        %4521 = vmatprep.subr.mxu0 0.0
        %4522 = vmatpush1.msra.mxu0 0.0
        %4523 = vmatprep.subr.mxu0 0.0
        %4524 = vmatpush1.msra.mxu0 0.0
        %4525 = vmatprep.subr.mxu0 0.0
        %4526 = vmatpush1.msra.mxu0 0.0
        %4527 = vmatprep.subr.mxu0 0.0
        %4528 = vmatpush1.msra.mxu0 0.0
        %4529 = vmatprep.subr.mxu0 0.0
        %4530 = vmatpush1.msra.mxu0 0.0
        %4531 = vmatprep.subr.mxu0 0.0
        %4532 = vmatpush1.msra.mxu0 0.0
        %4533 = vmatprep.subr.mxu0 0.0
        %4534 = vmatpush1.msra.mxu0 0.0
        %4535 = vmatprep.subr.mxu0 0.0
        %4536 = vmatpush1.msra.mxu0 0.0
        %4537 = vmatprep.subr.mxu0 0.0
        %4538 = vmatpush1.msra.mxu0 0.0
        %4539 = vmatprep.subr.mxu0 0.0
        %4540 = vmatpush1.msra.mxu0 0.0
        %4541 = vmatprep.subr.mxu0 0.0
        %4542 = vmatpush1.msra.mxu0 0.0
        %4543 = vmatprep.subr.mxu0 0.0
        %4544 = vmatpush1.msra.mxu0 0.0
        %4545 = vmatprep.subr.mxu0 0.0
        %4546 = vmatpush1.msra.mxu0 0.0
        %4547 = vmatprep.subr.mxu0 0.0
        %4548 = vmatpush1.msra.mxu0 0.0
        %4549 = vmatprep.subr.mxu0 0.0
        %4550 = vmatpush1.msra.mxu0 0.0
        %4551 = vmatprep.subr.mxu0 0.0
        %4552 = vmatpush1.msra.mxu0 0.0
        %4553 = vmatprep.subr.mxu0 0.0
        %4554 = vmatpush1.msra.mxu0 0.0
        %4555 = vmatprep.subr.mxu0 0.0
        %4556 = vmatpush1.msra.mxu0 0.0
        %4557 = vmatprep.mubr.f32.mxu0 0.0
        %4558 = vmatmul.mubr.f32.gmra.mrb[0].mxu0 %v4488
        %v4559 = vpop.f32.mrb[0].mxu0
        %v4560 = vadd.f32 0.0, %v4559
        %v4561 = vpop.f32.mrb[0].mxu0
        %4562 = vmatprep.mubr.f32.mxu0 0.0
        %4563 = vmatmul.mubr.f32.gmra.mrb[0].mxu0 %v4491
        %v4564 = vpop.f32.mrb[0].mxu0
        %v4565 = vadd.f32 0.0, %v4564
        %v4566 = vpop.f32.mrb[0].mxu0
        %4567 = vdwg.mxu0
        %v4569 = vsel %vm2744, %v3998, 0
        %v4572 = vsel %vm2744, %v4000, 0
        %4574 = vmatprep.subr.mxu0 0.0
        %4575 = vmatpush1.msra.mxu0 %v1552
        %4576 = vmatprep.subr.mxu0 0.0
        %4577 = vmatpush1.msra.mxu0 %v1557
        %4578 = vmatprep.subr.mxu0 0.0
        %4579 = vmatpush1.msra.mxu0 0.0
        %4580 = vmatprep.subr.mxu0 0.0
        %4581 = vmatpush1.msra.mxu0 0.0
        %4582 = vmatprep.subr.mxu0 0.0
        %4583 = vmatpush1.msra.mxu0 0.0
        %4584 = vmatprep.subr.mxu0 0.0
        %4585 = vmatpush1.msra.mxu0 0.0
        %4586 = vmatprep.subr.mxu0 0.0
        %4587 = vmatpush1.msra.mxu0 0.0
        %4588 = vmatprep.subr.mxu0 0.0
        %4589 = vmatpush1.msra.mxu0 0.0
        %4590 = vmatprep.subr.mxu0 0.0
        %4591 = vmatpush1.msra.mxu0 0.0
        %4592 = vmatprep.subr.mxu0 0.0
        %4593 = vmatpush1.msra.mxu0 0.0
        %4594 = vmatprep.subr.mxu0 0.0
        %4595 = vmatpush1.msra.mxu0 0.0
        %4596 = vmatprep.subr.mxu0 0.0
        %4597 = vmatpush1.msra.mxu0 0.0
        %4598 = vmatprep.subr.mxu0 0.0
        %4599 = vmatpush1.msra.mxu0 0.0
        %4600 = vmatprep.subr.mxu0 0.0
        %4601 = vmatpush1.msra.mxu0 0.0
        %4602 = vmatprep.subr.mxu0 0.0
        %4603 = vmatpush1.msra.mxu0 0.0
        %4604 = vmatprep.subr.mxu0 0.0
        %4605 = vmatpush1.msra.mxu0 0.0
        %4606 = vmatprep.subr.mxu0 0.0
        %4607 = vmatpush1.msra.mxu0 0.0
        %4608 = vmatprep.subr.mxu0 0.0
        %4609 = vmatpush1.msra.mxu0 0.0
        %4610 = vmatprep.subr.mxu0 0.0
        %4611 = vmatpush1.msra.mxu0 0.0
        %4612 = vmatprep.subr.mxu0 0.0
        %4613 = vmatpush1.msra.mxu0 0.0
        %4614 = vmatprep.subr.mxu0 0.0
        %4615 = vmatpush1.msra.mxu0 0.0
        %4616 = vmatprep.subr.mxu0 0.0
        %4617 = vmatpush1.msra.mxu0 0.0
        %4618 = vmatprep.subr.mxu0 0.0
        %4619 = vmatpush1.msra.mxu0 0.0
        %4620 = vmatprep.subr.mxu0 0.0
        %4621 = vmatpush1.msra.mxu0 0.0
        %4622 = vmatprep.subr.mxu0 0.0
        %4623 = vmatpush1.msra.mxu0 0.0
        %4624 = vmatprep.subr.mxu0 0.0
        %4625 = vmatpush1.msra.mxu0 0.0
        %4626 = vmatprep.subr.mxu0 0.0
        %4627 = vmatpush1.msra.mxu0 0.0
        %4628 = vmatprep.subr.mxu0 0.0
        %4629 = vmatpush1.msra.mxu0 0.0
        %4630 = vmatprep.subr.mxu0 0.0
        %4631 = vmatpush1.msra.mxu0 0.0
        %4632 = vmatprep.subr.mxu0 0.0
        %4633 = vmatpush1.msra.mxu0 0.0
        %4634 = vmatprep.subr.mxu0 0.0
        %4635 = vmatpush1.msra.mxu0 0.0
        %4636 = vmatprep.subr.mxu0 0.0
        %4637 = vmatpush1.msra.mxu0 0.0
        %4638 = vmatprep.mubr.f32.mxu0 0.0
        %4639 = vmatmul.mubr.f32.gmra.mrb[0].mxu0 %v4569
        %v4640 = vpop.f32.mrb[0].mxu0
        %v4641 = vadd.f32 0.0, %v4640
        %v4642 = vpop.f32.mrb[0].mxu0
        %4643 = vmatprep.mubr.f32.mxu0 0.0
        %4644 = vmatmul.mubr.f32.gmra.mrb[0].mxu0 %v4572
        %v4645 = vpop.f32.mrb[0].mxu0
        %v4646 = vadd.f32 0.0, %v4645
        %v4647 = vpop.f32.mrb[0].mxu0
        %4648 = vdwg.mxu0
        %v4649 = vld [vmem:[#allocation7] sm:$0x1]
        %v4651 = vlaneseq
        %v4652 = vshrl.u32 %v4651, 7
        %v4653 = vsub.s32 0, %v4652
        %v4654 = vrot.slane %v4649, %v4653
        %v4656 = vmul.f32 %v4654, %v2994
        %v4657 = vmul.f32 %v4654, %v2999
        %v4658 = vmul.f32 %v4654, %v3075
        %v4659 = vmul.f32 %v4654, %v3080
        %v4660 = vmul.f32 %v4654, %v3156
        %v4661 = vmul.f32 %v4654, %v3161
        %v4662 = vmul.f32 %v4654, %v3237
        %v4663 = vmul.f32 %v4654, %v3242
        %v4664 = vmul.f32 %v4654, %v3318
        %v4665 = vmul.f32 %v4654, %v3323
        %v4666 = vmul.f32 %v4654, %v3399
        %v4667 = vmul.f32 %v4654, %v3404
        %v4668 = vmul.f32 %v4654, %v3480
        %v4669 = vmul.f32 %v4654, %v3485
        %v4670 = vmul.f32 %v4654, %v3561
        %v4671 = vmul.f32 %v4654, %v3566
        %v4672 = vadd.f32 %v1798, %v4656
        %v4673 = vadd.f32 %v1803, %v4657
        %v4674 = vadd.f32 %v1808, %v4658
        %v4675 = vadd.f32 %v1813, %v4659
        %v4676 = vadd.f32 %v1818, %v4660
        %v4677 = vadd.f32 %v1823, %v4661
        %v4678 = vadd.f32 %v1828, %v4662
        %v4679 = vadd.f32 %v1833, %v4663
        %v4680 = vadd.f32 %v1838, %v4664
        %v4681 = vadd.f32 %v1843, %v4665
        %v4682 = vadd.f32 %v1848, %v4666
        %v4683 = vadd.f32 %v1853, %v4667
        %v4684 = vadd.f32 %v1858, %v4668
        %v4685 = vadd.f32 %v1863, %v4669
        %v4686 = vadd.f32 %v1868, %v4670
        %v4687 = vadd.f32 %v1873, %v4671
        %v4688 = vld [vmem:[%s17] sm:$0x1]
        %v4690 = vlaneseq
        %v4691 = vshrl.u32 %v4690, 7
        %v4692 = vsub.s32 0, %v4691
        %v4693 = vrot.slane %v4688, %v4692
        %v4695 = vmul.f32 %v4693, %v4074
        %v4696 = vmul.f32 %v4693, %v4079
        %v4697 = vmul.f32 %v4693, %v4155
        %v4698 = vmul.f32 %v4693, %v4160
        %v4699 = vmul.f32 %v4693, %v4236
        %v4700 = vmul.f32 %v4693, %v4241
        %v4701 = vmul.f32 %v4693, %v4317
        %v4702 = vmul.f32 %v4693, %v4322
        %v4703 = vmul.f32 %v4693, %v4398
        %v4704 = vmul.f32 %v4693, %v4403
        %v4705 = vmul.f32 %v4693, %v4479
        %v4706 = vmul.f32 %v4693, %v4484
        %v4707 = vmul.f32 %v4693, %v4560
        %v4708 = vmul.f32 %v4693, %v4565
        %v4709 = vmul.f32 %v4693, %v4641
        %v4710 = vmul.f32 %v4693, %v4646
        %v4711 = vadd.f32 %v1954, %v4695
        %v4712 = vadd.f32 %v1959, %v4696
        %v4713 = vadd.f32 %v1964, %v4697
        %v4714 = vadd.f32 %v1969, %v4698
        %v4715 = vadd.f32 %v1974, %v4699
        %v4716 = vadd.f32 %v1979, %v4700
        %v4717 = vadd.f32 %v1984, %v4701
        %v4718 = vadd.f32 %v1989, %v4702
        %v4719 = vadd.f32 %v1994, %v4703
        %v4720 = vadd.f32 %v1999, %v4704
        %v4721 = vadd.f32 %v2004, %v4705
        %v4722 = vadd.f32 %v2009, %v4706
        %v4723 = vadd.f32 %v2014, %v4707
        %v4724 = vadd.f32 %v2019, %v4708
        %v4725 = vadd.f32 %v2024, %v4709
        %v4726 = vadd.f32 %v2029, %v4710
        %4743 = vrot.lane.b32.xlu0 %v4711, 32
        %v4744 = vpop.permute.xlu0 %4743
        %4745 = vrot.lane.b32.xlu0 %v4712, 32
        %v4746 = vpop.permute.xlu0 %4745
        %4747 = vrot.lane.b32.xlu0 %v4713, 32
        %v4748 = vpop.permute.xlu0 %4747
        %4749 = vrot.lane.b32.xlu0 %v4714, 32
        %v4750 = vpop.permute.xlu0 %4749
        %4751 = vrot.lane.b32.xlu0 %v4715, 32
        %v4752 = vpop.permute.xlu0 %4751
        %4753 = vrot.lane.b32.xlu0 %v4716, 32
        %v4754 = vpop.permute.xlu0 %4753
        %4755 = vrot.lane.b32.xlu0 %v4717, 32
        %v4756 = vpop.permute.xlu0 %4755
        %4757 = vrot.lane.b32.xlu0 %v4718, 32
        %v4758 = vpop.permute.xlu0 %4757
        %4759 = vrot.lane.b32.xlu0 %v4719, 32
        %v4760 = vpop.permute.xlu0 %4759
        %4761 = vrot.lane.b32.xlu0 %v4720, 32
        %v4762 = vpop.permute.xlu0 %4761
        %4763 = vrot.lane.b32.xlu0 %v4721, 32
        %v4764 = vpop.permute.xlu0 %4763
        %4765 = vrot.lane.b32.xlu0 %v4722, 32
        %v4766 = vpop.permute.xlu0 %4765
        %4767 = vrot.lane.b32.xlu0 %v4723, 32
        %v4768 = vpop.permute.xlu0 %4767
        %4769 = vrot.lane.b32.xlu0 %v4724, 32
        %v4770 = vpop.permute.xlu0 %4769
        %4771 = vrot.lane.b32.xlu0 %v4725, 32
        %v4772 = vpop.permute.xlu0 %4771
        %4773 = vrot.lane.b32.xlu0 %v4726, 32
        %v4774 = vpop.permute.xlu0 %4773
        %v4791 = vsel %vm1158, %v4672, %v4744
        %v4792 = vsel %vm1158, %v4673, %v4746
        %v4793 = vsel %vm1158, %v4674, %v4748
        %v4794 = vsel %vm1158, %v4675, %v4750
        %v4795 = vsel %vm1158, %v4676, %v4752
        %v4796 = vsel %vm1158, %v4677, %v4754
        %v4797 = vsel %vm1158, %v4678, %v4756
        %v4798 = vsel %vm1158, %v4679, %v4758
        %v4799 = vsel %vm1158, %v4680, %v4760
        %v4800 = vsel %vm1158, %v4681, %v4762
        %v4801 = vsel %vm1158, %v4682, %v4764
        %v4802 = vsel %vm1158, %v4683, %v4766
        %v4803 = vsel %vm1158, %v4684, %v4768
        %v4804 = vsel %vm1158, %v4685, %v4770
        %v4805 = vsel %vm1158, %v4686, %v4772
        %v4806 = vsel %vm1158, %v4687, %v4774
        %4807 = vst.msk [vmem:[%s647] sm:$0xff] %vm683, %v4791
        %4808 = vst.msk [vmem:[%s647 + $0x8] sm:$0xff] %vm683, %v4792
        %4809 = vst.msk [vmem:[%s647 + $0x10] sm:$0xff] %vm683, %v4793
        %4810 = vst.msk [vmem:[%s647 + $0x18] sm:$0xff] %vm683, %v4794
        %4811 = vst.msk [vmem:[%s647 + $0x20] sm:$0xff] %vm683, %v4795
        %4812 = vst.msk [vmem:[%s647 + $0x28] sm:$0xff] %vm683, %v4796
        %4813 = vst.msk [vmem:[%s647 + $0x30] sm:$0xff] %vm683, %v4797
        %4814 = vst.msk [vmem:[%s647 + $0x38] sm:$0xff] %vm683, %v4798
        %4815 = vst.msk [vmem:[%s647 + $0x40] sm:$0xff] %vm683, %v4799
        %4816 = vst.msk [vmem:[%s647 + $0x48] sm:$0xff] %vm683, %v4800
        %4817 = vst.msk [vmem:[%s647 + $0x50] sm:$0xff] %vm683, %v4801
        %4818 = vst.msk [vmem:[%s647 + $0x58] sm:$0xff] %vm683, %v4802
        %4819 = vst.msk [vmem:[%s647 + $0x60] sm:$0xff] %vm683, %v4803
        %4820 = vst.msk [vmem:[%s647 + $0x68] sm:$0xff] %vm683, %v4804
        %4821 = vst.msk [vmem:[%s647 + $0x70] sm:$0xff] %vm683, %v4805
        %4822 = vst.msk [vmem:[%s647 + $0x78] sm:$0xff] %vm683, %v4806
        %s4823 = sand.u32 %s434, 1
        %s4824 = scalar_lea.sflag [#allocation4], %s4823
        %s4825 = sand.u32 %s434, 1
        %s4826 = smul.addr %s4825, 128
        %s4827 = scalar_lea.vmem [#allocation8], %s4826
        // Predicated region
        $region105: #{wasam_forward.1} parent=91 // pred_check
          %p4828 = pneg %p444
        $region106: #{wasam_forward.1} parent=91 // pred_check_branch
          %4830 = sbr.rel (%p4828) target = $region108
        $region107: #{wasam_forward.1} parent=91 // pred_region
          %s4831 = smul.u32 8, %s38
          %s4833 = ssub.s32 2048, 2048
          %4834 = vsyncadd %s4824, %s4833
          %s4835 = smul.addr %s4831, 2
          %s4836 = smul.addr %s4835, 128
          %s4837 = scalar_lea.hbm %s18, %s4836
          %s4838 = sshll.u32 %s4827, 4
          %s4839 = int_to_ptr.vmem [resolvable:$true] %s4838
          %4844 = dma.vmem_to_hbm [thread:$0]  %s4839, 2048, %s4837, %s4824, 128, 128, 8
        $region108: #{wasam_forward.1} parent=91 // pred_fallthru
          _
      $region92: #{wasam_forward.1} parent=5 // pred_fallthru
        _
      %p4845 = scmp.le.s32.totalorder 2, %s33
      // Predicated region
      $region109: #{wasam_forward.1} parent=5 // pred_check
        %p4846 = pneg %p4845
      $region110: #{wasam_forward.1} parent=5 // pred_check_branch
        %4848 = sbr.rel (%p4846) target = $region112
      $region111: #{wasam_forward.1} parent=5 // pred_region
        %s4849 = ssub.s32 %s33, 2
        // Predicated region
        $region113: #{wasam_forward.1} parent=111 // pred_check
          %p4850 = pneg %p450
        $region114: #{wasam_forward.1} parent=111 // pred_check_branch
          %4852 = sbr.rel (%p4850) target = $region116
        $region115: #{wasam_forward.1} parent=111 // pred_region
          %s4853 = sand.u32 %s435, 1
          %s4854 = scalar_lea.sflag [#allocation4], %s4853
          %s4855 = sand.u32 %s435, 1
          %s4856 = smul.addr %s4855, 128
          %s4857 = scalar_lea.vmem [#allocation8], %s4856
          %4858 = dma.done %s4854, 2048
        $region116: #{wasam_forward.1} parent=111 // pred_fallthru
          _
      $region112: #{wasam_forward.1} parent=5 // pred_fallthru
        _
    $region6: #{wasam_forward.1} parent=1 // loop_footer
      %s37 = sadd.s32 1, %s33
    $region7: #{wasam_forward.1} parent=1 // loop_footer_branch
      %32 = sbr.rel target = $region3
    $region8: #{wasam_forward.1} parent=1 // loop_exit
      _
    %4859 = vsyncpa [#allocation3], 1
    %s4860 = scalar_lea.sflag [#allocation3], 1
    %4861 = vsyncpa %s4860, 1
    %4862 = vsyncpa [#allocation6], 1
    %s4863 = scalar_lea.sflag [#allocation6], 1
    %4864 = vsyncpa %s4863, 1
    %4865 = vsyncpa [#allocation4], 1
    %s4866 = scalar_lea.sflag [#allocation4], 1
    %4867 = vsyncpa %s4866, 1

</llo_original>
